<compile_context>
chip_gen: v5e
topology: v5e:2x2
jax: 0.10.0
libtpu: 0.0.40
codegen_flags: <defaults>
</compile_context>

<pallas_src>
import jax
import jax.numpy as jnp
from jax.experimental import pallas as pl
from jax.experimental.pallas import tpu as pltpu

LN_EPS = 1e-5  # torch.nn.LayerNorm default


def _mlp_decoder_kernel(src_ref, dst_ref, w1a_ref, w1b_ref, b1_ref, g_ref,
                        beta_ref, w2_ref, b2_ref, o_ref):
    # src_ref/dst_ref: (TE, L) bf16 tiles of gathered node features
    # w1a_ref/w1b_ref: (L, 512) bf16 halves of the first linear weight
    # b1_ref/g_ref/beta_ref/w2_ref: (1, 512) f32
    # b2_ref: (1,) f32 scalar in SMEM
    # o_ref: (1, TE) f32 lane-dense output row

    # Linear 1 on the MXU (bf16 in, f32 accumulate). Split-K replaces the
    # concat([src, dst]) @ W1 formulation.
    h = jnp.dot(src_ref[...], w1a_ref[...], preferred_element_type=jnp.float32)
    h = h + jnp.dot(dst_ref[...], w1b_ref[...],
                    preferred_element_type=jnp.float32)
    h = h + b1_ref[...]                                   # (TE, 512) f32

    # LayerNorm over the 512 hidden features (f32).
    mu = jnp.mean(h, axis=-1, keepdims=True)
    centered = h - mu
    var = jnp.mean(centered * centered, axis=-1, keepdims=True)
    hn = centered * jax.lax.rsqrt(var + LN_EPS)
    hn = hn * g_ref[...] + beta_ref[...]

    # ReLU
    hn = jnp.maximum(hn, 0.0)

    # Linear 2 (512 -> 1) as VPU multiply + lane reduce (avoids an N=1 MXU
    # matmul) and produces the lane-dense (1, TE) row directly.
    scores = jnp.sum(hn * w2_ref[...], axis=-1) + b2_ref[0]   # (TE,)
    o_ref[...] = scores.reshape(1, -1).astype(o_ref.dtype)


def mlp_decoder_pallas(src, dst, w1a, w1b, b1, gamma, beta, w2, b2,
                       *, tile_e=256):
    """Per-relation MLP on gathered edge endpoints src/dst: (E, L) each."""
    E, L = src.shape
    H = w1a.shape[1]
    assert tile_e % 128 == 0, "tile_e should be a multiple of 128 (lane width)"

    # Pad the edge dimension to a multiple of tile_e; padded rows are
    # independent and dropped after the kernel.
    num_tiles = (E + tile_e - 1) // tile_e
    e_pad = num_tiles * tile_e
    if e_pad != E:
        pad = e_pad - E
        src = jnp.pad(src, ((0, pad), (0, 0)))
        dst = jnp.pad(dst, ((0, pad), (0, 0)))

    kernel = pl.pallas_call(
        _mlp_decoder_kernel,
        out_shape=jax.ShapeDtypeStruct((1, e_pad), jnp.float32),
        grid_spec=pltpu.PrefetchScalarGridSpec(
            num_scalar_prefetch=0,
            grid=(num_tiles,),
            in_specs=[
                pl.BlockSpec((tile_e, L), lambda i: (i, 0)),   # src tile
                pl.BlockSpec((tile_e, L), lambda i: (i, 0)),   # dst tile
                pl.BlockSpec((L, H), lambda i: (0, 0)),        # w1[:L]  (resident)
                pl.BlockSpec((L, H), lambda i: (0, 0)),        # w1[L:]  (resident)
                pl.BlockSpec((1, H), lambda i: (0, 0)),        # b1
                pl.BlockSpec((1, H), lambda i: (0, 0)),        # gamma
                pl.BlockSpec((1, H), lambda i: (0, 0)),        # beta
                pl.BlockSpec((1, H), lambda i: (0, 0)),        # w2 row
                pl.BlockSpec(memory_space=pltpu.MemorySpace.SMEM),  # b2 scalar
            ],
            out_specs=pl.BlockSpec((1, tile_e), lambda i: (0, i)),
        ),
        compiler_params=pltpu.CompilerParams(
            dimension_semantics=("parallel",)),
    )
    out_row = kernel(src, dst, w1a, w1b, b1, gamma, beta, w2, b2)  # (1, e_pad)
    return out_row[0, :E].reshape(E, 1)


def make_decoder_params(latent_dim, relations, key):
    """Deterministic synthetic parameters matching the module's __init__ shapes."""
    params = {}
    for r in relations:
        key, k1, k2, k3, k4 = jax.random.split(key, 5)
        in_f = latent_dim * 2
        params[r] = {
            # Linear(2L, 512) — weight stored bf16 (matmul-1 runs in bf16)
            "w1": (jax.random.normal(k1, (in_f, 512), jnp.float32)
                   * (1.0 / jnp.sqrt(in_f))).astype(jnp.bfloat16),
            "b1": jax.random.normal(k2, (1, 512), jnp.float32) * 0.01,
            # LayerNorm(512) affine
            "gamma": jnp.ones((1, 512), jnp.float32),
            "beta": jnp.zeros((1, 512), jnp.float32),
            # Linear(512, 1) — stored as a (1, 512) row for the VPU reduce
            "w2": (jax.random.normal(k3, (1, 512), jnp.float32)
                   * (1.0 / jnp.sqrt(512.0))),
            "b2": jax.random.normal(k4, (1,), jnp.float32) * 0.01,
        }
    return params


def multi_layer_perceptron_decoder(z, edge_index, relation, params,
                                   *, tile_e=256):
    """Full forward: gather in JAX glue (fuses with the bf16 cast), MLP in Pallas."""
    if isinstance(z, tuple):
        src = z[0][edge_index[0]]
        dst = z[1][edge_index[1]]
    else:
        src = z[edge_index[0]]
        dst = z[edge_index[1]]
    p = params[relation]
    L = src.shape[1]
    src = src.astype(jnp.bfloat16)
    dst = dst.astype(jnp.bfloat16)
    w1a = p["w1"][:L]
    w1b = p["w1"][L:]
    return mlp_decoder_pallas(src, dst, w1a, w1b, p["b1"], p["gamma"],
                              p["beta"], p["w2"], p["b2"], tile_e=tile_e)


def _reference(z, edge_index, relation, params):
    src = z[edge_index[0]]
    dst = z[edge_index[1]]
    x = jnp.concatenate([src, dst], axis=1)
    p = params[relation]
    h = x @ p["w1"].astype(jnp.float32) + p["b1"]
    mu = jnp.mean(h, axis=-1, keepdims=True)
    var = jnp.mean((h - mu) ** 2, axis=-1, keepdims=True)
    hn = (h - mu) / jnp.sqrt(var + LN_EPS)
    hn = hn * p["gamma"] + p["beta"]
    hn = jnp.maximum(hn, 0.0)
    return hn @ p["w2"].astype(jnp.float32).T + p["b2"]


if __name__ == "__main__":
    latent_dim = 32
    relations = ["rel_a", "rel_b"]
    num_nodes = 64
    num_edges = 500      # not a multiple of tile_e: exercises padding; grid = 2

    key = jax.random.PRNGKey(0)
    key, kz, ke, kp = jax.random.split(key, 4)

    z = jax.random.normal(kz, (num_nodes, latent_dim), jnp.float32)
    edge_index = jax.random.randint(ke, (2, num_edges), 0, num_nodes,
                                    dtype=jnp.int32)
    params = make_decoder_params(latent_dim, relations, kp)

    out = multi_layer_perceptron_decoder(z, edge_index, "rel_a", params)
    out = jax.block_until_ready(out)

    ref = _reference(z, edge_index, "rel_a", params)
    assert out.shape == (num_edges, 1), out.shape
    # bf16 matmul-1 => slightly looser tolerance (LayerNorm/reduce stay f32).
    assert jnp.allclose(out, ref, atol=5e-2, rtol=5e-2), "mismatch vs reference"

    print("KERNEL_OK")
</pallas_src>

<mosaic_0001>
module attributes {stable_mosaic.version = 11 : i64} {
  func.func @_mlp_decoder_kernel(%arg0: i32, %arg1: memref<256x32xbf16, #tpu.memory_space<vmem>>, %arg2: memref<256x32xbf16, #tpu.memory_space<vmem>>, %arg3: memref<32x512xbf16, #tpu.memory_space<vmem>>, %arg4: memref<32x512xbf16, #tpu.memory_space<vmem>>, %arg5: memref<1x512xf32, #tpu.memory_space<vmem>>, %arg6: memref<1x512xf32, #tpu.memory_space<vmem>>, %arg7: memref<1x512xf32, #tpu.memory_space<vmem>>, %arg8: memref<1x512xf32, #tpu.memory_space<vmem>>, %arg9: memref<1xf32, #tpu.memory_space<smem>>, %arg10: memref<1x256xf32, #tpu.memory_space<vmem>>) attributes {dimension_semantics = [#tpu.dimension_semantics<parallel>], iteration_bounds = array<i64: 2>, scalar_prefetch = 0 : i64, scratch_operands = 0 : i64, tpu.core_type = #tpu.core_type<tc>, window_params = [{transform_indices = @transform_0, window_bounds = array<i64: 256, 32>}, {transform_indices = @transform_1, window_bounds = array<i64: 256, 32>}, {pipeline_mode = #tpu.pipeline_mode<synchronous>, transform_indices = @transform_2, window_bounds = array<i64: 32, 512>}, {pipeline_mode = #tpu.pipeline_mode<synchronous>, transform_indices = @transform_3, window_bounds = array<i64: 32, 512>}, {pipeline_mode = #tpu.pipeline_mode<synchronous>, transform_indices = @transform_4, window_bounds = array<i64: 1, 512>}, {pipeline_mode = #tpu.pipeline_mode<synchronous>, transform_indices = @transform_5, window_bounds = array<i64: 1, 512>}, {pipeline_mode = #tpu.pipeline_mode<synchronous>, transform_indices = @transform_6, window_bounds = array<i64: 1, 512>}, {pipeline_mode = #tpu.pipeline_mode<synchronous>, transform_indices = @transform_7, window_bounds = array<i64: 1, 512>}, {transform_indices = @transform_8, window_bounds = array<i64: 1>}, {transform_indices = @transform_9, window_bounds = array<i64: 1, 256>}]} {
    %c0 = arith.constant 0 : index
    %c0_0 = arith.constant 0 : index
    %0 = vector.load %arg1[%c0, %c0_0] : memref<256x32xbf16, #tpu.memory_space<vmem>>, vector<256x32xbf16>
    %c0_1 = arith.constant 0 : index
    %c0_2 = arith.constant 0 : index
    %1 = vector.load %arg3[%c0_1, %c0_2] : memref<32x512xbf16, #tpu.memory_space<vmem>>, vector<32x512xbf16>
    %cst = arith.constant dense<0.000000e+00> : vector<256x512xf32>
    %2 = tpu.matmul %0, %1, %cst {dimension_numbers = #tpu.dot_dimension_numbers<[1], [0], [0], [1], [0, 0, 1, 1], [], []>} : vector<256x32xbf16>, vector<32x512xbf16>, vector<256x512xf32> -> vector<256x512xf32>
    %c0_3 = arith.constant 0 : index
    %c0_4 = arith.constant 0 : index
    %3 = vector.load %arg2[%c0_3, %c0_4] : memref<256x32xbf16, #tpu.memory_space<vmem>>, vector<256x32xbf16>
    %c0_5 = arith.constant 0 : index
    %c0_6 = arith.constant 0 : index
    %4 = vector.load %arg4[%c0_5, %c0_6] : memref<32x512xbf16, #tpu.memory_space<vmem>>, vector<32x512xbf16>
    %cst_7 = arith.constant dense<0.000000e+00> : vector<256x512xf32>
    %5 = tpu.matmul %3, %4, %cst_7 {dimension_numbers = #tpu.dot_dimension_numbers<[1], [0], [0], [1], [0, 0, 1, 1], [], []>} : vector<256x32xbf16>, vector<32x512xbf16>, vector<256x512xf32> -> vector<256x512xf32>
    %6 = arith.addf %2, %5 : vector<256x512xf32>
    %c0_8 = arith.constant 0 : index
    %c0_9 = arith.constant 0 : index
    %7 = vector.load %arg5[%c0_8, %c0_9] : memref<1x512xf32, #tpu.memory_space<vmem>>, vector<1x512xf32>
    %8 = vector.broadcast %7 : vector<1x512xf32> to vector<256x512xf32>
    %9 = arith.addf %6, %8 : vector<256x512xf32>
    %cst_10 = arith.constant dense<0.000000e+00> : vector<256xf32>
    %10 = vector.multi_reduction <add>, %9, %cst_10 [1] : vector<256x512xf32> to vector<256xf32>
    %11 = vector.shape_cast %10 : vector<256xf32> to vector<256x1xf32>
    %cst_11 = arith.constant 5.120000e+02 : f32
    %12 = vector.broadcast %cst_11 : f32 to vector<256x1xf32>
    %13 = arith.divf %11, %12 : vector<256x1xf32>
    %14 = vector.broadcast %13 : vector<256x1xf32> to vector<256x512xf32>
    %15 = arith.subf %9, %14 : vector<256x512xf32>
    %16 = arith.mulf %15, %15 : vector<256x512xf32>
    %cst_12 = arith.constant dense<0.000000e+00> : vector<256xf32>
    %17 = vector.multi_reduction <add>, %16, %cst_12 [1] : vector<256x512xf32> to vector<256xf32>
    %18 = vector.shape_cast %17 : vector<256xf32> to vector<256x1xf32>
    %cst_13 = arith.constant 5.120000e+02 : f32
    %19 = vector.broadcast %cst_13 : f32 to vector<256x1xf32>
    %20 = arith.divf %18, %19 : vector<256x1xf32>
    %cst_14 = arith.constant 9.99999974E-6 : f32
    %21 = vector.broadcast %cst_14 : f32 to vector<256x1xf32>
    %22 = arith.addf %20, %21 : vector<256x1xf32>
    %23 = math.rsqrt %22 : vector<256x1xf32>
    %24 = vector.broadcast %23 : vector<256x1xf32> to vector<256x512xf32>
    %25 = arith.mulf %15, %24 : vector<256x512xf32>
    %c0_15 = arith.constant 0 : index
    %c0_16 = arith.constant 0 : index
    %26 = vector.load %arg6[%c0_15, %c0_16] : memref<1x512xf32, #tpu.memory_space<vmem>>, vector<1x512xf32>
    %27 = vector.broadcast %26 : vector<1x512xf32> to vector<256x512xf32>
    %28 = arith.mulf %25, %27 : vector<256x512xf32>
    %c0_17 = arith.constant 0 : index
    %c0_18 = arith.constant 0 : index
    %29 = vector.load %arg7[%c0_17, %c0_18] : memref<1x512xf32, #tpu.memory_space<vmem>>, vector<1x512xf32>
    %30 = vector.broadcast %29 : vector<1x512xf32> to vector<256x512xf32>
    %31 = arith.addf %28, %30 : vector<256x512xf32>
    %cst_19 = arith.constant 0.000000e+00 : f32
    %32 = vector.broadcast %cst_19 : f32 to vector<256x512xf32>
    %33 = arith.maximumf %31, %32 : vector<256x512xf32>
    %c0_20 = arith.constant 0 : index
    %c0_21 = arith.constant 0 : index
    %34 = vector.load %arg8[%c0_20, %c0_21] : memref<1x512xf32, #tpu.memory_space<vmem>>, vector<1x512xf32>
    %35 = vector.broadcast %34 : vector<1x512xf32> to vector<256x512xf32>
    %36 = arith.mulf %33, %35 : vector<256x512xf32>
    %cst_22 = arith.constant dense<0.000000e+00> : vector<256xf32>
    %37 = vector.multi_reduction <add>, %36, %cst_22 [1] : vector<256x512xf32> to vector<256xf32>
    %c0_23 = arith.constant 0 : index
    %38 = memref.load %arg9[%c0_23] : memref<1xf32, #tpu.memory_space<smem>>
    %39 = vector.broadcast %38 : f32 to vector<256xf32>
    %40 = arith.addf %37, %39 : vector<256xf32>
    %41 = vector.shape_cast %40 : vector<256xf32> to vector<1x256xf32>
    %c0_24 = arith.constant 0 : index
    %c0_25 = arith.constant 0 : index
    %42 = vector.load %arg10[%c0_24, %c0_25] : memref<1x256xf32, #tpu.memory_space<vmem>>, vector<1x256xf32>
    tpu.vector_store %arg10[%c0_24, %c0_25], %41 {strides = array<i32>} : memref<1x256xf32, #tpu.memory_space<vmem>>, vector<1x256xf32>,
    return
  }
  func.func @transform_0(%arg0: i32) -> (i32, i32) {
    %c0_i32 = arith.constant 0 : i32
    %c0_i32_0 = arith.constant 0 : i32
    return %arg0, %c0_i32 : i32, i32
  }
  func.func @transform_1(%arg0: i32) -> (i32, i32) {
    %c0_i32 = arith.constant 0 : i32
    %c0_i32_0 = arith.constant 0 : i32
    return %arg0, %c0_i32 : i32, i32
  }
  func.func @transform_2(%arg0: i32) -> (i32, i32) {
    %c0_i32 = arith.constant 0 : i32
    %c0_i32_0 = arith.constant 0 : i32
    %c0_i32_1 = arith.constant 0 : i32
    return %c0_i32, %c0_i32_0 : i32, i32
  }
  func.func @transform_3(%arg0: i32) -> (i32, i32) {
    %c0_i32 = arith.constant 0 : i32
    %c0_i32_0 = arith.constant 0 : i32
    %c0_i32_1 = arith.constant 0 : i32
    return %c0_i32, %c0_i32_0 : i32, i32
  }
  func.func @transform_4(%arg0: i32) -> (i32, i32) {
    %c0_i32 = arith.constant 0 : i32
    %c0_i32_0 = arith.constant 0 : i32
    %c0_i32_1 = arith.constant 0 : i32
    return %c0_i32, %c0_i32_0 : i32, i32
  }
  func.func @transform_5(%arg0: i32) -> (i32, i32) {
    %c0_i32 = arith.constant 0 : i32
    %c0_i32_0 = arith.constant 0 : i32
    %c0_i32_1 = arith.constant 0 : i32
    return %c0_i32, %c0_i32_0 : i32, i32
  }
  func.func @transform_6(%arg0: i32) -> (i32, i32) {
    %c0_i32 = arith.constant 0 : i32
    %c0_i32_0 = arith.constant 0 : i32
    %c0_i32_1 = arith.constant 0 : i32
    return %c0_i32, %c0_i32_0 : i32, i32
  }
  func.func @transform_7(%arg0: i32) -> (i32, i32) {
    %c0_i32 = arith.constant 0 : i32
    %c0_i32_0 = arith.constant 0 : i32
    %c0_i32_1 = arith.constant 0 : i32
    return %c0_i32, %c0_i32_0 : i32, i32
  }
  func.func @transform_8(%arg0: i32) -> i32 {
    %c0_i32 = arith.constant 0 : i32
    %c0_i32_0 = arith.constant 0 : i32
    return %c0_i32 : i32
  }
  func.func @transform_9(%arg0: i32) -> (i32, i32) {
    %c0_i32 = arith.constant 0 : i32
    %c0_i32_0 = arith.constant 0 : i32
    return %c0_i32, %arg0 : i32, i32
  }
}

</mosaic_0001>

<llo_original>
// kernel: tpu_custom_call.1
$region0: #{tpu_custom_call.1}
  #allocation0 [shape = 'u32[]', space=smem, size = 0x4, offset = 0x4, fixed_abs, tag = 'smem constant byte address 0x4 - core index']
  #allocation1 [shape = 'u32[72,128]{1,0:T(1,128)}', space=vmem, size = 0x9000, scoped, tag = 'internal scratch']
  #allocation2 [shape = 'f32[1]{0:T(128)S(6)}', space=smem, size = 0x200, scoped, tag = 'scoped memory for tpu_custom_call.1']
  %s0 = inlined_call_operand.vmem [shape: bf16[512,32], index: 0, kind: input, shape index: {}]
  %s1 = inlined_call_operand.vmem [shape: bf16[512,32], index: 1, kind: input, shape index: {}]
  %s2 = inlined_call_operand.vmem [shape: bf16[32,512], index: 2, kind: input, shape index: {}]
  %s3 = inlined_call_operand.vmem [shape: bf16[32,512], index: 3, kind: input, shape index: {}]
  %s4 = inlined_call_operand.vmem [shape: f32[1,512], index: 4, kind: input, shape index: {}]
  %s5 = inlined_call_operand.vmem [shape: f32[1,512], index: 5, kind: input, shape index: {}]
  %s6 = inlined_call_operand.vmem [shape: f32[1,512], index: 6, kind: input, shape index: {}]
  %s7 = inlined_call_operand.vmem [shape: f32[1,512], index: 7, kind: input, shape index: {}]
  %s8 = inlined_call_operand.<no memory space> [shape: f32[1], index: 8, kind: input, shape index: {}]
  %s9 = inlined_call_operand.hbm [shape: f32[1,512], index: 9, kind: output, shape index: {}]
  %s10 = sld [smem:[#allocation0]]
  $region69: #{tpu_custom_call.1} parent=0
    _
  %s12 = ssub.s32 1, %s10
  %s13 = scalar_select 0, %s12, %s10
  %14 = sst [smem:[#allocation2]] %s8
  $region1: #{tpu_custom_call.1} parent=0
    #allocation3 [shape = 'u8[2048]{0}', space=vmem, size = 0x800, scoped, tag = 'output window, operand 0']
    #allocation4 [shape = 's32[2]{0}', space=sflag, size = 0x8, scoped, tag = 'scoped memory for tpu_custom_call.1']
    %15 = vsyncpa [#allocation4], 0
    %s16 = scalar_lea.sflag [#allocation4], 1
    %17 = vsyncpa %s16, 0
    loop: start=0, step=1, limit=4
    $region2: #{tpu_custom_call.1} parent=1 // loop_pre_header
      _
    $region3: #{tpu_custom_call.1} parent=1 // loop_header
      %s19 = sphi 0, %s23
      %p20 = scmp.ge.s32.totalorder %s19, 4
      %s29 = sphi 0, %s31
      %s32 = sphi 0, %s29
      %s33 = sphi 0, %s32
      %s49 = sphi 0, %s33
      %s55 = sphi 0, %s57
      %s58 = sphi 0, %s55
      %s59 = sphi 0, %s58
      %s75 = sphi 0, %s59
      %s79 = sphi 0, %s79
      %s81 = sphi 0, %s79
      %s82 = sphi 0, %s81
      %s96 = sphi 0, %s82
      %s100 = sphi 0, %s100
      %s102 = sphi 0, %s100
      %s103 = sphi 0, %s102
      %s117 = sphi 0, %s103
      %s121 = sphi 0, %s121
      %s123 = sphi 0, %s121
      %s124 = sphi 0, %s123
      %s138 = sphi 0, %s124
      %s142 = sphi 0, %s142
      %s144 = sphi 0, %s142
      %s145 = sphi 0, %s144
      %s159 = sphi 0, %s145
      %s163 = sphi 0, %s163
      %s165 = sphi 0, %s163
      %s166 = sphi 0, %s165
      %s180 = sphi 0, %s166
      %s184 = sphi 0, %s184
      %s186 = sphi 0, %s184
      %s187 = sphi 0, %s186
      %s201 = sphi 0, %s187
      %s205 = sphi 0, %s205
      %s207 = sphi 0, %s205
      %s208 = sphi 0, %s207
      %s222 = sphi 0, %s208
      %s228 = sphi 0, %s230
      %s231 = sphi 0, %s228
      %s232 = sphi 0, %s231
      %s248 = sphi 0, %s232
    $region4: #{tpu_custom_call.1} parent=1 // loop_header_branch
      %22 = sbr.rel (%p20) target = $region8
    $region5: #{tpu_custom_call.1} parent=1 // loop_body
      %s24 = ssub.s32 %s19, 1
      %s25 = ssub.s32 %s19, 2
      %s26 = sadd.s32 %s19, 1
      %s27 = ssub.s32 %s19, %s26
      %p28 = scmp.eq.s32.totalorder %s27, 0
      %s30 = sadd.s32 %s29, 1
      %s31 = scalar_select %p28, %s29, %s30
      %p34 = pneg %p28
      %p35 = scmp.eq.s32.totalorder %s19, 1
      %p36 = por %p34, %p35
      %p37 = scmp.ne.s32.totalorder %s29, %s32
      %p38 = scmp.eq.s32.totalorder %s19, 0
      %p39 = por %p37, %p38
      %p40 = scmp.ne.s32.totalorder %s29, %s32
      %p41 = scmp.eq.s32.totalorder %s24, 1
      %p42 = por %p40, %p41
      %p43 = scmp.ne.s32.totalorder %s32, %s33
      %p44 = scmp.eq.s32.totalorder %s24, 0
      %p45 = por %p43, %p44
      %p46 = scmp.ne.s32.totalorder %s32, %s33
      %p47 = scmp.eq.s32.totalorder %s25, 1
      %p48 = por %p46, %p47
      %p50 = scmp.ne.s32.totalorder %s33, %s49
      %p51 = scmp.eq.s32.totalorder %s25, 0
      %p52 = por %p50, %p51
      %s53 = ssub.s32 %s19, %s26
      %p54 = scmp.eq.s32.totalorder %s53, 0
      %s56 = sadd.s32 %s55, 1
      %s57 = scalar_select %p54, %s55, %s56
      %p60 = pneg %p54
      %p61 = scmp.eq.s32.totalorder %s19, 1
      %p62 = por %p60, %p61
      %p63 = scmp.ne.s32.totalorder %s55, %s58
      %p64 = scmp.eq.s32.totalorder %s19, 0
      %p65 = por %p63, %p64
      %p66 = scmp.ne.s32.totalorder %s55, %s58
      %p67 = scmp.eq.s32.totalorder %s24, 1
      %p68 = por %p66, %p67
      %p69 = scmp.ne.s32.totalorder %s58, %s59
      %p70 = scmp.eq.s32.totalorder %s24, 0
      %p71 = por %p69, %p70
      %p72 = scmp.ne.s32.totalorder %s58, %s59
      %p73 = scmp.eq.s32.totalorder %s25, 1
      %p74 = por %p72, %p73
      %p76 = scmp.ne.s32.totalorder %s59, %s75
      %p77 = scmp.eq.s32.totalorder %s25, 0
      %p78 = por %p76, %p77
      %s80 = sadd.s32 %s79, 1
      %p83 = scmp.eq.s32.totalorder %s19, 1
      %p84 = scmp.ne.s32.totalorder %s79, %s81
      %p85 = scmp.eq.s32.totalorder %s19, 0
      %p86 = por %p84, %p85
      %p87 = scmp.ne.s32.totalorder %s79, %s81
      %p88 = scmp.eq.s32.totalorder %s24, 1
      %p89 = por %p87, %p88
      %p90 = scmp.ne.s32.totalorder %s81, %s82
      %p91 = scmp.eq.s32.totalorder %s24, 0
      %p92 = por %p90, %p91
      %p93 = scmp.ne.s32.totalorder %s81, %s82
      %p94 = scmp.eq.s32.totalorder %s25, 1
      %p95 = por %p93, %p94
      %p97 = scmp.ne.s32.totalorder %s82, %s96
      %p98 = scmp.eq.s32.totalorder %s25, 0
      %p99 = por %p97, %p98
      %s101 = sadd.s32 %s100, 1
      %p104 = scmp.eq.s32.totalorder %s19, 1
      %p105 = scmp.ne.s32.totalorder %s100, %s102
      %p106 = scmp.eq.s32.totalorder %s19, 0
      %p107 = por %p105, %p106
      %p108 = scmp.ne.s32.totalorder %s100, %s102
      %p109 = scmp.eq.s32.totalorder %s24, 1
      %p110 = por %p108, %p109
      %p111 = scmp.ne.s32.totalorder %s102, %s103
      %p112 = scmp.eq.s32.totalorder %s24, 0
      %p113 = por %p111, %p112
      %p114 = scmp.ne.s32.totalorder %s102, %s103
      %p115 = scmp.eq.s32.totalorder %s25, 1
      %p116 = por %p114, %p115
      %p118 = scmp.ne.s32.totalorder %s103, %s117
      %p119 = scmp.eq.s32.totalorder %s25, 0
      %p120 = por %p118, %p119
      %s122 = sadd.s32 %s121, 1
      %p125 = scmp.eq.s32.totalorder %s19, 1
      %p126 = scmp.ne.s32.totalorder %s121, %s123
      %p127 = scmp.eq.s32.totalorder %s19, 0
      %p128 = por %p126, %p127
      %p129 = scmp.ne.s32.totalorder %s121, %s123
      %p130 = scmp.eq.s32.totalorder %s24, 1
      %p131 = por %p129, %p130
      %p132 = scmp.ne.s32.totalorder %s123, %s124
      %p133 = scmp.eq.s32.totalorder %s24, 0
      %p134 = por %p132, %p133
      %p135 = scmp.ne.s32.totalorder %s123, %s124
      %p136 = scmp.eq.s32.totalorder %s25, 1
      %p137 = por %p135, %p136
      %p139 = scmp.ne.s32.totalorder %s124, %s138
      %p140 = scmp.eq.s32.totalorder %s25, 0
      %p141 = por %p139, %p140
      %s143 = sadd.s32 %s142, 1
      %p146 = scmp.eq.s32.totalorder %s19, 1
      %p147 = scmp.ne.s32.totalorder %s142, %s144
      %p148 = scmp.eq.s32.totalorder %s19, 0
      %p149 = por %p147, %p148
      %p150 = scmp.ne.s32.totalorder %s142, %s144
      %p151 = scmp.eq.s32.totalorder %s24, 1
      %p152 = por %p150, %p151
      %p153 = scmp.ne.s32.totalorder %s144, %s145
      %p154 = scmp.eq.s32.totalorder %s24, 0
      %p155 = por %p153, %p154
      %p156 = scmp.ne.s32.totalorder %s144, %s145
      %p157 = scmp.eq.s32.totalorder %s25, 1
      %p158 = por %p156, %p157
      %p160 = scmp.ne.s32.totalorder %s145, %s159
      %p161 = scmp.eq.s32.totalorder %s25, 0
      %p162 = por %p160, %p161
      %s164 = sadd.s32 %s163, 1
      %p167 = scmp.eq.s32.totalorder %s19, 1
      %p168 = scmp.ne.s32.totalorder %s163, %s165
      %p169 = scmp.eq.s32.totalorder %s19, 0
      %p170 = por %p168, %p169
      %p171 = scmp.ne.s32.totalorder %s163, %s165
      %p172 = scmp.eq.s32.totalorder %s24, 1
      %p173 = por %p171, %p172
      %p174 = scmp.ne.s32.totalorder %s165, %s166
      %p175 = scmp.eq.s32.totalorder %s24, 0
      %p176 = por %p174, %p175
      %p177 = scmp.ne.s32.totalorder %s165, %s166
      %p178 = scmp.eq.s32.totalorder %s25, 1
      %p179 = por %p177, %p178
      %p181 = scmp.ne.s32.totalorder %s166, %s180
      %p182 = scmp.eq.s32.totalorder %s25, 0
      %p183 = por %p181, %p182
      %s185 = sadd.s32 %s184, 1
      %p188 = scmp.eq.s32.totalorder %s19, 1
      %p189 = scmp.ne.s32.totalorder %s184, %s186
      %p190 = scmp.eq.s32.totalorder %s19, 0
      %p191 = por %p189, %p190
      %p192 = scmp.ne.s32.totalorder %s184, %s186
      %p193 = scmp.eq.s32.totalorder %s24, 1
      %p194 = por %p192, %p193
      %p195 = scmp.ne.s32.totalorder %s186, %s187
      %p196 = scmp.eq.s32.totalorder %s24, 0
      %p197 = por %p195, %p196
      %p198 = scmp.ne.s32.totalorder %s186, %s187
      %p199 = scmp.eq.s32.totalorder %s25, 1
      %p200 = por %p198, %p199
      %p202 = scmp.ne.s32.totalorder %s187, %s201
      %p203 = scmp.eq.s32.totalorder %s25, 0
      %p204 = por %p202, %p203
      %s206 = sadd.s32 %s205, 1
      %p209 = scmp.eq.s32.totalorder %s19, 1
      %p210 = scmp.ne.s32.totalorder %s205, %s207
      %p211 = scmp.eq.s32.totalorder %s19, 0
      %p212 = por %p210, %p211
      %p213 = scmp.ne.s32.totalorder %s205, %s207
      %p214 = scmp.eq.s32.totalorder %s24, 1
      %p215 = por %p213, %p214
      %p216 = scmp.ne.s32.totalorder %s207, %s208
      %p217 = scmp.eq.s32.totalorder %s24, 0
      %p218 = por %p216, %p217
      %p219 = scmp.ne.s32.totalorder %s207, %s208
      %p220 = scmp.eq.s32.totalorder %s25, 1
      %p221 = por %p219, %p220
      %p223 = scmp.ne.s32.totalorder %s208, %s222
      %p224 = scmp.eq.s32.totalorder %s25, 0
      %p225 = por %p223, %p224
      %s226 = ssub.s32 %s19, %s26
      %p227 = scmp.eq.s32.totalorder %s226, 0
      %s229 = sadd.s32 %s228, 1
      %s230 = scalar_select %p227, %s228, %s229
      %p233 = pneg %p227
      %p234 = scmp.eq.s32.totalorder %s19, 1
      %p235 = por %p233, %p234
      %p236 = scmp.ne.s32.totalorder %s228, %s231
      %p237 = scmp.eq.s32.totalorder %s19, 0
      %p238 = por %p236, %p237
      %p239 = scmp.ne.s32.totalorder %s228, %s231
      %p240 = scmp.eq.s32.totalorder %s24, 1
      %p241 = por %p239, %p240
      %p242 = scmp.ne.s32.totalorder %s231, %s232
      %p243 = scmp.eq.s32.totalorder %s24, 0
      %p244 = por %p242, %p243
      %p245 = scmp.ne.s32.totalorder %s231, %s232
      %p246 = scmp.eq.s32.totalorder %s25, 1
      %p247 = por %p245, %p246
      %p249 = scmp.ne.s32.totalorder %s232, %s248
      %p250 = scmp.eq.s32.totalorder %s25, 0
      %p251 = por %p249, %p250
      %p252 = scmp.le.s32.totalorder 1, %s19
      %p253 = scmp.lt.s32.totalorder %s19, 3
      %p254 = pnand %p252, %p253
      %p255 = pneg %p254
      // Predicated region
      $region9: #{tpu_custom_call.1} parent=5 // pred_check
        _
      $region10: #{tpu_custom_call.1} parent=5 // pred_check_branch
        %257 = sbr.rel (%p254) target = $region12
      $region11: #{tpu_custom_call.1} parent=5 // pred_region
        %s258 = ssub.s32 %s19, 1
        // Predicated region
        $region13: #{tpu_custom_call.1} parent=11 // pred_check
          %p259 = pneg %p92
        $region14: #{tpu_custom_call.1} parent=11 // pred_check_branch
          %261 = sbr.rel (%p259) target = $region16
        $region15: #{tpu_custom_call.1} parent=11 // pred_region
          _
        $region16: #{tpu_custom_call.1} parent=11 // pred_fallthru
          _
        // Predicated region
        $region17: #{tpu_custom_call.1} parent=11 // pred_check
          %p262 = pneg %p113
        $region18: #{tpu_custom_call.1} parent=11 // pred_check_branch
          %264 = sbr.rel (%p262) target = $region20
        $region19: #{tpu_custom_call.1} parent=11 // pred_region
          _
        $region20: #{tpu_custom_call.1} parent=11 // pred_fallthru
          _
        // Predicated region
        $region21: #{tpu_custom_call.1} parent=11 // pred_check
          %p265 = pneg %p134
        $region22: #{tpu_custom_call.1} parent=11 // pred_check_branch
          %267 = sbr.rel (%p265) target = $region24
        $region23: #{tpu_custom_call.1} parent=11 // pred_region
          _
        $region24: #{tpu_custom_call.1} parent=11 // pred_fallthru
          _
        // Predicated region
        $region25: #{tpu_custom_call.1} parent=11 // pred_check
          %p268 = pneg %p155
        $region26: #{tpu_custom_call.1} parent=11 // pred_check_branch
          %270 = sbr.rel (%p268) target = $region28
        $region27: #{tpu_custom_call.1} parent=11 // pred_region
          _
        $region28: #{tpu_custom_call.1} parent=11 // pred_fallthru
          _
        // Predicated region
        $region29: #{tpu_custom_call.1} parent=11 // pred_check
          %p271 = pneg %p176
        $region30: #{tpu_custom_call.1} parent=11 // pred_check_branch
          %273 = sbr.rel (%p271) target = $region32
        $region31: #{tpu_custom_call.1} parent=11 // pred_region
          _
        $region32: #{tpu_custom_call.1} parent=11 // pred_fallthru
          _
        // Predicated region
        $region33: #{tpu_custom_call.1} parent=11 // pred_check
          %p274 = pneg %p197
        $region34: #{tpu_custom_call.1} parent=11 // pred_check_branch
          %276 = sbr.rel (%p274) target = $region36
        $region35: #{tpu_custom_call.1} parent=11 // pred_region
          _
        $region36: #{tpu_custom_call.1} parent=11 // pred_fallthru
          _
        // Predicated region
        $region37: #{tpu_custom_call.1} parent=11 // pred_check
          %p277 = pneg %p218
        $region38: #{tpu_custom_call.1} parent=11 // pred_check_branch
          %279 = sbr.rel (%p277) target = $region40
        $region39: #{tpu_custom_call.1} parent=11 // pred_region
          _
        $region40: #{tpu_custom_call.1} parent=11 // pred_fallthru
          _
      $region12: #{tpu_custom_call.1} parent=5 // pred_fallthru
        _
      %p280 = scmp.lt.s32.totalorder %s19, 2
      // Predicated region
      $region41: #{tpu_custom_call.1} parent=5 // pred_check
        %p281 = pneg %p280
      $region42: #{tpu_custom_call.1} parent=5 // pred_check_branch
        %283 = sbr.rel (%p281) target = $region44
      $region43: #{tpu_custom_call.1} parent=5 // pred_region
        // Predicated region
        $region45: #{tpu_custom_call.1} parent=43 // pred_check
          %p284 = pneg %p39
        $region46: #{tpu_custom_call.1} parent=43 // pred_check_branch
          %286 = sbr.rel (%p284) target = $region48
        $region47: #{tpu_custom_call.1} parent=43 // pred_region
          %s287 = smul.u32 32, %s19
          %p288 = scmp.lt.s32.totalorder %s287, 63
          %s289 = scalar_select %p288, %s287, 63
          %s290 = smul.addr %s289, 4
          %s291 = scalar_lea.vmem %s0, %s290
          %s292 = smul.u32 32, %s19
        $region48: #{tpu_custom_call.1} parent=43 // pred_fallthru
          _
        // Predicated region
        $region49: #{tpu_custom_call.1} parent=43 // pred_check
          %p293 = pneg %p65
        $region50: #{tpu_custom_call.1} parent=43 // pred_check_branch
          %295 = sbr.rel (%p293) target = $region52
        $region51: #{tpu_custom_call.1} parent=43 // pred_region
          %s296 = smul.u32 32, %s19
          %p297 = scmp.lt.s32.totalorder %s296, 63
          %s298 = scalar_select %p297, %s296, 63
          %s299 = smul.addr %s298, 4
          %s300 = scalar_lea.vmem %s1, %s299
          %s301 = smul.u32 32, %s19
        $region52: #{tpu_custom_call.1} parent=43 // pred_fallthru
          _
      $region44: #{tpu_custom_call.1} parent=5 // pred_fallthru
        _
      %p302 = scmp.le.s32.totalorder 1, %s19
      %p303 = scmp.lt.s32.totalorder %s19, 3
      %p304 = pnand %p302, %p303
      %p305 = pneg %p304
      // Predicated region
      $region53: #{tpu_custom_call.1} parent=5 // pred_check
        _
      $region54: #{tpu_custom_call.1} parent=5 // pred_check_branch
        %307 = sbr.rel (%p304) target = $region56
      $region55: #{tpu_custom_call.1} parent=5 // pred_region
        %s308 = ssub.s32 %s19, 1
        %s309 = smul.u32 32, %s24
        %p310 = scmp.lt.s32.totalorder %s309, 63
        %s311 = scalar_select %p310, %s309, 63
        %s312 = smul.addr %s311, 4
        %s313 = scalar_lea.vmem %s0, %s312
        %p314 = pneg %p45
        %p315 = pneg %p42
        %s316 = smul.u32 32, %s24
        %p317 = scmp.lt.s32.totalorder %s316, 63
        %s318 = scalar_select %p317, %s316, 63
        %s319 = smul.addr %s318, 4
        %s320 = scalar_lea.vmem %s1, %s319
        %p321 = pneg %p71
        %p322 = pneg %p68
        %p323 = pneg %p92
        %p324 = pneg %p89
        %p325 = pneg %p113
        %p326 = pneg %p110
        %p327 = pneg %p134
        %p328 = pneg %p131
        %p329 = pneg %p155
        %p330 = pneg %p152
        %p331 = pneg %p176
        %p332 = pneg %p173
        %p333 = pneg %p197
        %p334 = pneg %p194
        %p335 = pneg %p218
        %p336 = pneg %p215
        %p337 = pneg %p244
        %p338 = pneg %p241
        %s339 = sand.u32 %s231, 1
        %s340 = scalar_lea.sflag [#allocation4], %s339
        %s341 = sand.u32 %s231, 1
        %s342 = smul.addr %s341, 2
        %s343 = scalar_lea.vmem [#allocation3], %s342
        %s344 = smul.u32 32, %s24
        %p345 = scmp.lt.s32.totalorder %s344, 63
        %s346 = scalar_select %p345, %s344, 63
        %s347 = smul.addr %s346, 4
        %s348 = scalar_lea.vmem %s0, %s347
        %s349 = smul.u32 32, %s24
        %s350 = smul.u32 32, %s24
        %p351 = scmp.lt.s32.totalorder %s350, 63
        %s352 = scalar_select %p351, %s350, 63
        %s353 = smul.addr %s352, 4
        %s354 = scalar_lea.vmem %s1, %s353
        %s355 = smul.u32 32, %s24
        %s356 = smul.u32 2, %s24
        %v358 = vld [vmem:[%s348] sm:$0xf]
        %v359 = vld [vmem:[%s348 + $0x4] sm:$0xf]
        %v360 = vld [vmem:[%s348 + $0x8] sm:$0xf]
        %v361 = vld [vmem:[%s348 + $0xc] sm:$0xf]
        %v362 = vld [vmem:[%s348 + $0x10] sm:$0xf]
        %v363 = vld [vmem:[%s348 + $0x14] sm:$0xf]
        %v364 = vld [vmem:[%s348 + $0x18] sm:$0xf]
        %v365 = vld [vmem:[%s348 + $0x1c] sm:$0xf]
        %v366 = vld [vmem:[%s348 + $0x20] sm:$0xf]
        %v367 = vld [vmem:[%s348 + $0x24] sm:$0xf]
        %v368 = vld [vmem:[%s348 + $0x28] sm:$0xf]
        %v369 = vld [vmem:[%s348 + $0x2c] sm:$0xf]
        %v370 = vld [vmem:[%s348 + $0x30] sm:$0xf]
        %v371 = vld [vmem:[%s348 + $0x34] sm:$0xf]
        %v372 = vld [vmem:[%s348 + $0x38] sm:$0xf]
        %v373 = vld [vmem:[%s348 + $0x3c] sm:$0xf]
        %v374 = vld [vmem:[%s348 + $0x40] sm:$0xf]
        %v375 = vld [vmem:[%s348 + $0x44] sm:$0xf]
        %v376 = vld [vmem:[%s348 + $0x48] sm:$0xf]
        %v377 = vld [vmem:[%s348 + $0x4c] sm:$0xf]
        %v378 = vld [vmem:[%s348 + $0x50] sm:$0xf]
        %v379 = vld [vmem:[%s348 + $0x54] sm:$0xf]
        %v380 = vld [vmem:[%s348 + $0x58] sm:$0xf]
        %v381 = vld [vmem:[%s348 + $0x5c] sm:$0xf]
        %v382 = vld [vmem:[%s348 + $0x60] sm:$0xf]
        %v383 = vld [vmem:[%s348 + $0x64] sm:$0xf]
        %v384 = vld [vmem:[%s348 + $0x68] sm:$0xf]
        %v385 = vld [vmem:[%s348 + $0x6c] sm:$0xf]
        %v386 = vld [vmem:[%s348 + $0x70] sm:$0xf]
        %v387 = vld [vmem:[%s348 + $0x74] sm:$0xf]
        %v388 = vld [vmem:[%s348 + $0x78] sm:$0xf]
        %v389 = vld [vmem:[%s348 + $0x7c] sm:$0xf]
        %v390 = vld [vmem:[%s2] sm:$0xff]
        %v391 = vld [vmem:[%s2 + $0x8] sm:$0xff]
        %v392 = vld [vmem:[%s2 + $0x10] sm:$0xff]
        %v393 = vld [vmem:[%s2 + $0x18] sm:$0xff]
        %v394 = vld [vmem:[%s2 + $0x20] sm:$0xff]
        %v395 = vld [vmem:[%s2 + $0x28] sm:$0xff]
        %v396 = vld [vmem:[%s2 + $0x30] sm:$0xff]
        %v397 = vld [vmem:[%s2 + $0x38] sm:$0xff]
        %v398 = vld [vmem:[%s354] sm:$0xf]
        %v399 = vld [vmem:[%s354 + $0x4] sm:$0xf]
        %v400 = vld [vmem:[%s354 + $0x8] sm:$0xf]
        %v401 = vld [vmem:[%s354 + $0xc] sm:$0xf]
        %v402 = vld [vmem:[%s354 + $0x10] sm:$0xf]
        %v403 = vld [vmem:[%s354 + $0x14] sm:$0xf]
        %v404 = vld [vmem:[%s354 + $0x18] sm:$0xf]
        %v405 = vld [vmem:[%s354 + $0x1c] sm:$0xf]
        %v406 = vld [vmem:[%s354 + $0x20] sm:$0xf]
        %v407 = vld [vmem:[%s354 + $0x24] sm:$0xf]
        %v408 = vld [vmem:[%s354 + $0x28] sm:$0xf]
        %v409 = vld [vmem:[%s354 + $0x2c] sm:$0xf]
        %v410 = vld [vmem:[%s354 + $0x30] sm:$0xf]
        %v411 = vld [vmem:[%s354 + $0x34] sm:$0xf]
        %v412 = vld [vmem:[%s354 + $0x38] sm:$0xf]
        %v413 = vld [vmem:[%s354 + $0x3c] sm:$0xf]
        %v414 = vld [vmem:[%s354 + $0x40] sm:$0xf]
        %v415 = vld [vmem:[%s354 + $0x44] sm:$0xf]
        %v416 = vld [vmem:[%s354 + $0x48] sm:$0xf]
        %v417 = vld [vmem:[%s354 + $0x4c] sm:$0xf]
        %v418 = vld [vmem:[%s354 + $0x50] sm:$0xf]
        %v419 = vld [vmem:[%s354 + $0x54] sm:$0xf]
        %v420 = vld [vmem:[%s354 + $0x58] sm:$0xf]
        %v421 = vld [vmem:[%s354 + $0x5c] sm:$0xf]
        %v422 = vld [vmem:[%s354 + $0x60] sm:$0xf]
        %v423 = vld [vmem:[%s354 + $0x64] sm:$0xf]
        %v424 = vld [vmem:[%s354 + $0x68] sm:$0xf]
        %v425 = vld [vmem:[%s354 + $0x6c] sm:$0xf]
        %v426 = vld [vmem:[%s354 + $0x70] sm:$0xf]
        %v427 = vld [vmem:[%s354 + $0x74] sm:$0xf]
        %v428 = vld [vmem:[%s354 + $0x78] sm:$0xf]
        %v429 = vld [vmem:[%s354 + $0x7c] sm:$0xf]
        %v430 = vld [vmem:[%s3] sm:$0xff]
        %v431 = vld [vmem:[%s3 + $0x8] sm:$0xff]
        %v432 = vld [vmem:[%s3 + $0x10] sm:$0xff]
        %v433 = vld [vmem:[%s3 + $0x18] sm:$0xff]
        %v434 = vld [vmem:[%s3 + $0x20] sm:$0xff]
        %v435 = vld [vmem:[%s3 + $0x28] sm:$0xff]
        %v436 = vld [vmem:[%s3 + $0x30] sm:$0xff]
        %v437 = vld [vmem:[%s3 + $0x38] sm:$0xff]
        %v470 = vunpack.c.l.b16 %v398
        %v471 = vunpack.c.l.b16 %v399
        %v472 = vunpack.c.l.b16 %v400
        %v473 = vunpack.c.l.b16 %v401
        %v474 = vunpack.c.l.b16 %v402
        %v475 = vunpack.c.l.b16 %v403
        %v476 = vunpack.c.l.b16 %v404
        %v477 = vunpack.c.l.b16 %v405
        %v478 = vunpack.c.l.b16 %v406
        %v479 = vunpack.c.l.b16 %v407
        %v480 = vunpack.c.l.b16 %v408
        %v481 = vunpack.c.l.b16 %v409
        %v482 = vunpack.c.l.b16 %v410
        %v483 = vunpack.c.l.b16 %v411
        %v484 = vunpack.c.l.b16 %v412
        %v485 = vunpack.c.l.b16 %v413
        %v486 = vunpack.c.l.b16 %v414
        %v487 = vunpack.c.l.b16 %v415
        %v488 = vunpack.c.l.b16 %v416
        %v489 = vunpack.c.l.b16 %v417
        %v490 = vunpack.c.l.b16 %v418
        %v491 = vunpack.c.l.b16 %v419
        %v492 = vunpack.c.l.b16 %v420
        %v493 = vunpack.c.l.b16 %v421
        %v494 = vunpack.c.l.b16 %v422
        %v495 = vunpack.c.l.b16 %v423
        %v496 = vunpack.c.l.b16 %v424
        %v497 = vunpack.c.l.b16 %v425
        %v498 = vunpack.c.l.b16 %v426
        %v499 = vunpack.c.l.b16 %v427
        %v500 = vunpack.c.l.b16 %v428
        %v501 = vunpack.c.l.b16 %v429
        %v502 = vpack.c.b16 %v471, %v470
        %v503 = vpack.c.b16 %v473, %v472
        %v504 = vpack.c.b16 %v475, %v474
        %v505 = vpack.c.b16 %v477, %v476
        %v506 = vpack.c.b16 %v479, %v478
        %v507 = vpack.c.b16 %v481, %v480
        %v508 = vpack.c.b16 %v483, %v482
        %v509 = vpack.c.b16 %v485, %v484
        %v510 = vpack.c.b16 %v487, %v486
        %v511 = vpack.c.b16 %v489, %v488
        %v512 = vpack.c.b16 %v491, %v490
        %v513 = vpack.c.b16 %v493, %v492
        %v514 = vpack.c.b16 %v495, %v494
        %v515 = vpack.c.b16 %v497, %v496
        %v516 = vpack.c.b16 %v499, %v498
        %v517 = vpack.c.b16 %v501, %v500
        %v526 = vunpack.c.l.b16 %v430
        %v527 = vunpack.c.h.b16 %v430
        %v528 = vunpack.c.l.b16 %v431
        %v529 = vunpack.c.h.b16 %v431
        %v530 = vunpack.c.l.b16 %v432
        %v531 = vunpack.c.h.b16 %v432
        %v532 = vunpack.c.l.b16 %v433
        %v533 = vunpack.c.h.b16 %v433
        %v534 = vunpack.c.l.b16 %v434
        %v535 = vunpack.c.h.b16 %v434
        %v536 = vunpack.c.l.b16 %v435
        %v537 = vunpack.c.h.b16 %v435
        %v538 = vunpack.c.l.b16 %v436
        %v539 = vunpack.c.h.b16 %v436
        %v540 = vunpack.c.l.b16 %v437
        %v541 = vunpack.c.h.b16 %v437
        %v542 = vpack.c.b16 %v530, %v526
        %v543 = vpack.c.b16 %v531, %v527
        %v544 = vpack.c.b16 %v532, %v528
        %v545 = vpack.c.b16 %v533, %v529
        %v546 = vpack.c.b16 %v538, %v534
        %v547 = vpack.c.b16 %v539, %v535
        %v548 = vpack.c.b16 %v540, %v536
        %v549 = vpack.c.b16 %v541, %v537
        %vm558 = vcmask 261120
        %v560 = vsel %vm558, %v502, 0
        %v563 = vsel %vm558, %v503, 0
        %v566 = vsel %vm558, %v504, 0
        %v569 = vsel %vm558, %v505, 0
        %v572 = vsel %vm558, %v506, 0
        %v575 = vsel %vm558, %v507, 0
        %v578 = vsel %vm558, %v508, 0
        %v581 = vsel %vm558, %v509, 0
        %v584 = vsel %vm558, %v510, 0
        %v587 = vsel %vm558, %v511, 0
        %v590 = vsel %vm558, %v512, 0
        %v593 = vsel %vm558, %v513, 0
        %v596 = vsel %vm558, %v514, 0
        %v599 = vsel %vm558, %v515, 0
        %v602 = vsel %vm558, %v516, 0
        %v605 = vsel %vm558, %v517, 0
        %607 = vmatpush.bf16.msra.mxu0 0
        %608 = vmatpush.bf16.msra.mxu0 0
        %609 = vmatpush.bf16.msra.mxu0 0
        %610 = vmatpush.bf16.msra.mxu0 0
        %611 = vmatpush.bf16.msra.mxu0 0
        %612 = vmatpush.bf16.msra.mxu0 0
        %613 = vmatpush.bf16.msra.mxu0 %v546
        %614 = vmatpush.bf16.msra.mxu0 %v542
        %615 = vmatmul.bf16.gmra.mxu0 %v560
        %v616 = vpop.f32.mrf.mxu0
        %v617 = vadd.f32 0.0, %v616
        %v618 = vpop.f32.mrf.mxu0
        %v619 = vadd.f32 0.0, %v618
        %620 = vmatmul.bf16.gmra.mxu0 %v563
        %v621 = vpop.f32.mrf.mxu0
        %v622 = vadd.f32 0.0, %v621
        %v623 = vpop.f32.mrf.mxu0
        %v624 = vadd.f32 0.0, %v623
        %625 = vmatmul.bf16.gmra.mxu0 %v566
        %v626 = vpop.f32.mrf.mxu0
        %v627 = vadd.f32 0.0, %v626
        %v628 = vpop.f32.mrf.mxu0
        %v629 = vadd.f32 0.0, %v628
        %630 = vmatmul.bf16.gmra.mxu0 %v569
        %v631 = vpop.f32.mrf.mxu0
        %v632 = vadd.f32 0.0, %v631
        %v633 = vpop.f32.mrf.mxu0
        %v634 = vadd.f32 0.0, %v633
        %635 = vmatmul.bf16.gmra.mxu0 %v572
        %v636 = vpop.f32.mrf.mxu0
        %v637 = vadd.f32 0.0, %v636
        %v638 = vpop.f32.mrf.mxu0
        %v639 = vadd.f32 0.0, %v638
        %640 = vmatmul.bf16.gmra.mxu0 %v575
        %v641 = vpop.f32.mrf.mxu0
        %v642 = vadd.f32 0.0, %v641
        %v643 = vpop.f32.mrf.mxu0
        %v644 = vadd.f32 0.0, %v643
        %645 = vmatmul.bf16.gmra.mxu0 %v578
        %v646 = vpop.f32.mrf.mxu0
        %v647 = vadd.f32 0.0, %v646
        %v648 = vpop.f32.mrf.mxu0
        %v649 = vadd.f32 0.0, %v648
        %650 = vmatmul.bf16.gmra.mxu0 %v581
        %v651 = vpop.f32.mrf.mxu0
        %v652 = vadd.f32 0.0, %v651
        %v653 = vpop.f32.mrf.mxu0
        %v654 = vadd.f32 0.0, %v653
        %655 = vmatmul.bf16.gmra.mxu0 %v584
        %v656 = vpop.f32.mrf.mxu0
        %v657 = vadd.f32 0.0, %v656
        %v658 = vpop.f32.mrf.mxu0
        %v659 = vadd.f32 0.0, %v658
        %660 = vmatmul.bf16.gmra.mxu0 %v587
        %v661 = vpop.f32.mrf.mxu0
        %v662 = vadd.f32 0.0, %v661
        %v663 = vpop.f32.mrf.mxu0
        %v664 = vadd.f32 0.0, %v663
        %665 = vmatmul.bf16.gmra.mxu0 %v590
        %v666 = vpop.f32.mrf.mxu0
        %v667 = vadd.f32 0.0, %v666
        %v668 = vpop.f32.mrf.mxu0
        %v669 = vadd.f32 0.0, %v668
        %670 = vmatmul.bf16.gmra.mxu0 %v593
        %v671 = vpop.f32.mrf.mxu0
        %v672 = vadd.f32 0.0, %v671
        %v673 = vpop.f32.mrf.mxu0
        %v674 = vadd.f32 0.0, %v673
        %675 = vmatmul.bf16.gmra.mxu0 %v596
        %v676 = vpop.f32.mrf.mxu0
        %v677 = vadd.f32 0.0, %v676
        %v678 = vpop.f32.mrf.mxu0
        %v679 = vadd.f32 0.0, %v678
        %680 = vmatmul.bf16.gmra.mxu0 %v599
        %v681 = vpop.f32.mrf.mxu0
        %v682 = vadd.f32 0.0, %v681
        %v683 = vpop.f32.mrf.mxu0
        %v684 = vadd.f32 0.0, %v683
        %685 = vmatmul.bf16.gmra.mxu0 %v602
        %v686 = vpop.f32.mrf.mxu0
        %v687 = vadd.f32 0.0, %v686
        %v688 = vpop.f32.mrf.mxu0
        %v689 = vadd.f32 0.0, %v688
        %690 = vmatmul.bf16.gmra.mxu0 %v605
        %v691 = vpop.f32.mrf.mxu0
        %v692 = vadd.f32 0.0, %v691
        %v693 = vpop.f32.mrf.mxu0
        %v694 = vadd.f32 0.0, %v693
        %695 = vdwg.mxu0
        %696 = vmatpush.bf16.msra.mxu0 0
        %697 = vmatpush.bf16.msra.mxu0 0
        %698 = vmatpush.bf16.msra.mxu0 0
        %699 = vmatpush.bf16.msra.mxu0 0
        %700 = vmatpush.bf16.msra.mxu0 0
        %701 = vmatpush.bf16.msra.mxu0 0
        %702 = vmatpush.bf16.msra.mxu0 %v547
        %703 = vmatpush.bf16.msra.mxu0 %v543
        %704 = vmatmul.bf16.gmra.mxu0 %v560
        %v705 = vpop.f32.mrf.mxu0
        %v706 = vadd.f32 0.0, %v705
        %v707 = vpop.f32.mrf.mxu0
        %v708 = vadd.f32 0.0, %v707
        %709 = vmatmul.bf16.gmra.mxu0 %v563
        %v710 = vpop.f32.mrf.mxu0
        %v711 = vadd.f32 0.0, %v710
        %v712 = vpop.f32.mrf.mxu0
        %v713 = vadd.f32 0.0, %v712
        %714 = vmatmul.bf16.gmra.mxu0 %v566
        %v715 = vpop.f32.mrf.mxu0
        %v716 = vadd.f32 0.0, %v715
        %v717 = vpop.f32.mrf.mxu0
        %v718 = vadd.f32 0.0, %v717
        %719 = vmatmul.bf16.gmra.mxu0 %v569
        %v720 = vpop.f32.mrf.mxu0
        %v721 = vadd.f32 0.0, %v720
        %v722 = vpop.f32.mrf.mxu0
        %v723 = vadd.f32 0.0, %v722
        %724 = vmatmul.bf16.gmra.mxu0 %v572
        %v725 = vpop.f32.mrf.mxu0
        %v726 = vadd.f32 0.0, %v725
        %v727 = vpop.f32.mrf.mxu0
        %v728 = vadd.f32 0.0, %v727
        %729 = vmatmul.bf16.gmra.mxu0 %v575
        %v730 = vpop.f32.mrf.mxu0
        %v731 = vadd.f32 0.0, %v730
        %v732 = vpop.f32.mrf.mxu0
        %v733 = vadd.f32 0.0, %v732
        %734 = vmatmul.bf16.gmra.mxu0 %v578
        %v735 = vpop.f32.mrf.mxu0
        %v736 = vadd.f32 0.0, %v735
        %v737 = vpop.f32.mrf.mxu0
        %v738 = vadd.f32 0.0, %v737
        %739 = vmatmul.bf16.gmra.mxu0 %v581
        %v740 = vpop.f32.mrf.mxu0
        %v741 = vadd.f32 0.0, %v740
        %v742 = vpop.f32.mrf.mxu0
        %v743 = vadd.f32 0.0, %v742
        %744 = vmatmul.bf16.gmra.mxu0 %v584
        %v745 = vpop.f32.mrf.mxu0
        %v746 = vadd.f32 0.0, %v745
        %v747 = vpop.f32.mrf.mxu0
        %v748 = vadd.f32 0.0, %v747
        %749 = vmatmul.bf16.gmra.mxu0 %v587
        %v750 = vpop.f32.mrf.mxu0
        %v751 = vadd.f32 0.0, %v750
        %v752 = vpop.f32.mrf.mxu0
        %v753 = vadd.f32 0.0, %v752
        %754 = vmatmul.bf16.gmra.mxu0 %v590
        %v755 = vpop.f32.mrf.mxu0
        %v756 = vadd.f32 0.0, %v755
        %v757 = vpop.f32.mrf.mxu0
        %v758 = vadd.f32 0.0, %v757
        %759 = vmatmul.bf16.gmra.mxu0 %v593
        %v760 = vpop.f32.mrf.mxu0
        %v761 = vadd.f32 0.0, %v760
        %v762 = vpop.f32.mrf.mxu0
        %v763 = vadd.f32 0.0, %v762
        %764 = vmatmul.bf16.gmra.mxu0 %v596
        %v765 = vpop.f32.mrf.mxu0
        %v766 = vadd.f32 0.0, %v765
        %v767 = vpop.f32.mrf.mxu0
        %v768 = vadd.f32 0.0, %v767
        %769 = vmatmul.bf16.gmra.mxu0 %v599
        %v770 = vpop.f32.mrf.mxu0
        %v771 = vadd.f32 0.0, %v770
        %v772 = vpop.f32.mrf.mxu0
        %v773 = vadd.f32 0.0, %v772
        %774 = vmatmul.bf16.gmra.mxu0 %v602
        %v775 = vpop.f32.mrf.mxu0
        %v776 = vadd.f32 0.0, %v775
        %v777 = vpop.f32.mrf.mxu0
        %v778 = vadd.f32 0.0, %v777
        %779 = vmatmul.bf16.gmra.mxu0 %v605
        %v780 = vpop.f32.mrf.mxu0
        %v781 = vadd.f32 0.0, %v780
        %v782 = vpop.f32.mrf.mxu0
        %v783 = vadd.f32 0.0, %v782
        %784 = vdwg.mxu0
        %785 = vmatpush.bf16.msra.mxu0 0
        %786 = vmatpush.bf16.msra.mxu0 0
        %787 = vmatpush.bf16.msra.mxu0 0
        %788 = vmatpush.bf16.msra.mxu0 0
        %789 = vmatpush.bf16.msra.mxu0 0
        %790 = vmatpush.bf16.msra.mxu0 0
        %791 = vmatpush.bf16.msra.mxu0 %v548
        %792 = vmatpush.bf16.msra.mxu0 %v544
        %793 = vmatmul.bf16.gmra.mxu0 %v560
        %v794 = vpop.f32.mrf.mxu0
        %v795 = vadd.f32 0.0, %v794
        %v796 = vpop.f32.mrf.mxu0
        %v797 = vadd.f32 0.0, %v796
        %798 = vmatmul.bf16.gmra.mxu0 %v563
        %v799 = vpop.f32.mrf.mxu0
        %v800 = vadd.f32 0.0, %v799
        %v801 = vpop.f32.mrf.mxu0
        %v802 = vadd.f32 0.0, %v801
        %803 = vmatmul.bf16.gmra.mxu0 %v566
        %v804 = vpop.f32.mrf.mxu0
        %v805 = vadd.f32 0.0, %v804
        %v806 = vpop.f32.mrf.mxu0
        %v807 = vadd.f32 0.0, %v806
        %808 = vmatmul.bf16.gmra.mxu0 %v569
        %v809 = vpop.f32.mrf.mxu0
        %v810 = vadd.f32 0.0, %v809
        %v811 = vpop.f32.mrf.mxu0
        %v812 = vadd.f32 0.0, %v811
        %813 = vmatmul.bf16.gmra.mxu0 %v572
        %v814 = vpop.f32.mrf.mxu0
        %v815 = vadd.f32 0.0, %v814
        %v816 = vpop.f32.mrf.mxu0
        %v817 = vadd.f32 0.0, %v816
        %818 = vmatmul.bf16.gmra.mxu0 %v575
        %v819 = vpop.f32.mrf.mxu0
        %v820 = vadd.f32 0.0, %v819
        %v821 = vpop.f32.mrf.mxu0
        %v822 = vadd.f32 0.0, %v821
        %823 = vmatmul.bf16.gmra.mxu0 %v578
        %v824 = vpop.f32.mrf.mxu0
        %v825 = vadd.f32 0.0, %v824
        %v826 = vpop.f32.mrf.mxu0
        %v827 = vadd.f32 0.0, %v826
        %828 = vmatmul.bf16.gmra.mxu0 %v581
        %v829 = vpop.f32.mrf.mxu0
        %v830 = vadd.f32 0.0, %v829
        %v831 = vpop.f32.mrf.mxu0
        %v832 = vadd.f32 0.0, %v831
        %833 = vmatmul.bf16.gmra.mxu0 %v584
        %v834 = vpop.f32.mrf.mxu0
        %v835 = vadd.f32 0.0, %v834
        %v836 = vpop.f32.mrf.mxu0
        %v837 = vadd.f32 0.0, %v836
        %838 = vmatmul.bf16.gmra.mxu0 %v587
        %v839 = vpop.f32.mrf.mxu0
        %v840 = vadd.f32 0.0, %v839
        %v841 = vpop.f32.mrf.mxu0
        %v842 = vadd.f32 0.0, %v841
        %843 = vmatmul.bf16.gmra.mxu0 %v590
        %v844 = vpop.f32.mrf.mxu0
        %v845 = vadd.f32 0.0, %v844
        %v846 = vpop.f32.mrf.mxu0
        %v847 = vadd.f32 0.0, %v846
        %848 = vmatmul.bf16.gmra.mxu0 %v593
        %v849 = vpop.f32.mrf.mxu0
        %v850 = vadd.f32 0.0, %v849
        %v851 = vpop.f32.mrf.mxu0
        %v852 = vadd.f32 0.0, %v851
        %853 = vmatmul.bf16.gmra.mxu0 %v596
        %v854 = vpop.f32.mrf.mxu0
        %v855 = vadd.f32 0.0, %v854
        %v856 = vpop.f32.mrf.mxu0
        %v857 = vadd.f32 0.0, %v856
        %858 = vmatmul.bf16.gmra.mxu0 %v599
        %v859 = vpop.f32.mrf.mxu0
        %v860 = vadd.f32 0.0, %v859
        %v861 = vpop.f32.mrf.mxu0
        %v862 = vadd.f32 0.0, %v861
        %863 = vmatmul.bf16.gmra.mxu0 %v602
        %v864 = vpop.f32.mrf.mxu0
        %v865 = vadd.f32 0.0, %v864
        %v866 = vpop.f32.mrf.mxu0
        %v867 = vadd.f32 0.0, %v866
        %868 = vmatmul.bf16.gmra.mxu0 %v605
        %v869 = vpop.f32.mrf.mxu0
        %v870 = vadd.f32 0.0, %v869
        %v871 = vpop.f32.mrf.mxu0
        %v872 = vadd.f32 0.0, %v871
        %873 = vdwg.mxu0
        %874 = vmatpush.bf16.msra.mxu0 0
        %875 = vmatpush.bf16.msra.mxu0 0
        %876 = vmatpush.bf16.msra.mxu0 0
        %877 = vmatpush.bf16.msra.mxu0 0
        %878 = vmatpush.bf16.msra.mxu0 0
        %879 = vmatpush.bf16.msra.mxu0 0
        %880 = vmatpush.bf16.msra.mxu0 %v549
        %881 = vmatpush.bf16.msra.mxu0 %v545
        %882 = vmatmul.bf16.gmra.mxu0 %v560
        %v883 = vpop.f32.mrf.mxu0
        %v884 = vadd.f32 0.0, %v883
        %v885 = vpop.f32.mrf.mxu0
        %v886 = vadd.f32 0.0, %v885
        %887 = vmatmul.bf16.gmra.mxu0 %v563
        %v888 = vpop.f32.mrf.mxu0
        %v889 = vadd.f32 0.0, %v888
        %v890 = vpop.f32.mrf.mxu0
        %v891 = vadd.f32 0.0, %v890
        %892 = vmatmul.bf16.gmra.mxu0 %v566
        %v893 = vpop.f32.mrf.mxu0
        %v894 = vadd.f32 0.0, %v893
        %v895 = vpop.f32.mrf.mxu0
        %v896 = vadd.f32 0.0, %v895
        %897 = vmatmul.bf16.gmra.mxu0 %v569
        %v898 = vpop.f32.mrf.mxu0
        %v899 = vadd.f32 0.0, %v898
        %v900 = vpop.f32.mrf.mxu0
        %v901 = vadd.f32 0.0, %v900
        %902 = vmatmul.bf16.gmra.mxu0 %v572
        %v903 = vpop.f32.mrf.mxu0
        %v904 = vadd.f32 0.0, %v903
        %v905 = vpop.f32.mrf.mxu0
        %v906 = vadd.f32 0.0, %v905
        %907 = vmatmul.bf16.gmra.mxu0 %v575
        %v908 = vpop.f32.mrf.mxu0
        %v909 = vadd.f32 0.0, %v908
        %v910 = vpop.f32.mrf.mxu0
        %v911 = vadd.f32 0.0, %v910
        %912 = vmatmul.bf16.gmra.mxu0 %v578
        %v913 = vpop.f32.mrf.mxu0
        %v914 = vadd.f32 0.0, %v913
        %v915 = vpop.f32.mrf.mxu0
        %v916 = vadd.f32 0.0, %v915
        %917 = vmatmul.bf16.gmra.mxu0 %v581
        %v918 = vpop.f32.mrf.mxu0
        %v919 = vadd.f32 0.0, %v918
        %v920 = vpop.f32.mrf.mxu0
        %v921 = vadd.f32 0.0, %v920
        %922 = vmatmul.bf16.gmra.mxu0 %v584
        %v923 = vpop.f32.mrf.mxu0
        %v924 = vadd.f32 0.0, %v923
        %v925 = vpop.f32.mrf.mxu0
        %v926 = vadd.f32 0.0, %v925
        %927 = vmatmul.bf16.gmra.mxu0 %v587
        %v928 = vpop.f32.mrf.mxu0
        %v929 = vadd.f32 0.0, %v928
        %v930 = vpop.f32.mrf.mxu0
        %v931 = vadd.f32 0.0, %v930
        %932 = vmatmul.bf16.gmra.mxu0 %v590
        %v933 = vpop.f32.mrf.mxu0
        %v934 = vadd.f32 0.0, %v933
        %v935 = vpop.f32.mrf.mxu0
        %v936 = vadd.f32 0.0, %v935
        %937 = vmatmul.bf16.gmra.mxu0 %v593
        %v938 = vpop.f32.mrf.mxu0
        %v939 = vadd.f32 0.0, %v938
        %v940 = vpop.f32.mrf.mxu0
        %v941 = vadd.f32 0.0, %v940
        %942 = vmatmul.bf16.gmra.mxu0 %v596
        %v943 = vpop.f32.mrf.mxu0
        %v944 = vadd.f32 0.0, %v943
        %v945 = vpop.f32.mrf.mxu0
        %v946 = vadd.f32 0.0, %v945
        %947 = vmatmul.bf16.gmra.mxu0 %v599
        %v948 = vpop.f32.mrf.mxu0
        %v949 = vadd.f32 0.0, %v948
        %v950 = vpop.f32.mrf.mxu0
        %v951 = vadd.f32 0.0, %v950
        %952 = vmatmul.bf16.gmra.mxu0 %v602
        %v953 = vpop.f32.mrf.mxu0
        %v954 = vadd.f32 0.0, %v953
        %v955 = vpop.f32.mrf.mxu0
        %v956 = vadd.f32 0.0, %v955
        %957 = vmatmul.bf16.gmra.mxu0 %v605
        %v958 = vpop.f32.mrf.mxu0
        %v959 = vadd.f32 0.0, %v958
        %v960 = vpop.f32.mrf.mxu0
        %v961 = vadd.f32 0.0, %v960
        %962 = vdwg.mxu0
        %v995 = vunpack.c.l.b16 %v358
        %v996 = vunpack.c.l.b16 %v359
        %v997 = vunpack.c.l.b16 %v360
        %v998 = vunpack.c.l.b16 %v361
        %v999 = vunpack.c.l.b16 %v362
        %v1000 = vunpack.c.l.b16 %v363
        %v1001 = vunpack.c.l.b16 %v364
        %v1002 = vunpack.c.l.b16 %v365
        %v1003 = vunpack.c.l.b16 %v366
        %v1004 = vunpack.c.l.b16 %v367
        %v1005 = vunpack.c.l.b16 %v368
        %v1006 = vunpack.c.l.b16 %v369
        %v1007 = vunpack.c.l.b16 %v370
        %v1008 = vunpack.c.l.b16 %v371
        %v1009 = vunpack.c.l.b16 %v372
        %v1010 = vunpack.c.l.b16 %v373
        %v1011 = vunpack.c.l.b16 %v374
        %v1012 = vunpack.c.l.b16 %v375
        %v1013 = vunpack.c.l.b16 %v376
        %v1014 = vunpack.c.l.b16 %v377
        %v1015 = vunpack.c.l.b16 %v378
        %v1016 = vunpack.c.l.b16 %v379
        %v1017 = vunpack.c.l.b16 %v380
        %v1018 = vunpack.c.l.b16 %v381
        %v1019 = vunpack.c.l.b16 %v382
        %v1020 = vunpack.c.l.b16 %v383
        %v1021 = vunpack.c.l.b16 %v384
        %v1022 = vunpack.c.l.b16 %v385
        %v1023 = vunpack.c.l.b16 %v386
        %v1024 = vunpack.c.l.b16 %v387
        %v1025 = vunpack.c.l.b16 %v388
        %v1026 = vunpack.c.l.b16 %v389
        %v1027 = vpack.c.b16 %v996, %v995
        %v1028 = vpack.c.b16 %v998, %v997
        %v1029 = vpack.c.b16 %v1000, %v999
        %v1030 = vpack.c.b16 %v1002, %v1001
        %v1031 = vpack.c.b16 %v1004, %v1003
        %v1032 = vpack.c.b16 %v1006, %v1005
        %v1033 = vpack.c.b16 %v1008, %v1007
        %v1034 = vpack.c.b16 %v1010, %v1009
        %v1035 = vpack.c.b16 %v1012, %v1011
        %v1036 = vpack.c.b16 %v1014, %v1013
        %v1037 = vpack.c.b16 %v1016, %v1015
        %v1038 = vpack.c.b16 %v1018, %v1017
        %v1039 = vpack.c.b16 %v1020, %v1019
        %v1040 = vpack.c.b16 %v1022, %v1021
        %v1041 = vpack.c.b16 %v1024, %v1023
        %v1042 = vpack.c.b16 %v1026, %v1025
        %v1051 = vunpack.c.l.b16 %v390
        %v1052 = vunpack.c.h.b16 %v390
        %v1053 = vunpack.c.l.b16 %v391
        %v1054 = vunpack.c.h.b16 %v391
        %v1055 = vunpack.c.l.b16 %v392
        %v1056 = vunpack.c.h.b16 %v392
        %v1057 = vunpack.c.l.b16 %v393
        %v1058 = vunpack.c.h.b16 %v393
        %v1059 = vunpack.c.l.b16 %v394
        %v1060 = vunpack.c.h.b16 %v394
        %v1061 = vunpack.c.l.b16 %v395
        %v1062 = vunpack.c.h.b16 %v395
        %v1063 = vunpack.c.l.b16 %v396
        %v1064 = vunpack.c.h.b16 %v396
        %v1065 = vunpack.c.l.b16 %v397
        %v1066 = vunpack.c.h.b16 %v397
        %v1067 = vpack.c.b16 %v1055, %v1051
        %v1068 = vpack.c.b16 %v1056, %v1052
        %v1069 = vpack.c.b16 %v1057, %v1053
        %v1070 = vpack.c.b16 %v1058, %v1054
        %v1071 = vpack.c.b16 %v1063, %v1059
        %v1072 = vpack.c.b16 %v1064, %v1060
        %v1073 = vpack.c.b16 %v1065, %v1061
        %v1074 = vpack.c.b16 %v1066, %v1062
        %v1084 = vsel %vm558, %v1027, 0
        %v1087 = vsel %vm558, %v1028, 0
        %v1090 = vsel %vm558, %v1029, 0
        %v1093 = vsel %vm558, %v1030, 0
        %v1096 = vsel %vm558, %v1031, 0
        %v1099 = vsel %vm558, %v1032, 0
        %v1102 = vsel %vm558, %v1033, 0
        %v1105 = vsel %vm558, %v1034, 0
        %v1108 = vsel %vm558, %v1035, 0
        %v1111 = vsel %vm558, %v1036, 0
        %v1114 = vsel %vm558, %v1037, 0
        %v1117 = vsel %vm558, %v1038, 0
        %v1120 = vsel %vm558, %v1039, 0
        %v1123 = vsel %vm558, %v1040, 0
        %v1126 = vsel %vm558, %v1041, 0
        %v1129 = vsel %vm558, %v1042, 0
        %1131 = vmatpush.bf16.msra.mxu0 0
        %1132 = vmatpush.bf16.msra.mxu0 0
        %1133 = vmatpush.bf16.msra.mxu0 0
        %1134 = vmatpush.bf16.msra.mxu0 0
        %1135 = vmatpush.bf16.msra.mxu0 0
        %1136 = vmatpush.bf16.msra.mxu0 0
        %1137 = vmatpush.bf16.msra.mxu0 %v1071
        %1138 = vmatpush.bf16.msra.mxu0 %v1067
        %1139 = vmatmul.bf16.gmra.mxu0 %v1084
        %v1140 = vpop.f32.mrf.mxu0
        %v1141 = vadd.f32 %v617, %v1140
        %v1142 = vpop.f32.mrf.mxu0
        %v1143 = vadd.f32 %v619, %v1142
        %1144 = vmatmul.bf16.gmra.mxu0 %v1087
        %v1145 = vpop.f32.mrf.mxu0
        %v1146 = vadd.f32 %v622, %v1145
        %v1147 = vpop.f32.mrf.mxu0
        %v1148 = vadd.f32 %v624, %v1147
        %1149 = vmatmul.bf16.gmra.mxu0 %v1090
        %v1150 = vpop.f32.mrf.mxu0
        %v1151 = vadd.f32 %v627, %v1150
        %v1152 = vpop.f32.mrf.mxu0
        %v1153 = vadd.f32 %v629, %v1152
        %1154 = vmatmul.bf16.gmra.mxu0 %v1093
        %v1155 = vpop.f32.mrf.mxu0
        %v1156 = vadd.f32 %v632, %v1155
        %v1157 = vpop.f32.mrf.mxu0
        %v1158 = vadd.f32 %v634, %v1157
        %1159 = vmatmul.bf16.gmra.mxu0 %v1096
        %v1160 = vpop.f32.mrf.mxu0
        %v1161 = vadd.f32 %v637, %v1160
        %v1162 = vpop.f32.mrf.mxu0
        %v1163 = vadd.f32 %v639, %v1162
        %1164 = vmatmul.bf16.gmra.mxu0 %v1099
        %v1165 = vpop.f32.mrf.mxu0
        %v1166 = vadd.f32 %v642, %v1165
        %v1167 = vpop.f32.mrf.mxu0
        %v1168 = vadd.f32 %v644, %v1167
        %1169 = vmatmul.bf16.gmra.mxu0 %v1102
        %v1170 = vpop.f32.mrf.mxu0
        %v1171 = vadd.f32 %v647, %v1170
        %v1172 = vpop.f32.mrf.mxu0
        %v1173 = vadd.f32 %v649, %v1172
        %1174 = vmatmul.bf16.gmra.mxu0 %v1105
        %v1175 = vpop.f32.mrf.mxu0
        %v1176 = vadd.f32 %v652, %v1175
        %v1177 = vpop.f32.mrf.mxu0
        %v1178 = vadd.f32 %v654, %v1177
        %1179 = vmatmul.bf16.gmra.mxu0 %v1108
        %v1180 = vpop.f32.mrf.mxu0
        %v1181 = vadd.f32 %v657, %v1180
        %v1182 = vpop.f32.mrf.mxu0
        %v1183 = vadd.f32 %v659, %v1182
        %1184 = vmatmul.bf16.gmra.mxu0 %v1111
        %v1185 = vpop.f32.mrf.mxu0
        %v1186 = vadd.f32 %v662, %v1185
        %v1187 = vpop.f32.mrf.mxu0
        %v1188 = vadd.f32 %v664, %v1187
        %1189 = vmatmul.bf16.gmra.mxu0 %v1114
        %v1190 = vpop.f32.mrf.mxu0
        %v1191 = vadd.f32 %v667, %v1190
        %v1192 = vpop.f32.mrf.mxu0
        %v1193 = vadd.f32 %v669, %v1192
        %1194 = vmatmul.bf16.gmra.mxu0 %v1117
        %v1195 = vpop.f32.mrf.mxu0
        %v1196 = vadd.f32 %v672, %v1195
        %v1197 = vpop.f32.mrf.mxu0
        %v1198 = vadd.f32 %v674, %v1197
        %1199 = vmatmul.bf16.gmra.mxu0 %v1120
        %v1200 = vpop.f32.mrf.mxu0
        %v1201 = vadd.f32 %v677, %v1200
        %v1202 = vpop.f32.mrf.mxu0
        %v1203 = vadd.f32 %v679, %v1202
        %1204 = vmatmul.bf16.gmra.mxu0 %v1123
        %v1205 = vpop.f32.mrf.mxu0
        %v1206 = vadd.f32 %v682, %v1205
        %v1207 = vpop.f32.mrf.mxu0
        %v1208 = vadd.f32 %v684, %v1207
        %1209 = vmatmul.bf16.gmra.mxu0 %v1126
        %v1210 = vpop.f32.mrf.mxu0
        %v1211 = vadd.f32 %v687, %v1210
        %v1212 = vpop.f32.mrf.mxu0
        %v1213 = vadd.f32 %v689, %v1212
        %1214 = vmatmul.bf16.gmra.mxu0 %v1129
        %v1215 = vpop.f32.mrf.mxu0
        %v1216 = vadd.f32 %v692, %v1215
        %v1217 = vpop.f32.mrf.mxu0
        %v1218 = vadd.f32 %v694, %v1217
        %1219 = vdwg.mxu0
        %1220 = vmatpush.bf16.msra.mxu0 0
        %1221 = vmatpush.bf16.msra.mxu0 0
        %1222 = vmatpush.bf16.msra.mxu0 0
        %1223 = vmatpush.bf16.msra.mxu0 0
        %1224 = vmatpush.bf16.msra.mxu0 0
        %1225 = vmatpush.bf16.msra.mxu0 0
        %1226 = vmatpush.bf16.msra.mxu0 %v1072
        %1227 = vmatpush.bf16.msra.mxu0 %v1068
        %1228 = vmatmul.bf16.gmra.mxu0 %v1084
        %v1229 = vpop.f32.mrf.mxu0
        %v1230 = vadd.f32 %v706, %v1229
        %v1231 = vpop.f32.mrf.mxu0
        %v1232 = vadd.f32 %v708, %v1231
        %1233 = vmatmul.bf16.gmra.mxu0 %v1087
        %v1234 = vpop.f32.mrf.mxu0
        %v1235 = vadd.f32 %v711, %v1234
        %v1236 = vpop.f32.mrf.mxu0
        %v1237 = vadd.f32 %v713, %v1236
        %1238 = vmatmul.bf16.gmra.mxu0 %v1090
        %v1239 = vpop.f32.mrf.mxu0
        %v1240 = vadd.f32 %v716, %v1239
        %v1241 = vpop.f32.mrf.mxu0
        %v1242 = vadd.f32 %v718, %v1241
        %1243 = vmatmul.bf16.gmra.mxu0 %v1093
        %v1244 = vpop.f32.mrf.mxu0
        %v1245 = vadd.f32 %v721, %v1244
        %v1246 = vpop.f32.mrf.mxu0
        %v1247 = vadd.f32 %v723, %v1246
        %1248 = vmatmul.bf16.gmra.mxu0 %v1096
        %v1249 = vpop.f32.mrf.mxu0
        %v1250 = vadd.f32 %v726, %v1249
        %v1251 = vpop.f32.mrf.mxu0
        %v1252 = vadd.f32 %v728, %v1251
        %1253 = vmatmul.bf16.gmra.mxu0 %v1099
        %v1254 = vpop.f32.mrf.mxu0
        %v1255 = vadd.f32 %v731, %v1254
        %v1256 = vpop.f32.mrf.mxu0
        %v1257 = vadd.f32 %v733, %v1256
        %1258 = vmatmul.bf16.gmra.mxu0 %v1102
        %v1259 = vpop.f32.mrf.mxu0
        %v1260 = vadd.f32 %v736, %v1259
        %v1261 = vpop.f32.mrf.mxu0
        %v1262 = vadd.f32 %v738, %v1261
        %1263 = vmatmul.bf16.gmra.mxu0 %v1105
        %v1264 = vpop.f32.mrf.mxu0
        %v1265 = vadd.f32 %v741, %v1264
        %v1266 = vpop.f32.mrf.mxu0
        %v1267 = vadd.f32 %v743, %v1266
        %1268 = vmatmul.bf16.gmra.mxu0 %v1108
        %v1269 = vpop.f32.mrf.mxu0
        %v1270 = vadd.f32 %v746, %v1269
        %v1271 = vpop.f32.mrf.mxu0
        %v1272 = vadd.f32 %v748, %v1271
        %1273 = vmatmul.bf16.gmra.mxu0 %v1111
        %v1274 = vpop.f32.mrf.mxu0
        %v1275 = vadd.f32 %v751, %v1274
        %v1276 = vpop.f32.mrf.mxu0
        %v1277 = vadd.f32 %v753, %v1276
        %1278 = vmatmul.bf16.gmra.mxu0 %v1114
        %v1279 = vpop.f32.mrf.mxu0
        %v1280 = vadd.f32 %v756, %v1279
        %v1281 = vpop.f32.mrf.mxu0
        %v1282 = vadd.f32 %v758, %v1281
        %1283 = vmatmul.bf16.gmra.mxu0 %v1117
        %v1284 = vpop.f32.mrf.mxu0
        %v1285 = vadd.f32 %v761, %v1284
        %v1286 = vpop.f32.mrf.mxu0
        %v1287 = vadd.f32 %v763, %v1286
        %1288 = vmatmul.bf16.gmra.mxu0 %v1120
        %v1289 = vpop.f32.mrf.mxu0
        %v1290 = vadd.f32 %v766, %v1289
        %v1291 = vpop.f32.mrf.mxu0
        %v1292 = vadd.f32 %v768, %v1291
        %1293 = vmatmul.bf16.gmra.mxu0 %v1123
        %v1294 = vpop.f32.mrf.mxu0
        %v1295 = vadd.f32 %v771, %v1294
        %v1296 = vpop.f32.mrf.mxu0
        %v1297 = vadd.f32 %v773, %v1296
        %1298 = vmatmul.bf16.gmra.mxu0 %v1126
        %v1299 = vpop.f32.mrf.mxu0
        %v1300 = vadd.f32 %v776, %v1299
        %v1301 = vpop.f32.mrf.mxu0
        %v1302 = vadd.f32 %v778, %v1301
        %1303 = vmatmul.bf16.gmra.mxu0 %v1129
        %v1304 = vpop.f32.mrf.mxu0
        %v1305 = vadd.f32 %v781, %v1304
        %v1306 = vpop.f32.mrf.mxu0
        %v1307 = vadd.f32 %v783, %v1306
        %1308 = vdwg.mxu0
        %1309 = vmatpush.bf16.msra.mxu0 0
        %1310 = vmatpush.bf16.msra.mxu0 0
        %1311 = vmatpush.bf16.msra.mxu0 0
        %1312 = vmatpush.bf16.msra.mxu0 0
        %1313 = vmatpush.bf16.msra.mxu0 0
        %1314 = vmatpush.bf16.msra.mxu0 0
        %1315 = vmatpush.bf16.msra.mxu0 %v1073
        %1316 = vmatpush.bf16.msra.mxu0 %v1069
        %1317 = vmatmul.bf16.gmra.mxu0 %v1084
        %v1318 = vpop.f32.mrf.mxu0
        %v1319 = vadd.f32 %v795, %v1318
        %v1320 = vpop.f32.mrf.mxu0
        %v1321 = vadd.f32 %v797, %v1320
        %1322 = vmatmul.bf16.gmra.mxu0 %v1087
        %v1323 = vpop.f32.mrf.mxu0
        %v1324 = vadd.f32 %v800, %v1323
        %v1325 = vpop.f32.mrf.mxu0
        %v1326 = vadd.f32 %v802, %v1325
        %1327 = vmatmul.bf16.gmra.mxu0 %v1090
        %v1328 = vpop.f32.mrf.mxu0
        %v1329 = vadd.f32 %v805, %v1328
        %v1330 = vpop.f32.mrf.mxu0
        %v1331 = vadd.f32 %v807, %v1330
        %1332 = vmatmul.bf16.gmra.mxu0 %v1093
        %v1333 = vpop.f32.mrf.mxu0
        %v1334 = vadd.f32 %v810, %v1333
        %v1335 = vpop.f32.mrf.mxu0
        %v1336 = vadd.f32 %v812, %v1335
        %1337 = vmatmul.bf16.gmra.mxu0 %v1096
        %v1338 = vpop.f32.mrf.mxu0
        %v1339 = vadd.f32 %v815, %v1338
        %v1340 = vpop.f32.mrf.mxu0
        %v1341 = vadd.f32 %v817, %v1340
        %1342 = vmatmul.bf16.gmra.mxu0 %v1099
        %v1343 = vpop.f32.mrf.mxu0
        %v1344 = vadd.f32 %v820, %v1343
        %v1345 = vpop.f32.mrf.mxu0
        %v1346 = vadd.f32 %v822, %v1345
        %1347 = vmatmul.bf16.gmra.mxu0 %v1102
        %v1348 = vpop.f32.mrf.mxu0
        %v1349 = vadd.f32 %v825, %v1348
        %v1350 = vpop.f32.mrf.mxu0
        %v1351 = vadd.f32 %v827, %v1350
        %1352 = vmatmul.bf16.gmra.mxu0 %v1105
        %v1353 = vpop.f32.mrf.mxu0
        %v1354 = vadd.f32 %v830, %v1353
        %v1355 = vpop.f32.mrf.mxu0
        %v1356 = vadd.f32 %v832, %v1355
        %1357 = vmatmul.bf16.gmra.mxu0 %v1108
        %v1358 = vpop.f32.mrf.mxu0
        %v1359 = vadd.f32 %v835, %v1358
        %v1360 = vpop.f32.mrf.mxu0
        %v1361 = vadd.f32 %v837, %v1360
        %1362 = vmatmul.bf16.gmra.mxu0 %v1111
        %v1363 = vpop.f32.mrf.mxu0
        %v1364 = vadd.f32 %v840, %v1363
        %v1365 = vpop.f32.mrf.mxu0
        %v1366 = vadd.f32 %v842, %v1365
        %1367 = vmatmul.bf16.gmra.mxu0 %v1114
        %v1368 = vpop.f32.mrf.mxu0
        %v1369 = vadd.f32 %v845, %v1368
        %v1370 = vpop.f32.mrf.mxu0
        %v1371 = vadd.f32 %v847, %v1370
        %1372 = vmatmul.bf16.gmra.mxu0 %v1117
        %v1373 = vpop.f32.mrf.mxu0
        %v1374 = vadd.f32 %v850, %v1373
        %v1375 = vpop.f32.mrf.mxu0
        %v1376 = vadd.f32 %v852, %v1375
        %1377 = vmatmul.bf16.gmra.mxu0 %v1120
        %v1378 = vpop.f32.mrf.mxu0
        %v1379 = vadd.f32 %v855, %v1378
        %v1380 = vpop.f32.mrf.mxu0
        %v1381 = vadd.f32 %v857, %v1380
        %1382 = vmatmul.bf16.gmra.mxu0 %v1123
        %v1383 = vpop.f32.mrf.mxu0
        %v1384 = vadd.f32 %v860, %v1383
        %v1385 = vpop.f32.mrf.mxu0
        %v1386 = vadd.f32 %v862, %v1385
        %1387 = vmatmul.bf16.gmra.mxu0 %v1126
        %v1388 = vpop.f32.mrf.mxu0
        %v1389 = vadd.f32 %v865, %v1388
        %v1390 = vpop.f32.mrf.mxu0
        %v1391 = vadd.f32 %v867, %v1390
        %1392 = vmatmul.bf16.gmra.mxu0 %v1129
        %v1393 = vpop.f32.mrf.mxu0
        %v1394 = vadd.f32 %v870, %v1393
        %v1395 = vpop.f32.mrf.mxu0
        %v1396 = vadd.f32 %v872, %v1395
        %1397 = vdwg.mxu0
        %1398 = vmatpush.bf16.msra.mxu0 0
        %1399 = vmatpush.bf16.msra.mxu0 0
        %1400 = vmatpush.bf16.msra.mxu0 0
        %1401 = vmatpush.bf16.msra.mxu0 0
        %1402 = vmatpush.bf16.msra.mxu0 0
        %1403 = vmatpush.bf16.msra.mxu0 0
        %1404 = vmatpush.bf16.msra.mxu0 %v1074
        %1405 = vmatpush.bf16.msra.mxu0 %v1070
        %1406 = vmatmul.bf16.gmra.mxu0 %v1084
        %v1407 = vpop.f32.mrf.mxu0
        %v1408 = vadd.f32 %v884, %v1407
        %v1409 = vpop.f32.mrf.mxu0
        %v1410 = vadd.f32 %v886, %v1409
        %1411 = vmatmul.bf16.gmra.mxu0 %v1087
        %v1412 = vpop.f32.mrf.mxu0
        %v1413 = vadd.f32 %v889, %v1412
        %v1414 = vpop.f32.mrf.mxu0
        %v1415 = vadd.f32 %v891, %v1414
        %1416 = vmatmul.bf16.gmra.mxu0 %v1090
        %v1417 = vpop.f32.mrf.mxu0
        %v1418 = vadd.f32 %v894, %v1417
        %v1419 = vpop.f32.mrf.mxu0
        %v1420 = vadd.f32 %v896, %v1419
        %1421 = vmatmul.bf16.gmra.mxu0 %v1093
        %v1422 = vpop.f32.mrf.mxu0
        %v1423 = vadd.f32 %v899, %v1422
        %v1424 = vpop.f32.mrf.mxu0
        %v1425 = vadd.f32 %v901, %v1424
        %1426 = vmatmul.bf16.gmra.mxu0 %v1096
        %v1427 = vpop.f32.mrf.mxu0
        %v1428 = vadd.f32 %v904, %v1427
        %v1429 = vpop.f32.mrf.mxu0
        %v1430 = vadd.f32 %v906, %v1429
        %1431 = vmatmul.bf16.gmra.mxu0 %v1099
        %v1432 = vpop.f32.mrf.mxu0
        %v1433 = vadd.f32 %v909, %v1432
        %v1434 = vpop.f32.mrf.mxu0
        %v1435 = vadd.f32 %v911, %v1434
        %1436 = vmatmul.bf16.gmra.mxu0 %v1102
        %v1437 = vpop.f32.mrf.mxu0
        %v1438 = vadd.f32 %v914, %v1437
        %v1439 = vpop.f32.mrf.mxu0
        %v1440 = vadd.f32 %v916, %v1439
        %1441 = vmatmul.bf16.gmra.mxu0 %v1105
        %v1442 = vpop.f32.mrf.mxu0
        %v1443 = vadd.f32 %v919, %v1442
        %v1444 = vpop.f32.mrf.mxu0
        %v1445 = vadd.f32 %v921, %v1444
        %1446 = vmatmul.bf16.gmra.mxu0 %v1108
        %v1447 = vpop.f32.mrf.mxu0
        %v1448 = vadd.f32 %v924, %v1447
        %v1449 = vpop.f32.mrf.mxu0
        %v1450 = vadd.f32 %v926, %v1449
        %1451 = vmatmul.bf16.gmra.mxu0 %v1111
        %v1452 = vpop.f32.mrf.mxu0
        %v1453 = vadd.f32 %v929, %v1452
        %v1454 = vpop.f32.mrf.mxu0
        %v1455 = vadd.f32 %v931, %v1454
        %1456 = vmatmul.bf16.gmra.mxu0 %v1114
        %v1457 = vpop.f32.mrf.mxu0
        %v1458 = vadd.f32 %v934, %v1457
        %v1459 = vpop.f32.mrf.mxu0
        %v1460 = vadd.f32 %v936, %v1459
        %1461 = vmatmul.bf16.gmra.mxu0 %v1117
        %v1462 = vpop.f32.mrf.mxu0
        %v1463 = vadd.f32 %v939, %v1462
        %v1464 = vpop.f32.mrf.mxu0
        %v1465 = vadd.f32 %v941, %v1464
        %1466 = vmatmul.bf16.gmra.mxu0 %v1120
        %v1467 = vpop.f32.mrf.mxu0
        %v1468 = vadd.f32 %v944, %v1467
        %v1469 = vpop.f32.mrf.mxu0
        %v1470 = vadd.f32 %v946, %v1469
        %1471 = vmatmul.bf16.gmra.mxu0 %v1123
        %v1472 = vpop.f32.mrf.mxu0
        %v1473 = vadd.f32 %v949, %v1472
        %v1474 = vpop.f32.mrf.mxu0
        %v1475 = vadd.f32 %v951, %v1474
        %1476 = vmatmul.bf16.gmra.mxu0 %v1126
        %v1477 = vpop.f32.mrf.mxu0
        %v1478 = vadd.f32 %v954, %v1477
        %v1479 = vpop.f32.mrf.mxu0
        %v1480 = vadd.f32 %v956, %v1479
        %1481 = vmatmul.bf16.gmra.mxu0 %v1129
        %v1482 = vpop.f32.mrf.mxu0
        %v1483 = vadd.f32 %v959, %v1482
        %v1484 = vpop.f32.mrf.mxu0
        %v1485 = vadd.f32 %v961, %v1484
        %1486 = vdwg.mxu0
        %v1487 = vld [vmem:[%s4] sm:$0xf]
        %v1489 = vperm.slane %v1487, 0
        %v1490 = vperm.slane %v1487, 1
        %v1491 = vperm.slane %v1487, 2
        %v1492 = vperm.slane %v1487, 3
        %v1497 = vadd.f32 %v1141, %v1489
        %v1498 = vadd.f32 %v1230, %v1490
        %v1499 = vadd.f32 %v1319, %v1491
        %v1500 = vadd.f32 %v1408, %v1492
        %v1501 = vadd.f32 %v1143, %v1489
        %v1502 = vadd.f32 %v1232, %v1490
        %v1503 = vadd.f32 %v1321, %v1491
        %v1504 = vadd.f32 %v1410, %v1492
        %v1505 = vadd.f32 %v1146, %v1489
        %v1506 = vadd.f32 %v1235, %v1490
        %v1507 = vadd.f32 %v1324, %v1491
        %v1508 = vadd.f32 %v1413, %v1492
        %v1509 = vadd.f32 %v1148, %v1489
        %v1510 = vadd.f32 %v1237, %v1490
        %v1511 = vadd.f32 %v1326, %v1491
        %v1512 = vadd.f32 %v1415, %v1492
        %v1513 = vadd.f32 %v1151, %v1489
        %v1514 = vadd.f32 %v1240, %v1490
        %v1515 = vadd.f32 %v1329, %v1491
        %v1516 = vadd.f32 %v1418, %v1492
        %v1517 = vadd.f32 %v1153, %v1489
        %v1518 = vadd.f32 %v1242, %v1490
        %v1519 = vadd.f32 %v1331, %v1491
        %v1520 = vadd.f32 %v1420, %v1492
        %v1521 = vadd.f32 %v1156, %v1489
        %v1522 = vadd.f32 %v1245, %v1490
        %v1523 = vadd.f32 %v1334, %v1491
        %v1524 = vadd.f32 %v1423, %v1492
        %v1525 = vadd.f32 %v1158, %v1489
        %v1526 = vadd.f32 %v1247, %v1490
        %v1527 = vadd.f32 %v1336, %v1491
        %v1528 = vadd.f32 %v1425, %v1492
        %v1529 = vadd.f32 %v1161, %v1489
        %v1530 = vadd.f32 %v1250, %v1490
        %v1531 = vadd.f32 %v1339, %v1491
        %v1532 = vadd.f32 %v1428, %v1492
        %v1533 = vadd.f32 %v1163, %v1489
        %v1534 = vadd.f32 %v1252, %v1490
        %v1535 = vadd.f32 %v1341, %v1491
        %v1536 = vadd.f32 %v1430, %v1492
        %v1537 = vadd.f32 %v1166, %v1489
        %v1538 = vadd.f32 %v1255, %v1490
        %v1539 = vadd.f32 %v1344, %v1491
        %v1540 = vadd.f32 %v1433, %v1492
        %v1541 = vadd.f32 %v1168, %v1489
        %v1542 = vadd.f32 %v1257, %v1490
        %v1543 = vadd.f32 %v1346, %v1491
        %v1544 = vadd.f32 %v1435, %v1492
        %v1545 = vadd.f32 %v1171, %v1489
        %v1546 = vadd.f32 %v1260, %v1490
        %v1547 = vadd.f32 %v1349, %v1491
        %v1548 = vadd.f32 %v1438, %v1492
        %v1549 = vadd.f32 %v1173, %v1489
        %v1550 = vadd.f32 %v1262, %v1490
        %v1551 = vadd.f32 %v1351, %v1491
        %v1552 = vadd.f32 %v1440, %v1492
        %v1553 = vadd.f32 %v1176, %v1489
        %v1554 = vadd.f32 %v1265, %v1490
        %v1555 = vadd.f32 %v1354, %v1491
        %v1556 = vadd.f32 %v1443, %v1492
        %v1557 = vadd.f32 %v1178, %v1489
        %v1558 = vadd.f32 %v1267, %v1490
        %v1559 = vadd.f32 %v1356, %v1491
        %v1560 = vadd.f32 %v1445, %v1492
        %v1561 = vadd.f32 %v1181, %v1489
        %v1562 = vadd.f32 %v1270, %v1490
        %v1563 = vadd.f32 %v1359, %v1491
        %v1564 = vadd.f32 %v1448, %v1492
        %v1565 = vadd.f32 %v1183, %v1489
        %v1566 = vadd.f32 %v1272, %v1490
        %v1567 = vadd.f32 %v1361, %v1491
        %v1568 = vadd.f32 %v1450, %v1492
        %v1569 = vadd.f32 %v1186, %v1489
        %v1570 = vadd.f32 %v1275, %v1490
        %v1571 = vadd.f32 %v1364, %v1491
        %v1572 = vadd.f32 %v1453, %v1492
        %v1573 = vadd.f32 %v1188, %v1489
        %v1574 = vadd.f32 %v1277, %v1490
        %v1575 = vadd.f32 %v1366, %v1491
        %v1576 = vadd.f32 %v1455, %v1492
        %v1577 = vadd.f32 %v1191, %v1489
        %v1578 = vadd.f32 %v1280, %v1490
        %v1579 = vadd.f32 %v1369, %v1491
        %v1580 = vadd.f32 %v1458, %v1492
        %v1581 = vadd.f32 %v1193, %v1489
        %v1582 = vadd.f32 %v1282, %v1490
        %v1583 = vadd.f32 %v1371, %v1491
        %v1584 = vadd.f32 %v1460, %v1492
        %v1585 = vadd.f32 %v1196, %v1489
        %v1586 = vadd.f32 %v1285, %v1490
        %v1587 = vadd.f32 %v1374, %v1491
        %v1588 = vadd.f32 %v1463, %v1492
        %v1589 = vadd.f32 %v1198, %v1489
        %v1590 = vadd.f32 %v1287, %v1490
        %v1591 = vadd.f32 %v1376, %v1491
        %v1592 = vadd.f32 %v1465, %v1492
        %v1593 = vadd.f32 %v1201, %v1489
        %v1594 = vadd.f32 %v1290, %v1490
        %v1595 = vadd.f32 %v1379, %v1491
        %v1596 = vadd.f32 %v1468, %v1492
        %v1597 = vadd.f32 %v1203, %v1489
        %v1598 = vadd.f32 %v1292, %v1490
        %v1599 = vadd.f32 %v1381, %v1491
        %v1600 = vadd.f32 %v1470, %v1492
        %v1601 = vadd.f32 %v1206, %v1489
        %v1602 = vadd.f32 %v1295, %v1490
        %v1603 = vadd.f32 %v1384, %v1491
        %v1604 = vadd.f32 %v1473, %v1492
        %v1605 = vadd.f32 %v1208, %v1489
        %v1606 = vadd.f32 %v1297, %v1490
        %v1607 = vadd.f32 %v1386, %v1491
        %v1608 = vadd.f32 %v1475, %v1492
        %v1609 = vadd.f32 %v1211, %v1489
        %v1610 = vadd.f32 %v1300, %v1490
        %v1611 = vadd.f32 %v1389, %v1491
        %v1612 = vadd.f32 %v1478, %v1492
        %v1613 = vadd.f32 %v1213, %v1489
        %v1614 = vadd.f32 %v1302, %v1490
        %v1615 = vadd.f32 %v1391, %v1491
        %v1616 = vadd.f32 %v1480, %v1492
        %v1617 = vadd.f32 %v1216, %v1489
        %v1618 = vadd.f32 %v1305, %v1490
        %v1619 = vadd.f32 %v1394, %v1491
        %v1620 = vadd.f32 %v1483, %v1492
        %v1621 = vadd.f32 %v1218, %v1489
        %v1622 = vadd.f32 %v1307, %v1490
        %v1623 = vadd.f32 %v1396, %v1491
        %v1624 = vadd.f32 %v1485, %v1492
        %v1625 = vadd.f32 %v1497, %v1498
        %v1626 = vadd.f32 %v1625, %v1499
        %v1627 = vadd.f32 %v1626, %v1500
        %1628 = vadd.xlane.f32.xlu0 %v1627
        %v1629 = vpop.xlane.xlu0 %1628
        %v1630 = vadd.f32 %v1501, %v1502
        %v1631 = vadd.f32 %v1630, %v1503
        %v1632 = vadd.f32 %v1631, %v1504
        %1633 = vadd.xlane.f32.xlu0 %v1632
        %v1634 = vpop.xlane.xlu0 %1633
        %v1635 = vadd.f32 %v1505, %v1506
        %v1636 = vadd.f32 %v1635, %v1507
        %v1637 = vadd.f32 %v1636, %v1508
        %1638 = vadd.xlane.f32.xlu0 %v1637
        %v1639 = vpop.xlane.xlu0 %1638
        %v1640 = vadd.f32 %v1509, %v1510
        %v1641 = vadd.f32 %v1640, %v1511
        %v1642 = vadd.f32 %v1641, %v1512
        %1643 = vadd.xlane.f32.xlu0 %v1642
        %v1644 = vpop.xlane.xlu0 %1643
        %v1645 = vadd.f32 %v1513, %v1514
        %v1646 = vadd.f32 %v1645, %v1515
        %v1647 = vadd.f32 %v1646, %v1516
        %1648 = vadd.xlane.f32.xlu0 %v1647
        %v1649 = vpop.xlane.xlu0 %1648
        %v1650 = vadd.f32 %v1517, %v1518
        %v1651 = vadd.f32 %v1650, %v1519
        %v1652 = vadd.f32 %v1651, %v1520
        %1653 = vadd.xlane.f32.xlu0 %v1652
        %v1654 = vpop.xlane.xlu0 %1653
        %v1655 = vadd.f32 %v1521, %v1522
        %v1656 = vadd.f32 %v1655, %v1523
        %v1657 = vadd.f32 %v1656, %v1524
        %1658 = vadd.xlane.f32.xlu0 %v1657
        %v1659 = vpop.xlane.xlu0 %1658
        %v1660 = vadd.f32 %v1525, %v1526
        %v1661 = vadd.f32 %v1660, %v1527
        %v1662 = vadd.f32 %v1661, %v1528
        %1663 = vadd.xlane.f32.xlu0 %v1662
        %v1664 = vpop.xlane.xlu0 %1663
        %v1665 = vadd.f32 %v1529, %v1530
        %v1666 = vadd.f32 %v1665, %v1531
        %v1667 = vadd.f32 %v1666, %v1532
        %1668 = vadd.xlane.f32.xlu0 %v1667
        %v1669 = vpop.xlane.xlu0 %1668
        %v1670 = vadd.f32 %v1533, %v1534
        %v1671 = vadd.f32 %v1670, %v1535
        %v1672 = vadd.f32 %v1671, %v1536
        %1673 = vadd.xlane.f32.xlu0 %v1672
        %v1674 = vpop.xlane.xlu0 %1673
        %v1675 = vadd.f32 %v1537, %v1538
        %v1676 = vadd.f32 %v1675, %v1539
        %v1677 = vadd.f32 %v1676, %v1540
        %1678 = vadd.xlane.f32.xlu0 %v1677
        %v1679 = vpop.xlane.xlu0 %1678
        %v1680 = vadd.f32 %v1541, %v1542
        %v1681 = vadd.f32 %v1680, %v1543
        %v1682 = vadd.f32 %v1681, %v1544
        %1683 = vadd.xlane.f32.xlu0 %v1682
        %v1684 = vpop.xlane.xlu0 %1683
        %v1685 = vadd.f32 %v1545, %v1546
        %v1686 = vadd.f32 %v1685, %v1547
        %v1687 = vadd.f32 %v1686, %v1548
        %1688 = vadd.xlane.f32.xlu0 %v1687
        %v1689 = vpop.xlane.xlu0 %1688
        %v1690 = vadd.f32 %v1549, %v1550
        %v1691 = vadd.f32 %v1690, %v1551
        %v1692 = vadd.f32 %v1691, %v1552
        %1693 = vadd.xlane.f32.xlu0 %v1692
        %v1694 = vpop.xlane.xlu0 %1693
        %v1695 = vadd.f32 %v1553, %v1554
        %v1696 = vadd.f32 %v1695, %v1555
        %v1697 = vadd.f32 %v1696, %v1556
        %1698 = vadd.xlane.f32.xlu0 %v1697
        %v1699 = vpop.xlane.xlu0 %1698
        %v1700 = vadd.f32 %v1557, %v1558
        %v1701 = vadd.f32 %v1700, %v1559
        %v1702 = vadd.f32 %v1701, %v1560
        %1703 = vadd.xlane.f32.xlu0 %v1702
        %v1704 = vpop.xlane.xlu0 %1703
        %v1705 = vadd.f32 %v1561, %v1562
        %v1706 = vadd.f32 %v1705, %v1563
        %v1707 = vadd.f32 %v1706, %v1564
        %1708 = vadd.xlane.f32.xlu0 %v1707
        %v1709 = vpop.xlane.xlu0 %1708
        %v1710 = vadd.f32 %v1565, %v1566
        %v1711 = vadd.f32 %v1710, %v1567
        %v1712 = vadd.f32 %v1711, %v1568
        %1713 = vadd.xlane.f32.xlu0 %v1712
        %v1714 = vpop.xlane.xlu0 %1713
        %v1715 = vadd.f32 %v1569, %v1570
        %v1716 = vadd.f32 %v1715, %v1571
        %v1717 = vadd.f32 %v1716, %v1572
        %1718 = vadd.xlane.f32.xlu0 %v1717
        %v1719 = vpop.xlane.xlu0 %1718
        %v1720 = vadd.f32 %v1573, %v1574
        %v1721 = vadd.f32 %v1720, %v1575
        %v1722 = vadd.f32 %v1721, %v1576
        %1723 = vadd.xlane.f32.xlu0 %v1722
        %v1724 = vpop.xlane.xlu0 %1723
        %v1725 = vadd.f32 %v1577, %v1578
        %v1726 = vadd.f32 %v1725, %v1579
        %v1727 = vadd.f32 %v1726, %v1580
        %1728 = vadd.xlane.f32.xlu0 %v1727
        %v1729 = vpop.xlane.xlu0 %1728
        %v1730 = vadd.f32 %v1581, %v1582
        %v1731 = vadd.f32 %v1730, %v1583
        %v1732 = vadd.f32 %v1731, %v1584
        %1733 = vadd.xlane.f32.xlu0 %v1732
        %v1734 = vpop.xlane.xlu0 %1733
        %v1735 = vadd.f32 %v1585, %v1586
        %v1736 = vadd.f32 %v1735, %v1587
        %v1737 = vadd.f32 %v1736, %v1588
        %1738 = vadd.xlane.f32.xlu0 %v1737
        %v1739 = vpop.xlane.xlu0 %1738
        %v1740 = vadd.f32 %v1589, %v1590
        %v1741 = vadd.f32 %v1740, %v1591
        %v1742 = vadd.f32 %v1741, %v1592
        %1743 = vadd.xlane.f32.xlu0 %v1742
        %v1744 = vpop.xlane.xlu0 %1743
        %v1745 = vadd.f32 %v1593, %v1594
        %v1746 = vadd.f32 %v1745, %v1595
        %v1747 = vadd.f32 %v1746, %v1596
        %1748 = vadd.xlane.f32.xlu0 %v1747
        %v1749 = vpop.xlane.xlu0 %1748
        %v1750 = vadd.f32 %v1597, %v1598
        %v1751 = vadd.f32 %v1750, %v1599
        %v1752 = vadd.f32 %v1751, %v1600
        %1753 = vadd.xlane.f32.xlu0 %v1752
        %v1754 = vpop.xlane.xlu0 %1753
        %v1755 = vadd.f32 %v1601, %v1602
        %v1756 = vadd.f32 %v1755, %v1603
        %v1757 = vadd.f32 %v1756, %v1604
        %1758 = vadd.xlane.f32.xlu0 %v1757
        %v1759 = vpop.xlane.xlu0 %1758
        %v1760 = vadd.f32 %v1605, %v1606
        %v1761 = vadd.f32 %v1760, %v1607
        %v1762 = vadd.f32 %v1761, %v1608
        %1763 = vadd.xlane.f32.xlu0 %v1762
        %v1764 = vpop.xlane.xlu0 %1763
        %v1765 = vadd.f32 %v1609, %v1610
        %v1766 = vadd.f32 %v1765, %v1611
        %v1767 = vadd.f32 %v1766, %v1612
        %1768 = vadd.xlane.f32.xlu0 %v1767
        %v1769 = vpop.xlane.xlu0 %1768
        %v1770 = vadd.f32 %v1613, %v1614
        %v1771 = vadd.f32 %v1770, %v1615
        %v1772 = vadd.f32 %v1771, %v1616
        %1773 = vadd.xlane.f32.xlu0 %v1772
        %v1774 = vpop.xlane.xlu0 %1773
        %v1775 = vadd.f32 %v1617, %v1618
        %v1776 = vadd.f32 %v1775, %v1619
        %v1777 = vadd.f32 %v1776, %v1620
        %1778 = vadd.xlane.f32.xlu0 %v1777
        %v1779 = vpop.xlane.xlu0 %1778
        %v1780 = vadd.f32 %v1621, %v1622
        %v1781 = vadd.f32 %v1780, %v1623
        %v1782 = vadd.f32 %v1781, %v1624
        %1783 = vadd.xlane.f32.xlu0 %v1782
        %v1784 = vpop.xlane.xlu0 %1783
        %v1785 = vrcp.pop 512.0
        %v1786 = vmul.f32 512.0, %v1785
        %v1787 = vsub.f32 1.0, %v1786
        %v1788 = vmul.f32 %v1785, %v1787
        %v1789 = vadd.f32 %v1785, %v1788
        %vm1790 = vweird.f32 %v1785
        %v1791 = vsel %vm1790, %v1785, %v1789
        %v1792 = vmul.f32 %v1629, %v1791
        %v1793 = vmul.f32 %v1634, %v1791
        %v1794 = vmul.f32 %v1639, %v1791
        %v1795 = vmul.f32 %v1644, %v1791
        %v1796 = vmul.f32 %v1649, %v1791
        %v1797 = vmul.f32 %v1654, %v1791
        %v1798 = vmul.f32 %v1659, %v1791
        %v1799 = vmul.f32 %v1664, %v1791
        %v1800 = vmul.f32 %v1669, %v1791
        %v1801 = vmul.f32 %v1674, %v1791
        %v1802 = vmul.f32 %v1679, %v1791
        %v1803 = vmul.f32 %v1684, %v1791
        %v1804 = vmul.f32 %v1689, %v1791
        %v1805 = vmul.f32 %v1694, %v1791
        %v1806 = vmul.f32 %v1699, %v1791
        %v1807 = vmul.f32 %v1704, %v1791
        %v1808 = vmul.f32 %v1709, %v1791
        %v1809 = vmul.f32 %v1714, %v1791
        %v1810 = vmul.f32 %v1719, %v1791
        %v1811 = vmul.f32 %v1724, %v1791
        %v1812 = vmul.f32 %v1729, %v1791
        %v1813 = vmul.f32 %v1734, %v1791
        %v1814 = vmul.f32 %v1739, %v1791
        %v1815 = vmul.f32 %v1744, %v1791
        %v1816 = vmul.f32 %v1749, %v1791
        %v1817 = vmul.f32 %v1754, %v1791
        %v1818 = vmul.f32 %v1759, %v1791
        %v1819 = vmul.f32 %v1764, %v1791
        %v1820 = vmul.f32 %v1769, %v1791
        %v1821 = vmul.f32 %v1774, %v1791
        %v1822 = vmul.f32 %v1779, %v1791
        %v1823 = vmul.f32 %v1784, %v1791
        %v1824 = vsub.f32 %v1497, %v1792
        %v1825 = vsub.f32 %v1498, %v1792
        %v1826 = vsub.f32 %v1499, %v1792
        %v1827 = vsub.f32 %v1500, %v1792
        %v1828 = vsub.f32 %v1501, %v1793
        %v1829 = vsub.f32 %v1502, %v1793
        %v1830 = vsub.f32 %v1503, %v1793
        %v1831 = vsub.f32 %v1504, %v1793
        %v1832 = vsub.f32 %v1505, %v1794
        %v1833 = vsub.f32 %v1506, %v1794
        %v1834 = vsub.f32 %v1507, %v1794
        %v1835 = vsub.f32 %v1508, %v1794
        %v1836 = vsub.f32 %v1509, %v1795
        %v1837 = vsub.f32 %v1510, %v1795
        %v1838 = vsub.f32 %v1511, %v1795
        %v1839 = vsub.f32 %v1512, %v1795
        %v1840 = vsub.f32 %v1513, %v1796
        %v1841 = vsub.f32 %v1514, %v1796
        %v1842 = vsub.f32 %v1515, %v1796
        %v1843 = vsub.f32 %v1516, %v1796
        %v1844 = vsub.f32 %v1517, %v1797
        %v1845 = vsub.f32 %v1518, %v1797
        %v1846 = vsub.f32 %v1519, %v1797
        %v1847 = vsub.f32 %v1520, %v1797
        %v1848 = vsub.f32 %v1521, %v1798
        %v1849 = vsub.f32 %v1522, %v1798
        %v1850 = vsub.f32 %v1523, %v1798
        %v1851 = vsub.f32 %v1524, %v1798
        %v1852 = vsub.f32 %v1525, %v1799
        %v1853 = vsub.f32 %v1526, %v1799
        %v1854 = vsub.f32 %v1527, %v1799
        %v1855 = vsub.f32 %v1528, %v1799
        %v1856 = vsub.f32 %v1529, %v1800
        %v1857 = vsub.f32 %v1530, %v1800
        %v1858 = vsub.f32 %v1531, %v1800
        %v1859 = vsub.f32 %v1532, %v1800
        %v1860 = vsub.f32 %v1533, %v1801
        %v1861 = vsub.f32 %v1534, %v1801
        %v1862 = vsub.f32 %v1535, %v1801
        %v1863 = vsub.f32 %v1536, %v1801
        %v1864 = vsub.f32 %v1537, %v1802
        %v1865 = vsub.f32 %v1538, %v1802
        %v1866 = vsub.f32 %v1539, %v1802
        %v1867 = vsub.f32 %v1540, %v1802
        %v1868 = vsub.f32 %v1541, %v1803
        %v1869 = vsub.f32 %v1542, %v1803
        %v1870 = vsub.f32 %v1543, %v1803
        %v1871 = vsub.f32 %v1544, %v1803
        %v1872 = vsub.f32 %v1545, %v1804
        %v1873 = vsub.f32 %v1546, %v1804
        %v1874 = vsub.f32 %v1547, %v1804
        %v1875 = vsub.f32 %v1548, %v1804
        %v1876 = vsub.f32 %v1549, %v1805
        %v1877 = vsub.f32 %v1550, %v1805
        %v1878 = vsub.f32 %v1551, %v1805
        %v1879 = vsub.f32 %v1552, %v1805
        %v1880 = vsub.f32 %v1553, %v1806
        %v1881 = vsub.f32 %v1554, %v1806
        %v1882 = vsub.f32 %v1555, %v1806
        %v1883 = vsub.f32 %v1556, %v1806
        %v1884 = vsub.f32 %v1557, %v1807
        %v1885 = vsub.f32 %v1558, %v1807
        %v1886 = vsub.f32 %v1559, %v1807
        %v1887 = vsub.f32 %v1560, %v1807
        %v1888 = vsub.f32 %v1561, %v1808
        %v1889 = vsub.f32 %v1562, %v1808
        %v1890 = vsub.f32 %v1563, %v1808
        %v1891 = vsub.f32 %v1564, %v1808
        %v1892 = vsub.f32 %v1565, %v1809
        %v1893 = vsub.f32 %v1566, %v1809
        %v1894 = vsub.f32 %v1567, %v1809
        %v1895 = vsub.f32 %v1568, %v1809
        %v1896 = vsub.f32 %v1569, %v1810
        %v1897 = vsub.f32 %v1570, %v1810
        %v1898 = vsub.f32 %v1571, %v1810
        %v1899 = vsub.f32 %v1572, %v1810
        %v1900 = vsub.f32 %v1573, %v1811
        %v1901 = vsub.f32 %v1574, %v1811
        %v1902 = vsub.f32 %v1575, %v1811
        %v1903 = vsub.f32 %v1576, %v1811
        %v1904 = vsub.f32 %v1577, %v1812
        %v1905 = vsub.f32 %v1578, %v1812
        %v1906 = vsub.f32 %v1579, %v1812
        %v1907 = vsub.f32 %v1580, %v1812
        %v1908 = vsub.f32 %v1581, %v1813
        %v1909 = vsub.f32 %v1582, %v1813
        %v1910 = vsub.f32 %v1583, %v1813
        %v1911 = vsub.f32 %v1584, %v1813
        %v1912 = vsub.f32 %v1585, %v1814
        %v1913 = vsub.f32 %v1586, %v1814
        %v1914 = vsub.f32 %v1587, %v1814
        %v1915 = vsub.f32 %v1588, %v1814
        %v1916 = vsub.f32 %v1589, %v1815
        %v1917 = vsub.f32 %v1590, %v1815
        %v1918 = vsub.f32 %v1591, %v1815
        %v1919 = vsub.f32 %v1592, %v1815
        %v1920 = vsub.f32 %v1593, %v1816
        %v1921 = vsub.f32 %v1594, %v1816
        %v1922 = vsub.f32 %v1595, %v1816
        %v1923 = vsub.f32 %v1596, %v1816
        %v1924 = vsub.f32 %v1597, %v1817
        %v1925 = vsub.f32 %v1598, %v1817
        %v1926 = vsub.f32 %v1599, %v1817
        %v1927 = vsub.f32 %v1600, %v1817
        %v1928 = vsub.f32 %v1601, %v1818
        %v1929 = vsub.f32 %v1602, %v1818
        %v1930 = vsub.f32 %v1603, %v1818
        %v1931 = vsub.f32 %v1604, %v1818
        %v1932 = vsub.f32 %v1605, %v1819
        %v1933 = vsub.f32 %v1606, %v1819
        %v1934 = vsub.f32 %v1607, %v1819
        %v1935 = vsub.f32 %v1608, %v1819
        %v1936 = vsub.f32 %v1609, %v1820
        %v1937 = vsub.f32 %v1610, %v1820
        %v1938 = vsub.f32 %v1611, %v1820
        %v1939 = vsub.f32 %v1612, %v1820
        %v1940 = vsub.f32 %v1613, %v1821
        %v1941 = vsub.f32 %v1614, %v1821
        %v1942 = vsub.f32 %v1615, %v1821
        %v1943 = vsub.f32 %v1616, %v1821
        %v1944 = vsub.f32 %v1617, %v1822
        %v1945 = vsub.f32 %v1618, %v1822
        %v1946 = vsub.f32 %v1619, %v1822
        %v1947 = vsub.f32 %v1620, %v1822
        %v1948 = vsub.f32 %v1621, %v1823
        %v1949 = vsub.f32 %v1622, %v1823
        %v1950 = vsub.f32 %v1623, %v1823
        %v1951 = vsub.f32 %v1624, %v1823
        %v1952 = vmul.f32 %v1824, %v1824
        %v1953 = vmul.f32 %v1825, %v1825
        %v1954 = vmul.f32 %v1826, %v1826
        %v1955 = vmul.f32 %v1827, %v1827
        %v1956 = vmul.f32 %v1828, %v1828
        %v1957 = vmul.f32 %v1829, %v1829
        %v1958 = vmul.f32 %v1830, %v1830
        %v1959 = vmul.f32 %v1831, %v1831
        %v1960 = vmul.f32 %v1832, %v1832
        %v1961 = vmul.f32 %v1833, %v1833
        %v1962 = vmul.f32 %v1834, %v1834
        %v1963 = vmul.f32 %v1835, %v1835
        %v1964 = vmul.f32 %v1836, %v1836
        %v1965 = vmul.f32 %v1837, %v1837
        %v1966 = vmul.f32 %v1838, %v1838
        %v1967 = vmul.f32 %v1839, %v1839
        %v1968 = vmul.f32 %v1840, %v1840
        %v1969 = vmul.f32 %v1841, %v1841
        %v1970 = vmul.f32 %v1842, %v1842
        %v1971 = vmul.f32 %v1843, %v1843
        %v1972 = vmul.f32 %v1844, %v1844
        %v1973 = vmul.f32 %v1845, %v1845
        %v1974 = vmul.f32 %v1846, %v1846
        %v1975 = vmul.f32 %v1847, %v1847
        %v1976 = vmul.f32 %v1848, %v1848
        %v1977 = vmul.f32 %v1849, %v1849
        %v1978 = vmul.f32 %v1850, %v1850
        %v1979 = vmul.f32 %v1851, %v1851
        %v1980 = vmul.f32 %v1852, %v1852
        %v1981 = vmul.f32 %v1853, %v1853
        %v1982 = vmul.f32 %v1854, %v1854
        %v1983 = vmul.f32 %v1855, %v1855
        %v1984 = vmul.f32 %v1856, %v1856
        %v1985 = vmul.f32 %v1857, %v1857
        %v1986 = vmul.f32 %v1858, %v1858
        %v1987 = vmul.f32 %v1859, %v1859
        %v1988 = vmul.f32 %v1860, %v1860
        %v1989 = vmul.f32 %v1861, %v1861
        %v1990 = vmul.f32 %v1862, %v1862
        %v1991 = vmul.f32 %v1863, %v1863
        %v1992 = vmul.f32 %v1864, %v1864
        %v1993 = vmul.f32 %v1865, %v1865
        %v1994 = vmul.f32 %v1866, %v1866
        %v1995 = vmul.f32 %v1867, %v1867
        %v1996 = vmul.f32 %v1868, %v1868
        %v1997 = vmul.f32 %v1869, %v1869
        %v1998 = vmul.f32 %v1870, %v1870
        %v1999 = vmul.f32 %v1871, %v1871
        %v2000 = vmul.f32 %v1872, %v1872
        %v2001 = vmul.f32 %v1873, %v1873
        %v2002 = vmul.f32 %v1874, %v1874
        %v2003 = vmul.f32 %v1875, %v1875
        %v2004 = vmul.f32 %v1876, %v1876
        %v2005 = vmul.f32 %v1877, %v1877
        %v2006 = vmul.f32 %v1878, %v1878
        %v2007 = vmul.f32 %v1879, %v1879
        %v2008 = vmul.f32 %v1880, %v1880
        %v2009 = vmul.f32 %v1881, %v1881
        %v2010 = vmul.f32 %v1882, %v1882
        %v2011 = vmul.f32 %v1883, %v1883
        %v2012 = vmul.f32 %v1884, %v1884
        %v2013 = vmul.f32 %v1885, %v1885
        %v2014 = vmul.f32 %v1886, %v1886
        %v2015 = vmul.f32 %v1887, %v1887
        %v2016 = vmul.f32 %v1888, %v1888
        %v2017 = vmul.f32 %v1889, %v1889
        %v2018 = vmul.f32 %v1890, %v1890
        %v2019 = vmul.f32 %v1891, %v1891
        %v2020 = vmul.f32 %v1892, %v1892
        %v2021 = vmul.f32 %v1893, %v1893
        %v2022 = vmul.f32 %v1894, %v1894
        %v2023 = vmul.f32 %v1895, %v1895
        %v2024 = vmul.f32 %v1896, %v1896
        %v2025 = vmul.f32 %v1897, %v1897
        %v2026 = vmul.f32 %v1898, %v1898
        %v2027 = vmul.f32 %v1899, %v1899
        %v2028 = vmul.f32 %v1900, %v1900
        %v2029 = vmul.f32 %v1901, %v1901
        %v2030 = vmul.f32 %v1902, %v1902
        %v2031 = vmul.f32 %v1903, %v1903
        %v2032 = vmul.f32 %v1904, %v1904
        %v2033 = vmul.f32 %v1905, %v1905
        %v2034 = vmul.f32 %v1906, %v1906
        %v2035 = vmul.f32 %v1907, %v1907
        %v2036 = vmul.f32 %v1908, %v1908
        %v2037 = vmul.f32 %v1909, %v1909
        %v2038 = vmul.f32 %v1910, %v1910
        %v2039 = vmul.f32 %v1911, %v1911
        %v2040 = vmul.f32 %v1912, %v1912
        %v2041 = vmul.f32 %v1913, %v1913
        %v2042 = vmul.f32 %v1914, %v1914
        %v2043 = vmul.f32 %v1915, %v1915
        %v2044 = vmul.f32 %v1916, %v1916
        %v2045 = vmul.f32 %v1917, %v1917
        %v2046 = vmul.f32 %v1918, %v1918
        %v2047 = vmul.f32 %v1919, %v1919
        %v2048 = vmul.f32 %v1920, %v1920
        %v2049 = vmul.f32 %v1921, %v1921
        %v2050 = vmul.f32 %v1922, %v1922
        %v2051 = vmul.f32 %v1923, %v1923
        %v2052 = vmul.f32 %v1924, %v1924
        %v2053 = vmul.f32 %v1925, %v1925
        %v2054 = vmul.f32 %v1926, %v1926
        %v2055 = vmul.f32 %v1927, %v1927
        %v2056 = vmul.f32 %v1928, %v1928
        %v2057 = vmul.f32 %v1929, %v1929
        %v2058 = vmul.f32 %v1930, %v1930
        %v2059 = vmul.f32 %v1931, %v1931
        %v2060 = vmul.f32 %v1932, %v1932
        %v2061 = vmul.f32 %v1933, %v1933
        %v2062 = vmul.f32 %v1934, %v1934
        %v2063 = vmul.f32 %v1935, %v1935
        %v2064 = vmul.f32 %v1936, %v1936
        %v2065 = vmul.f32 %v1937, %v1937
        %v2066 = vmul.f32 %v1938, %v1938
        %v2067 = vmul.f32 %v1939, %v1939
        %v2068 = vmul.f32 %v1940, %v1940
        %v2069 = vmul.f32 %v1941, %v1941
        %v2070 = vmul.f32 %v1942, %v1942
        %v2071 = vmul.f32 %v1943, %v1943
        %v2072 = vmul.f32 %v1944, %v1944
        %v2073 = vmul.f32 %v1945, %v1945
        %v2074 = vmul.f32 %v1946, %v1946
        %v2075 = vmul.f32 %v1947, %v1947
        %v2076 = vmul.f32 %v1948, %v1948
        %v2077 = vmul.f32 %v1949, %v1949
        %v2078 = vmul.f32 %v1950, %v1950
        %v2079 = vmul.f32 %v1951, %v1951
        %v2080 = vadd.f32 %v1952, %v1953
        %v2081 = vadd.f32 %v2080, %v1954
        %v2082 = vadd.f32 %v2081, %v1955
        %2083 = vadd.xlane.f32.xlu0 %v2082
        %v2084 = vpop.xlane.xlu0 %2083
        %v2085 = vadd.f32 %v1956, %v1957
        %v2086 = vadd.f32 %v2085, %v1958
        %v2087 = vadd.f32 %v2086, %v1959
        %2088 = vadd.xlane.f32.xlu0 %v2087
        %v2089 = vpop.xlane.xlu0 %2088
        %v2090 = vadd.f32 %v1960, %v1961
        %v2091 = vadd.f32 %v2090, %v1962
        %v2092 = vadd.f32 %v2091, %v1963
        %2093 = vadd.xlane.f32.xlu0 %v2092
        %v2094 = vpop.xlane.xlu0 %2093
        %v2095 = vadd.f32 %v1964, %v1965
        %v2096 = vadd.f32 %v2095, %v1966
        %v2097 = vadd.f32 %v2096, %v1967
        %2098 = vadd.xlane.f32.xlu0 %v2097
        %v2099 = vpop.xlane.xlu0 %2098
        %v2100 = vadd.f32 %v1968, %v1969
        %v2101 = vadd.f32 %v2100, %v1970
        %v2102 = vadd.f32 %v2101, %v1971
        %2103 = vadd.xlane.f32.xlu0 %v2102
        %v2104 = vpop.xlane.xlu0 %2103
        %v2105 = vadd.f32 %v1972, %v1973
        %v2106 = vadd.f32 %v2105, %v1974
        %v2107 = vadd.f32 %v2106, %v1975
        %2108 = vadd.xlane.f32.xlu0 %v2107
        %v2109 = vpop.xlane.xlu0 %2108
        %v2110 = vadd.f32 %v1976, %v1977
        %v2111 = vadd.f32 %v2110, %v1978
        %v2112 = vadd.f32 %v2111, %v1979
        %2113 = vadd.xlane.f32.xlu0 %v2112
        %v2114 = vpop.xlane.xlu0 %2113
        %v2115 = vadd.f32 %v1980, %v1981
        %v2116 = vadd.f32 %v2115, %v1982
        %v2117 = vadd.f32 %v2116, %v1983
        %2118 = vadd.xlane.f32.xlu0 %v2117
        %v2119 = vpop.xlane.xlu0 %2118
        %v2120 = vadd.f32 %v1984, %v1985
        %v2121 = vadd.f32 %v2120, %v1986
        %v2122 = vadd.f32 %v2121, %v1987
        %2123 = vadd.xlane.f32.xlu0 %v2122
        %v2124 = vpop.xlane.xlu0 %2123
        %v2125 = vadd.f32 %v1988, %v1989
        %v2126 = vadd.f32 %v2125, %v1990
        %v2127 = vadd.f32 %v2126, %v1991
        %2128 = vadd.xlane.f32.xlu0 %v2127
        %v2129 = vpop.xlane.xlu0 %2128
        %v2130 = vadd.f32 %v1992, %v1993
        %v2131 = vadd.f32 %v2130, %v1994
        %v2132 = vadd.f32 %v2131, %v1995
        %2133 = vadd.xlane.f32.xlu0 %v2132
        %v2134 = vpop.xlane.xlu0 %2133
        %v2135 = vadd.f32 %v1996, %v1997
        %v2136 = vadd.f32 %v2135, %v1998
        %v2137 = vadd.f32 %v2136, %v1999
        %2138 = vadd.xlane.f32.xlu0 %v2137
        %v2139 = vpop.xlane.xlu0 %2138
        %v2140 = vadd.f32 %v2000, %v2001
        %v2141 = vadd.f32 %v2140, %v2002
        %v2142 = vadd.f32 %v2141, %v2003
        %2143 = vadd.xlane.f32.xlu0 %v2142
        %v2144 = vpop.xlane.xlu0 %2143
        %v2145 = vadd.f32 %v2004, %v2005
        %v2146 = vadd.f32 %v2145, %v2006
        %v2147 = vadd.f32 %v2146, %v2007
        %2148 = vadd.xlane.f32.xlu0 %v2147
        %v2149 = vpop.xlane.xlu0 %2148
        %v2150 = vadd.f32 %v2008, %v2009
        %v2151 = vadd.f32 %v2150, %v2010
        %v2152 = vadd.f32 %v2151, %v2011
        %2153 = vadd.xlane.f32.xlu0 %v2152
        %v2154 = vpop.xlane.xlu0 %2153
        %v2155 = vadd.f32 %v2012, %v2013
        %v2156 = vadd.f32 %v2155, %v2014
        %v2157 = vadd.f32 %v2156, %v2015
        %2158 = vadd.xlane.f32.xlu0 %v2157
        %v2159 = vpop.xlane.xlu0 %2158
        %v2160 = vadd.f32 %v2016, %v2017
        %v2161 = vadd.f32 %v2160, %v2018
        %v2162 = vadd.f32 %v2161, %v2019
        %2163 = vadd.xlane.f32.xlu0 %v2162
        %v2164 = vpop.xlane.xlu0 %2163
        %v2165 = vadd.f32 %v2020, %v2021
        %v2166 = vadd.f32 %v2165, %v2022
        %v2167 = vadd.f32 %v2166, %v2023
        %2168 = vadd.xlane.f32.xlu0 %v2167
        %v2169 = vpop.xlane.xlu0 %2168
        %v2170 = vadd.f32 %v2024, %v2025
        %v2171 = vadd.f32 %v2170, %v2026
        %v2172 = vadd.f32 %v2171, %v2027
        %2173 = vadd.xlane.f32.xlu0 %v2172
        %v2174 = vpop.xlane.xlu0 %2173
        %v2175 = vadd.f32 %v2028, %v2029
        %v2176 = vadd.f32 %v2175, %v2030
        %v2177 = vadd.f32 %v2176, %v2031
        %2178 = vadd.xlane.f32.xlu0 %v2177
        %v2179 = vpop.xlane.xlu0 %2178
        %v2180 = vadd.f32 %v2032, %v2033
        %v2181 = vadd.f32 %v2180, %v2034
        %v2182 = vadd.f32 %v2181, %v2035
        %2183 = vadd.xlane.f32.xlu0 %v2182
        %v2184 = vpop.xlane.xlu0 %2183
        %v2185 = vadd.f32 %v2036, %v2037
        %v2186 = vadd.f32 %v2185, %v2038
        %v2187 = vadd.f32 %v2186, %v2039
        %2188 = vadd.xlane.f32.xlu0 %v2187
        %v2189 = vpop.xlane.xlu0 %2188
        %v2190 = vadd.f32 %v2040, %v2041
        %v2191 = vadd.f32 %v2190, %v2042
        %v2192 = vadd.f32 %v2191, %v2043
        %2193 = vadd.xlane.f32.xlu0 %v2192
        %v2194 = vpop.xlane.xlu0 %2193
        %v2195 = vadd.f32 %v2044, %v2045
        %v2196 = vadd.f32 %v2195, %v2046
        %v2197 = vadd.f32 %v2196, %v2047
        %2198 = vadd.xlane.f32.xlu0 %v2197
        %v2199 = vpop.xlane.xlu0 %2198
        %v2200 = vadd.f32 %v2048, %v2049
        %v2201 = vadd.f32 %v2200, %v2050
        %v2202 = vadd.f32 %v2201, %v2051
        %2203 = vadd.xlane.f32.xlu0 %v2202
        %v2204 = vpop.xlane.xlu0 %2203
        %v2205 = vadd.f32 %v2052, %v2053
        %v2206 = vadd.f32 %v2205, %v2054
        %v2207 = vadd.f32 %v2206, %v2055
        %2208 = vadd.xlane.f32.xlu0 %v2207
        %v2209 = vpop.xlane.xlu0 %2208
        %v2210 = vadd.f32 %v2056, %v2057
        %v2211 = vadd.f32 %v2210, %v2058
        %v2212 = vadd.f32 %v2211, %v2059
        %2213 = vadd.xlane.f32.xlu0 %v2212
        %v2214 = vpop.xlane.xlu0 %2213
        %v2215 = vadd.f32 %v2060, %v2061
        %v2216 = vadd.f32 %v2215, %v2062
        %v2217 = vadd.f32 %v2216, %v2063
        %2218 = vadd.xlane.f32.xlu0 %v2217
        %v2219 = vpop.xlane.xlu0 %2218
        %v2220 = vadd.f32 %v2064, %v2065
        %v2221 = vadd.f32 %v2220, %v2066
        %v2222 = vadd.f32 %v2221, %v2067
        %2223 = vadd.xlane.f32.xlu0 %v2222
        %v2224 = vpop.xlane.xlu0 %2223
        %v2225 = vadd.f32 %v2068, %v2069
        %v2226 = vadd.f32 %v2225, %v2070
        %v2227 = vadd.f32 %v2226, %v2071
        %2228 = vadd.xlane.f32.xlu0 %v2227
        %v2229 = vpop.xlane.xlu0 %2228
        %v2230 = vadd.f32 %v2072, %v2073
        %v2231 = vadd.f32 %v2230, %v2074
        %v2232 = vadd.f32 %v2231, %v2075
        %2233 = vadd.xlane.f32.xlu0 %v2232
        %v2234 = vpop.xlane.xlu0 %2233
        %v2235 = vadd.f32 %v2076, %v2077
        %v2236 = vadd.f32 %v2235, %v2078
        %v2237 = vadd.f32 %v2236, %v2079
        %2238 = vadd.xlane.f32.xlu0 %v2237
        %v2239 = vpop.xlane.xlu0 %2238
        %v2240 = vmul.f32 %v2084, %v1791
        %v2241 = vmul.f32 %v2089, %v1791
        %v2242 = vmul.f32 %v2094, %v1791
        %v2243 = vmul.f32 %v2099, %v1791
        %v2244 = vmul.f32 %v2104, %v1791
        %v2245 = vmul.f32 %v2109, %v1791
        %v2246 = vmul.f32 %v2114, %v1791
        %v2247 = vmul.f32 %v2119, %v1791
        %v2248 = vmul.f32 %v2124, %v1791
        %v2249 = vmul.f32 %v2129, %v1791
        %v2250 = vmul.f32 %v2134, %v1791
        %v2251 = vmul.f32 %v2139, %v1791
        %v2252 = vmul.f32 %v2144, %v1791
        %v2253 = vmul.f32 %v2149, %v1791
        %v2254 = vmul.f32 %v2154, %v1791
        %v2255 = vmul.f32 %v2159, %v1791
        %v2256 = vmul.f32 %v2164, %v1791
        %v2257 = vmul.f32 %v2169, %v1791
        %v2258 = vmul.f32 %v2174, %v1791
        %v2259 = vmul.f32 %v2179, %v1791
        %v2260 = vmul.f32 %v2184, %v1791
        %v2261 = vmul.f32 %v2189, %v1791
        %v2262 = vmul.f32 %v2194, %v1791
        %v2263 = vmul.f32 %v2199, %v1791
        %v2264 = vmul.f32 %v2204, %v1791
        %v2265 = vmul.f32 %v2209, %v1791
        %v2266 = vmul.f32 %v2214, %v1791
        %v2267 = vmul.f32 %v2219, %v1791
        %v2268 = vmul.f32 %v2224, %v1791
        %v2269 = vmul.f32 %v2229, %v1791
        %v2270 = vmul.f32 %v2234, %v1791
        %v2271 = vmul.f32 %v2239, %v1791
        %v2272 = vadd.f32 %v2240, 1e-05
        %v2273 = vadd.f32 %v2241, 1e-05
        %v2274 = vadd.f32 %v2242, 1e-05
        %v2275 = vadd.f32 %v2243, 1e-05
        %v2276 = vadd.f32 %v2244, 1e-05
        %v2277 = vadd.f32 %v2245, 1e-05
        %v2278 = vadd.f32 %v2246, 1e-05
        %v2279 = vadd.f32 %v2247, 1e-05
        %v2280 = vadd.f32 %v2248, 1e-05
        %v2281 = vadd.f32 %v2249, 1e-05
        %v2282 = vadd.f32 %v2250, 1e-05
        %v2283 = vadd.f32 %v2251, 1e-05
        %v2284 = vadd.f32 %v2252, 1e-05
        %v2285 = vadd.f32 %v2253, 1e-05
        %v2286 = vadd.f32 %v2254, 1e-05
        %v2287 = vadd.f32 %v2255, 1e-05
        %v2288 = vadd.f32 %v2256, 1e-05
        %v2289 = vadd.f32 %v2257, 1e-05
        %v2290 = vadd.f32 %v2258, 1e-05
        %v2291 = vadd.f32 %v2259, 1e-05
        %v2292 = vadd.f32 %v2260, 1e-05
        %v2293 = vadd.f32 %v2261, 1e-05
        %v2294 = vadd.f32 %v2262, 1e-05
        %v2295 = vadd.f32 %v2263, 1e-05
        %v2296 = vadd.f32 %v2264, 1e-05
        %v2297 = vadd.f32 %v2265, 1e-05
        %v2298 = vadd.f32 %v2266, 1e-05
        %v2299 = vadd.f32 %v2267, 1e-05
        %v2300 = vadd.f32 %v2268, 1e-05
        %v2301 = vadd.f32 %v2269, 1e-05
        %v2302 = vadd.f32 %v2270, 1e-05
        %v2303 = vadd.f32 %v2271, 1e-05
        %v2304 = vrsqrt.pop %v2272
        %v2305 = vmul.f32 %v2304, %v2272
        %v2306 = vmul.f32 %v2305, %v2304
        %v2307 = vmul.f32 0.5, %v2306
        %v2308 = vsub.f32 1.5, %v2307
        %v2309 = vmul.f32 %v2304, %v2308
        %vm2310 = vweird.f32 %v2272
        %vm2311 = vweird.f32 %v2304
        %vm2312 = vmor %vm2310, %vm2311
        %v2313 = vsel %vm2312, %v2304, %v2309
        %v2314 = vrsqrt.pop %v2273
        %v2315 = vmul.f32 %v2314, %v2273
        %v2316 = vmul.f32 %v2315, %v2314
        %v2317 = vmul.f32 0.5, %v2316
        %v2318 = vsub.f32 1.5, %v2317
        %v2319 = vmul.f32 %v2314, %v2318
        %vm2320 = vweird.f32 %v2273
        %vm2321 = vweird.f32 %v2314
        %vm2322 = vmor %vm2320, %vm2321
        %v2323 = vsel %vm2322, %v2314, %v2319
        %v2324 = vrsqrt.pop %v2274
        %v2325 = vmul.f32 %v2324, %v2274
        %v2326 = vmul.f32 %v2325, %v2324
        %v2327 = vmul.f32 0.5, %v2326
        %v2328 = vsub.f32 1.5, %v2327
        %v2329 = vmul.f32 %v2324, %v2328
        %vm2330 = vweird.f32 %v2274
        %vm2331 = vweird.f32 %v2324
        %vm2332 = vmor %vm2330, %vm2331
        %v2333 = vsel %vm2332, %v2324, %v2329
        %v2334 = vrsqrt.pop %v2275
        %v2335 = vmul.f32 %v2334, %v2275
        %v2336 = vmul.f32 %v2335, %v2334
        %v2337 = vmul.f32 0.5, %v2336
        %v2338 = vsub.f32 1.5, %v2337
        %v2339 = vmul.f32 %v2334, %v2338
        %vm2340 = vweird.f32 %v2275
        %vm2341 = vweird.f32 %v2334
        %vm2342 = vmor %vm2340, %vm2341
        %v2343 = vsel %vm2342, %v2334, %v2339
        %v2344 = vrsqrt.pop %v2276
        %v2345 = vmul.f32 %v2344, %v2276
        %v2346 = vmul.f32 %v2345, %v2344
        %v2347 = vmul.f32 0.5, %v2346
        %v2348 = vsub.f32 1.5, %v2347
        %v2349 = vmul.f32 %v2344, %v2348
        %vm2350 = vweird.f32 %v2276
        %vm2351 = vweird.f32 %v2344
        %vm2352 = vmor %vm2350, %vm2351
        %v2353 = vsel %vm2352, %v2344, %v2349
        %v2354 = vrsqrt.pop %v2277
        %v2355 = vmul.f32 %v2354, %v2277
        %v2356 = vmul.f32 %v2355, %v2354
        %v2357 = vmul.f32 0.5, %v2356
        %v2358 = vsub.f32 1.5, %v2357
        %v2359 = vmul.f32 %v2354, %v2358
        %vm2360 = vweird.f32 %v2277
        %vm2361 = vweird.f32 %v2354
        %vm2362 = vmor %vm2360, %vm2361
        %v2363 = vsel %vm2362, %v2354, %v2359
        %v2364 = vrsqrt.pop %v2278
        %v2365 = vmul.f32 %v2364, %v2278
        %v2366 = vmul.f32 %v2365, %v2364
        %v2367 = vmul.f32 0.5, %v2366
        %v2368 = vsub.f32 1.5, %v2367
        %v2369 = vmul.f32 %v2364, %v2368
        %vm2370 = vweird.f32 %v2278
        %vm2371 = vweird.f32 %v2364
        %vm2372 = vmor %vm2370, %vm2371
        %v2373 = vsel %vm2372, %v2364, %v2369
        %v2374 = vrsqrt.pop %v2279
        %v2375 = vmul.f32 %v2374, %v2279
        %v2376 = vmul.f32 %v2375, %v2374
        %v2377 = vmul.f32 0.5, %v2376
        %v2378 = vsub.f32 1.5, %v2377
        %v2379 = vmul.f32 %v2374, %v2378
        %vm2380 = vweird.f32 %v2279
        %vm2381 = vweird.f32 %v2374
        %vm2382 = vmor %vm2380, %vm2381
        %v2383 = vsel %vm2382, %v2374, %v2379
        %v2384 = vrsqrt.pop %v2280
        %v2385 = vmul.f32 %v2384, %v2280
        %v2386 = vmul.f32 %v2385, %v2384
        %v2387 = vmul.f32 0.5, %v2386
        %v2388 = vsub.f32 1.5, %v2387
        %v2389 = vmul.f32 %v2384, %v2388
        %vm2390 = vweird.f32 %v2280
        %vm2391 = vweird.f32 %v2384
        %vm2392 = vmor %vm2390, %vm2391
        %v2393 = vsel %vm2392, %v2384, %v2389
        %v2394 = vrsqrt.pop %v2281
        %v2395 = vmul.f32 %v2394, %v2281
        %v2396 = vmul.f32 %v2395, %v2394
        %v2397 = vmul.f32 0.5, %v2396
        %v2398 = vsub.f32 1.5, %v2397
        %v2399 = vmul.f32 %v2394, %v2398
        %vm2400 = vweird.f32 %v2281
        %vm2401 = vweird.f32 %v2394
        %vm2402 = vmor %vm2400, %vm2401
        %v2403 = vsel %vm2402, %v2394, %v2399
        %v2404 = vrsqrt.pop %v2282
        %v2405 = vmul.f32 %v2404, %v2282
        %v2406 = vmul.f32 %v2405, %v2404
        %v2407 = vmul.f32 0.5, %v2406
        %v2408 = vsub.f32 1.5, %v2407
        %v2409 = vmul.f32 %v2404, %v2408
        %vm2410 = vweird.f32 %v2282
        %vm2411 = vweird.f32 %v2404
        %vm2412 = vmor %vm2410, %vm2411
        %v2413 = vsel %vm2412, %v2404, %v2409
        %v2414 = vrsqrt.pop %v2283
        %v2415 = vmul.f32 %v2414, %v2283
        %v2416 = vmul.f32 %v2415, %v2414
        %v2417 = vmul.f32 0.5, %v2416
        %v2418 = vsub.f32 1.5, %v2417
        %v2419 = vmul.f32 %v2414, %v2418
        %vm2420 = vweird.f32 %v2283
        %vm2421 = vweird.f32 %v2414
        %vm2422 = vmor %vm2420, %vm2421
        %v2423 = vsel %vm2422, %v2414, %v2419
        %v2424 = vrsqrt.pop %v2284
        %v2425 = vmul.f32 %v2424, %v2284
        %v2426 = vmul.f32 %v2425, %v2424
        %v2427 = vmul.f32 0.5, %v2426
        %v2428 = vsub.f32 1.5, %v2427
        %v2429 = vmul.f32 %v2424, %v2428
        %vm2430 = vweird.f32 %v2284
        %vm2431 = vweird.f32 %v2424
        %vm2432 = vmor %vm2430, %vm2431
        %v2433 = vsel %vm2432, %v2424, %v2429
        %v2434 = vrsqrt.pop %v2285
        %v2435 = vmul.f32 %v2434, %v2285
        %v2436 = vmul.f32 %v2435, %v2434
        %v2437 = vmul.f32 0.5, %v2436
        %v2438 = vsub.f32 1.5, %v2437
        %v2439 = vmul.f32 %v2434, %v2438
        %vm2440 = vweird.f32 %v2285
        %vm2441 = vweird.f32 %v2434
        %vm2442 = vmor %vm2440, %vm2441
        %v2443 = vsel %vm2442, %v2434, %v2439
        %v2444 = vrsqrt.pop %v2286
        %v2445 = vmul.f32 %v2444, %v2286
        %v2446 = vmul.f32 %v2445, %v2444
        %v2447 = vmul.f32 0.5, %v2446
        %v2448 = vsub.f32 1.5, %v2447
        %v2449 = vmul.f32 %v2444, %v2448
        %vm2450 = vweird.f32 %v2286
        %vm2451 = vweird.f32 %v2444
        %vm2452 = vmor %vm2450, %vm2451
        %v2453 = vsel %vm2452, %v2444, %v2449
        %v2454 = vrsqrt.pop %v2287
        %v2455 = vmul.f32 %v2454, %v2287
        %v2456 = vmul.f32 %v2455, %v2454
        %v2457 = vmul.f32 0.5, %v2456
        %v2458 = vsub.f32 1.5, %v2457
        %v2459 = vmul.f32 %v2454, %v2458
        %vm2460 = vweird.f32 %v2287
        %vm2461 = vweird.f32 %v2454
        %vm2462 = vmor %vm2460, %vm2461
        %v2463 = vsel %vm2462, %v2454, %v2459
        %v2464 = vrsqrt.pop %v2288
        %v2465 = vmul.f32 %v2464, %v2288
        %v2466 = vmul.f32 %v2465, %v2464
        %v2467 = vmul.f32 0.5, %v2466
        %v2468 = vsub.f32 1.5, %v2467
        %v2469 = vmul.f32 %v2464, %v2468
        %vm2470 = vweird.f32 %v2288
        %vm2471 = vweird.f32 %v2464
        %vm2472 = vmor %vm2470, %vm2471
        %v2473 = vsel %vm2472, %v2464, %v2469
        %v2474 = vrsqrt.pop %v2289
        %v2475 = vmul.f32 %v2474, %v2289
        %v2476 = vmul.f32 %v2475, %v2474
        %v2477 = vmul.f32 0.5, %v2476
        %v2478 = vsub.f32 1.5, %v2477
        %v2479 = vmul.f32 %v2474, %v2478
        %vm2480 = vweird.f32 %v2289
        %vm2481 = vweird.f32 %v2474
        %vm2482 = vmor %vm2480, %vm2481
        %v2483 = vsel %vm2482, %v2474, %v2479
        %v2484 = vrsqrt.pop %v2290
        %v2485 = vmul.f32 %v2484, %v2290
        %v2486 = vmul.f32 %v2485, %v2484
        %v2487 = vmul.f32 0.5, %v2486
        %v2488 = vsub.f32 1.5, %v2487
        %v2489 = vmul.f32 %v2484, %v2488
        %vm2490 = vweird.f32 %v2290
        %vm2491 = vweird.f32 %v2484
        %vm2492 = vmor %vm2490, %vm2491
        %v2493 = vsel %vm2492, %v2484, %v2489
        %v2494 = vrsqrt.pop %v2291
        %v2495 = vmul.f32 %v2494, %v2291
        %v2496 = vmul.f32 %v2495, %v2494
        %v2497 = vmul.f32 0.5, %v2496
        %v2498 = vsub.f32 1.5, %v2497
        %v2499 = vmul.f32 %v2494, %v2498
        %vm2500 = vweird.f32 %v2291
        %vm2501 = vweird.f32 %v2494
        %vm2502 = vmor %vm2500, %vm2501
        %v2503 = vsel %vm2502, %v2494, %v2499
        %v2504 = vrsqrt.pop %v2292
        %v2505 = vmul.f32 %v2504, %v2292
        %v2506 = vmul.f32 %v2505, %v2504
        %v2507 = vmul.f32 0.5, %v2506
        %v2508 = vsub.f32 1.5, %v2507
        %v2509 = vmul.f32 %v2504, %v2508
        %vm2510 = vweird.f32 %v2292
        %vm2511 = vweird.f32 %v2504
        %vm2512 = vmor %vm2510, %vm2511
        %v2513 = vsel %vm2512, %v2504, %v2509
        %v2514 = vrsqrt.pop %v2293
        %v2515 = vmul.f32 %v2514, %v2293
        %v2516 = vmul.f32 %v2515, %v2514
        %v2517 = vmul.f32 0.5, %v2516
        %v2518 = vsub.f32 1.5, %v2517
        %v2519 = vmul.f32 %v2514, %v2518
        %vm2520 = vweird.f32 %v2293
        %vm2521 = vweird.f32 %v2514
        %vm2522 = vmor %vm2520, %vm2521
        %v2523 = vsel %vm2522, %v2514, %v2519
        %v2524 = vrsqrt.pop %v2294
        %v2525 = vmul.f32 %v2524, %v2294
        %v2526 = vmul.f32 %v2525, %v2524
        %v2527 = vmul.f32 0.5, %v2526
        %v2528 = vsub.f32 1.5, %v2527
        %v2529 = vmul.f32 %v2524, %v2528
        %vm2530 = vweird.f32 %v2294
        %vm2531 = vweird.f32 %v2524
        %vm2532 = vmor %vm2530, %vm2531
        %v2533 = vsel %vm2532, %v2524, %v2529
        %v2534 = vrsqrt.pop %v2295
        %v2535 = vmul.f32 %v2534, %v2295
        %v2536 = vmul.f32 %v2535, %v2534
        %v2537 = vmul.f32 0.5, %v2536
        %v2538 = vsub.f32 1.5, %v2537
        %v2539 = vmul.f32 %v2534, %v2538
        %vm2540 = vweird.f32 %v2295
        %vm2541 = vweird.f32 %v2534
        %vm2542 = vmor %vm2540, %vm2541
        %v2543 = vsel %vm2542, %v2534, %v2539
        %v2544 = vrsqrt.pop %v2296
        %v2545 = vmul.f32 %v2544, %v2296
        %v2546 = vmul.f32 %v2545, %v2544
        %v2547 = vmul.f32 0.5, %v2546
        %v2548 = vsub.f32 1.5, %v2547
        %v2549 = vmul.f32 %v2544, %v2548
        %vm2550 = vweird.f32 %v2296
        %vm2551 = vweird.f32 %v2544
        %vm2552 = vmor %vm2550, %vm2551
        %v2553 = vsel %vm2552, %v2544, %v2549
        %v2554 = vrsqrt.pop %v2297
        %v2555 = vmul.f32 %v2554, %v2297
        %v2556 = vmul.f32 %v2555, %v2554
        %v2557 = vmul.f32 0.5, %v2556
        %v2558 = vsub.f32 1.5, %v2557
        %v2559 = vmul.f32 %v2554, %v2558
        %vm2560 = vweird.f32 %v2297
        %vm2561 = vweird.f32 %v2554
        %vm2562 = vmor %vm2560, %vm2561
        %v2563 = vsel %vm2562, %v2554, %v2559
        %v2564 = vrsqrt.pop %v2298
        %v2565 = vmul.f32 %v2564, %v2298
        %v2566 = vmul.f32 %v2565, %v2564
        %v2567 = vmul.f32 0.5, %v2566
        %v2568 = vsub.f32 1.5, %v2567
        %v2569 = vmul.f32 %v2564, %v2568
        %vm2570 = vweird.f32 %v2298
        %vm2571 = vweird.f32 %v2564
        %vm2572 = vmor %vm2570, %vm2571
        %v2573 = vsel %vm2572, %v2564, %v2569
        %v2574 = vrsqrt.pop %v2299
        %v2575 = vmul.f32 %v2574, %v2299
        %v2576 = vmul.f32 %v2575, %v2574
        %v2577 = vmul.f32 0.5, %v2576
        %v2578 = vsub.f32 1.5, %v2577
        %v2579 = vmul.f32 %v2574, %v2578
        %vm2580 = vweird.f32 %v2299
        %vm2581 = vweird.f32 %v2574
        %vm2582 = vmor %vm2580, %vm2581
        %v2583 = vsel %vm2582, %v2574, %v2579
        %v2584 = vrsqrt.pop %v2300
        %v2585 = vmul.f32 %v2584, %v2300
        %v2586 = vmul.f32 %v2585, %v2584
        %v2587 = vmul.f32 0.5, %v2586
        %v2588 = vsub.f32 1.5, %v2587
        %v2589 = vmul.f32 %v2584, %v2588
        %vm2590 = vweird.f32 %v2300
        %vm2591 = vweird.f32 %v2584
        %vm2592 = vmor %vm2590, %vm2591
        %v2593 = vsel %vm2592, %v2584, %v2589
        %v2594 = vrsqrt.pop %v2301
        %v2595 = vmul.f32 %v2594, %v2301
        %v2596 = vmul.f32 %v2595, %v2594
        %v2597 = vmul.f32 0.5, %v2596
        %v2598 = vsub.f32 1.5, %v2597
        %v2599 = vmul.f32 %v2594, %v2598
        %vm2600 = vweird.f32 %v2301
        %vm2601 = vweird.f32 %v2594
        %vm2602 = vmor %vm2600, %vm2601
        %v2603 = vsel %vm2602, %v2594, %v2599
        %v2604 = vrsqrt.pop %v2302
        %v2605 = vmul.f32 %v2604, %v2302
        %v2606 = vmul.f32 %v2605, %v2604
        %v2607 = vmul.f32 0.5, %v2606
        %v2608 = vsub.f32 1.5, %v2607
        %v2609 = vmul.f32 %v2604, %v2608
        %vm2610 = vweird.f32 %v2302
        %vm2611 = vweird.f32 %v2604
        %vm2612 = vmor %vm2610, %vm2611
        %v2613 = vsel %vm2612, %v2604, %v2609
        %v2614 = vrsqrt.pop %v2303
        %v2615 = vmul.f32 %v2614, %v2303
        %v2616 = vmul.f32 %v2615, %v2614
        %v2617 = vmul.f32 0.5, %v2616
        %v2618 = vsub.f32 1.5, %v2617
        %v2619 = vmul.f32 %v2614, %v2618
        %vm2620 = vweird.f32 %v2303
        %vm2621 = vweird.f32 %v2614
        %vm2622 = vmor %vm2620, %vm2621
        %v2623 = vsel %vm2622, %v2614, %v2619
        %v2624 = vmul.f32 %v1824, %v2313
        %v2625 = vmul.f32 %v1825, %v2313
        %v2626 = vmul.f32 %v1826, %v2313
        %v2627 = vmul.f32 %v1827, %v2313
        %v2628 = vmul.f32 %v1828, %v2323
        %v2629 = vmul.f32 %v1829, %v2323
        %v2630 = vmul.f32 %v1830, %v2323
        %v2631 = vmul.f32 %v1831, %v2323
        %v2632 = vmul.f32 %v1832, %v2333
        %v2633 = vmul.f32 %v1833, %v2333
        %v2634 = vmul.f32 %v1834, %v2333
        %v2635 = vmul.f32 %v1835, %v2333
        %v2636 = vmul.f32 %v1836, %v2343
        %v2637 = vmul.f32 %v1837, %v2343
        %v2638 = vmul.f32 %v1838, %v2343
        %v2639 = vmul.f32 %v1839, %v2343
        %v2640 = vmul.f32 %v1840, %v2353
        %v2641 = vmul.f32 %v1841, %v2353
        %v2642 = vmul.f32 %v1842, %v2353
        %v2643 = vmul.f32 %v1843, %v2353
        %v2644 = vmul.f32 %v1844, %v2363
        %v2645 = vmul.f32 %v1845, %v2363
        %v2646 = vmul.f32 %v1846, %v2363
        %v2647 = vmul.f32 %v1847, %v2363
        %v2648 = vmul.f32 %v1848, %v2373
        %v2649 = vmul.f32 %v1849, %v2373
        %v2650 = vmul.f32 %v1850, %v2373
        %v2651 = vmul.f32 %v1851, %v2373
        %v2652 = vmul.f32 %v1852, %v2383
        %v2653 = vmul.f32 %v1853, %v2383
        %v2654 = vmul.f32 %v1854, %v2383
        %v2655 = vmul.f32 %v1855, %v2383
        %v2656 = vmul.f32 %v1856, %v2393
        %v2657 = vmul.f32 %v1857, %v2393
        %v2658 = vmul.f32 %v1858, %v2393
        %v2659 = vmul.f32 %v1859, %v2393
        %v2660 = vmul.f32 %v1860, %v2403
        %v2661 = vmul.f32 %v1861, %v2403
        %v2662 = vmul.f32 %v1862, %v2403
        %v2663 = vmul.f32 %v1863, %v2403
        %v2664 = vmul.f32 %v1864, %v2413
        %v2665 = vmul.f32 %v1865, %v2413
        %v2666 = vmul.f32 %v1866, %v2413
        %v2667 = vmul.f32 %v1867, %v2413
        %v2668 = vmul.f32 %v1868, %v2423
        %v2669 = vmul.f32 %v1869, %v2423
        %v2670 = vmul.f32 %v1870, %v2423
        %v2671 = vmul.f32 %v1871, %v2423
        %v2672 = vmul.f32 %v1872, %v2433
        %v2673 = vmul.f32 %v1873, %v2433
        %v2674 = vmul.f32 %v1874, %v2433
        %v2675 = vmul.f32 %v1875, %v2433
        %v2676 = vmul.f32 %v1876, %v2443
        %v2677 = vmul.f32 %v1877, %v2443
        %v2678 = vmul.f32 %v1878, %v2443
        %v2679 = vmul.f32 %v1879, %v2443
        %v2680 = vmul.f32 %v1880, %v2453
        %v2681 = vmul.f32 %v1881, %v2453
        %v2682 = vmul.f32 %v1882, %v2453
        %v2683 = vmul.f32 %v1883, %v2453
        %v2684 = vmul.f32 %v1884, %v2463
        %v2685 = vmul.f32 %v1885, %v2463
        %v2686 = vmul.f32 %v1886, %v2463
        %v2687 = vmul.f32 %v1887, %v2463
        %v2688 = vmul.f32 %v1888, %v2473
        %v2689 = vmul.f32 %v1889, %v2473
        %v2690 = vmul.f32 %v1890, %v2473
        %v2691 = vmul.f32 %v1891, %v2473
        %v2692 = vmul.f32 %v1892, %v2483
        %v2693 = vmul.f32 %v1893, %v2483
        %v2694 = vmul.f32 %v1894, %v2483
        %v2695 = vmul.f32 %v1895, %v2483
        %v2696 = vmul.f32 %v1896, %v2493
        %v2697 = vmul.f32 %v1897, %v2493
        %v2698 = vmul.f32 %v1898, %v2493
        %v2699 = vmul.f32 %v1899, %v2493
        %v2700 = vmul.f32 %v1900, %v2503
        %v2701 = vmul.f32 %v1901, %v2503
        %v2702 = vmul.f32 %v1902, %v2503
        %v2703 = vmul.f32 %v1903, %v2503
        %v2704 = vmul.f32 %v1904, %v2513
        %v2705 = vmul.f32 %v1905, %v2513
        %v2706 = vmul.f32 %v1906, %v2513
        %v2707 = vmul.f32 %v1907, %v2513
        %v2708 = vmul.f32 %v1908, %v2523
        %v2709 = vmul.f32 %v1909, %v2523
        %v2710 = vmul.f32 %v1910, %v2523
        %v2711 = vmul.f32 %v1911, %v2523
        %v2712 = vmul.f32 %v1912, %v2533
        %v2713 = vmul.f32 %v1913, %v2533
        %v2714 = vmul.f32 %v1914, %v2533
        %v2715 = vmul.f32 %v1915, %v2533
        %v2716 = vmul.f32 %v1916, %v2543
        %v2717 = vmul.f32 %v1917, %v2543
        %v2718 = vmul.f32 %v1918, %v2543
        %v2719 = vmul.f32 %v1919, %v2543
        %v2720 = vmul.f32 %v1920, %v2553
        %v2721 = vmul.f32 %v1921, %v2553
        %v2722 = vmul.f32 %v1922, %v2553
        %v2723 = vmul.f32 %v1923, %v2553
        %v2724 = vmul.f32 %v1924, %v2563
        %v2725 = vmul.f32 %v1925, %v2563
        %v2726 = vmul.f32 %v1926, %v2563
        %v2727 = vmul.f32 %v1927, %v2563
        %v2728 = vmul.f32 %v1928, %v2573
        %v2729 = vmul.f32 %v1929, %v2573
        %v2730 = vmul.f32 %v1930, %v2573
        %v2731 = vmul.f32 %v1931, %v2573
        %v2732 = vmul.f32 %v1932, %v2583
        %v2733 = vmul.f32 %v1933, %v2583
        %v2734 = vmul.f32 %v1934, %v2583
        %v2735 = vmul.f32 %v1935, %v2583
        %v2736 = vmul.f32 %v1936, %v2593
        %v2737 = vmul.f32 %v1937, %v2593
        %v2738 = vmul.f32 %v1938, %v2593
        %v2739 = vmul.f32 %v1939, %v2593
        %v2740 = vmul.f32 %v1940, %v2603
        %v2741 = vmul.f32 %v1941, %v2603
        %v2742 = vmul.f32 %v1942, %v2603
        %v2743 = vmul.f32 %v1943, %v2603
        %v2744 = vmul.f32 %v1944, %v2613
        %v2745 = vmul.f32 %v1945, %v2613
        %v2746 = vmul.f32 %v1946, %v2613
        %v2747 = vmul.f32 %v1947, %v2613
        %v2748 = vmul.f32 %v1948, %v2623
        %v2749 = vmul.f32 %v1949, %v2623
        %v2750 = vmul.f32 %v1950, %v2623
        %v2751 = vmul.f32 %v1951, %v2623
        %v2752 = vld [vmem:[%s5] sm:$0xf]
        %v2754 = vperm.slane %v2752, 0
        %v2755 = vperm.slane %v2752, 1
        %v2756 = vperm.slane %v2752, 2
        %v2757 = vperm.slane %v2752, 3
        %v2762 = vmul.f32 %v2624, %v2754
        %v2763 = vmul.f32 %v2625, %v2755
        %v2764 = vmul.f32 %v2626, %v2756
        %v2765 = vmul.f32 %v2627, %v2757
        %v2766 = vmul.f32 %v2628, %v2754
        %v2767 = vmul.f32 %v2629, %v2755
        %v2768 = vmul.f32 %v2630, %v2756
        %v2769 = vmul.f32 %v2631, %v2757
        %v2770 = vmul.f32 %v2632, %v2754
        %v2771 = vmul.f32 %v2633, %v2755
        %v2772 = vmul.f32 %v2634, %v2756
        %v2773 = vmul.f32 %v2635, %v2757
        %v2774 = vmul.f32 %v2636, %v2754
        %v2775 = vmul.f32 %v2637, %v2755
        %v2776 = vmul.f32 %v2638, %v2756
        %v2777 = vmul.f32 %v2639, %v2757
        %v2778 = vmul.f32 %v2640, %v2754
        %v2779 = vmul.f32 %v2641, %v2755
        %v2780 = vmul.f32 %v2642, %v2756
        %v2781 = vmul.f32 %v2643, %v2757
        %v2782 = vmul.f32 %v2644, %v2754
        %v2783 = vmul.f32 %v2645, %v2755
        %v2784 = vmul.f32 %v2646, %v2756
        %v2785 = vmul.f32 %v2647, %v2757
        %v2786 = vmul.f32 %v2648, %v2754
        %v2787 = vmul.f32 %v2649, %v2755
        %v2788 = vmul.f32 %v2650, %v2756
        %v2789 = vmul.f32 %v2651, %v2757
        %v2790 = vmul.f32 %v2652, %v2754
        %v2791 = vmul.f32 %v2653, %v2755
        %v2792 = vmul.f32 %v2654, %v2756
        %v2793 = vmul.f32 %v2655, %v2757
        %v2794 = vmul.f32 %v2656, %v2754
        %v2795 = vmul.f32 %v2657, %v2755
        %v2796 = vmul.f32 %v2658, %v2756
        %v2797 = vmul.f32 %v2659, %v2757
        %v2798 = vmul.f32 %v2660, %v2754
        %v2799 = vmul.f32 %v2661, %v2755
        %v2800 = vmul.f32 %v2662, %v2756
        %v2801 = vmul.f32 %v2663, %v2757
        %v2802 = vmul.f32 %v2664, %v2754
        %v2803 = vmul.f32 %v2665, %v2755
        %v2804 = vmul.f32 %v2666, %v2756
        %v2805 = vmul.f32 %v2667, %v2757
        %v2806 = vmul.f32 %v2668, %v2754
        %v2807 = vmul.f32 %v2669, %v2755
        %v2808 = vmul.f32 %v2670, %v2756
        %v2809 = vmul.f32 %v2671, %v2757
        %v2810 = vmul.f32 %v2672, %v2754
        %v2811 = vmul.f32 %v2673, %v2755
        %v2812 = vmul.f32 %v2674, %v2756
        %v2813 = vmul.f32 %v2675, %v2757
        %v2814 = vmul.f32 %v2676, %v2754
        %v2815 = vmul.f32 %v2677, %v2755
        %v2816 = vmul.f32 %v2678, %v2756
        %v2817 = vmul.f32 %v2679, %v2757
        %v2818 = vmul.f32 %v2680, %v2754
        %v2819 = vmul.f32 %v2681, %v2755
        %v2820 = vmul.f32 %v2682, %v2756
        %v2821 = vmul.f32 %v2683, %v2757
        %v2822 = vmul.f32 %v2684, %v2754
        %v2823 = vmul.f32 %v2685, %v2755
        %v2824 = vmul.f32 %v2686, %v2756
        %v2825 = vmul.f32 %v2687, %v2757
        %v2826 = vmul.f32 %v2688, %v2754
        %v2827 = vmul.f32 %v2689, %v2755
        %v2828 = vmul.f32 %v2690, %v2756
        %v2829 = vmul.f32 %v2691, %v2757
        %v2830 = vmul.f32 %v2692, %v2754
        %v2831 = vmul.f32 %v2693, %v2755
        %v2832 = vmul.f32 %v2694, %v2756
        %v2833 = vmul.f32 %v2695, %v2757
        %v2834 = vmul.f32 %v2696, %v2754
        %v2835 = vmul.f32 %v2697, %v2755
        %v2836 = vmul.f32 %v2698, %v2756
        %v2837 = vmul.f32 %v2699, %v2757
        %v2838 = vmul.f32 %v2700, %v2754
        %v2839 = vmul.f32 %v2701, %v2755
        %v2840 = vmul.f32 %v2702, %v2756
        %v2841 = vmul.f32 %v2703, %v2757
        %v2842 = vmul.f32 %v2704, %v2754
        %v2843 = vmul.f32 %v2705, %v2755
        %v2844 = vmul.f32 %v2706, %v2756
        %v2845 = vmul.f32 %v2707, %v2757
        %v2846 = vmul.f32 %v2708, %v2754
        %v2847 = vmul.f32 %v2709, %v2755
        %v2848 = vmul.f32 %v2710, %v2756
        %v2849 = vmul.f32 %v2711, %v2757
        %v2850 = vmul.f32 %v2712, %v2754
        %v2851 = vmul.f32 %v2713, %v2755
        %v2852 = vmul.f32 %v2714, %v2756
        %v2853 = vmul.f32 %v2715, %v2757
        %v2854 = vmul.f32 %v2716, %v2754
        %v2855 = vmul.f32 %v2717, %v2755
        %v2856 = vmul.f32 %v2718, %v2756
        %v2857 = vmul.f32 %v2719, %v2757
        %v2858 = vmul.f32 %v2720, %v2754
        %v2859 = vmul.f32 %v2721, %v2755
        %v2860 = vmul.f32 %v2722, %v2756
        %v2861 = vmul.f32 %v2723, %v2757
        %v2862 = vmul.f32 %v2724, %v2754
        %v2863 = vmul.f32 %v2725, %v2755
        %v2864 = vmul.f32 %v2726, %v2756
        %v2865 = vmul.f32 %v2727, %v2757
        %v2866 = vmul.f32 %v2728, %v2754
        %v2867 = vmul.f32 %v2729, %v2755
        %v2868 = vmul.f32 %v2730, %v2756
        %v2869 = vmul.f32 %v2731, %v2757
        %v2870 = vmul.f32 %v2732, %v2754
        %v2871 = vmul.f32 %v2733, %v2755
        %v2872 = vmul.f32 %v2734, %v2756
        %v2873 = vmul.f32 %v2735, %v2757
        %v2874 = vmul.f32 %v2736, %v2754
        %v2875 = vmul.f32 %v2737, %v2755
        %v2876 = vmul.f32 %v2738, %v2756
        %v2877 = vmul.f32 %v2739, %v2757
        %v2878 = vmul.f32 %v2740, %v2754
        %v2879 = vmul.f32 %v2741, %v2755
        %v2880 = vmul.f32 %v2742, %v2756
        %v2881 = vmul.f32 %v2743, %v2757
        %v2882 = vmul.f32 %v2744, %v2754
        %v2883 = vmul.f32 %v2745, %v2755
        %v2884 = vmul.f32 %v2746, %v2756
        %v2885 = vmul.f32 %v2747, %v2757
        %v2886 = vmul.f32 %v2748, %v2754
        %v2887 = vmul.f32 %v2749, %v2755
        %v2888 = vmul.f32 %v2750, %v2756
        %v2889 = vmul.f32 %v2751, %v2757
        %v2890 = vld [vmem:[%s6] sm:$0xf]
        %v2892 = vperm.slane %v2890, 0
        %v2893 = vperm.slane %v2890, 1
        %v2894 = vperm.slane %v2890, 2
        %v2895 = vperm.slane %v2890, 3
        %v2900 = vadd.f32 %v2762, %v2892
        %v2901 = vadd.f32 %v2763, %v2893
        %v2902 = vadd.f32 %v2764, %v2894
        %v2903 = vadd.f32 %v2765, %v2895
        %v2904 = vadd.f32 %v2766, %v2892
        %v2905 = vadd.f32 %v2767, %v2893
        %v2906 = vadd.f32 %v2768, %v2894
        %v2907 = vadd.f32 %v2769, %v2895
        %v2908 = vadd.f32 %v2770, %v2892
        %v2909 = vadd.f32 %v2771, %v2893
        %v2910 = vadd.f32 %v2772, %v2894
        %v2911 = vadd.f32 %v2773, %v2895
        %v2912 = vadd.f32 %v2774, %v2892
        %v2913 = vadd.f32 %v2775, %v2893
        %v2914 = vadd.f32 %v2776, %v2894
        %v2915 = vadd.f32 %v2777, %v2895
        %v2916 = vadd.f32 %v2778, %v2892
        %v2917 = vadd.f32 %v2779, %v2893
        %v2918 = vadd.f32 %v2780, %v2894
        %v2919 = vadd.f32 %v2781, %v2895
        %v2920 = vadd.f32 %v2782, %v2892
        %v2921 = vadd.f32 %v2783, %v2893
        %v2922 = vadd.f32 %v2784, %v2894
        %v2923 = vadd.f32 %v2785, %v2895
        %v2924 = vadd.f32 %v2786, %v2892
        %v2925 = vadd.f32 %v2787, %v2893
        %v2926 = vadd.f32 %v2788, %v2894
        %v2927 = vadd.f32 %v2789, %v2895
        %v2928 = vadd.f32 %v2790, %v2892
        %v2929 = vadd.f32 %v2791, %v2893
        %v2930 = vadd.f32 %v2792, %v2894
        %v2931 = vadd.f32 %v2793, %v2895
        %v2932 = vadd.f32 %v2794, %v2892
        %v2933 = vadd.f32 %v2795, %v2893
        %v2934 = vadd.f32 %v2796, %v2894
        %v2935 = vadd.f32 %v2797, %v2895
        %v2936 = vadd.f32 %v2798, %v2892
        %v2937 = vadd.f32 %v2799, %v2893
        %v2938 = vadd.f32 %v2800, %v2894
        %v2939 = vadd.f32 %v2801, %v2895
        %v2940 = vadd.f32 %v2802, %v2892
        %v2941 = vadd.f32 %v2803, %v2893
        %v2942 = vadd.f32 %v2804, %v2894
        %v2943 = vadd.f32 %v2805, %v2895
        %v2944 = vadd.f32 %v2806, %v2892
        %v2945 = vadd.f32 %v2807, %v2893
        %v2946 = vadd.f32 %v2808, %v2894
        %v2947 = vadd.f32 %v2809, %v2895
        %v2948 = vadd.f32 %v2810, %v2892
        %v2949 = vadd.f32 %v2811, %v2893
        %v2950 = vadd.f32 %v2812, %v2894
        %v2951 = vadd.f32 %v2813, %v2895
        %v2952 = vadd.f32 %v2814, %v2892
        %v2953 = vadd.f32 %v2815, %v2893
        %v2954 = vadd.f32 %v2816, %v2894
        %v2955 = vadd.f32 %v2817, %v2895
        %v2956 = vadd.f32 %v2818, %v2892
        %v2957 = vadd.f32 %v2819, %v2893
        %v2958 = vadd.f32 %v2820, %v2894
        %v2959 = vadd.f32 %v2821, %v2895
        %v2960 = vadd.f32 %v2822, %v2892
        %v2961 = vadd.f32 %v2823, %v2893
        %v2962 = vadd.f32 %v2824, %v2894
        %v2963 = vadd.f32 %v2825, %v2895
        %v2964 = vadd.f32 %v2826, %v2892
        %v2965 = vadd.f32 %v2827, %v2893
        %v2966 = vadd.f32 %v2828, %v2894
        %v2967 = vadd.f32 %v2829, %v2895
        %v2968 = vadd.f32 %v2830, %v2892
        %v2969 = vadd.f32 %v2831, %v2893
        %v2970 = vadd.f32 %v2832, %v2894
        %v2971 = vadd.f32 %v2833, %v2895
        %v2972 = vadd.f32 %v2834, %v2892
        %v2973 = vadd.f32 %v2835, %v2893
        %v2974 = vadd.f32 %v2836, %v2894
        %v2975 = vadd.f32 %v2837, %v2895
        %v2976 = vadd.f32 %v2838, %v2892
        %v2977 = vadd.f32 %v2839, %v2893
        %v2978 = vadd.f32 %v2840, %v2894
        %v2979 = vadd.f32 %v2841, %v2895
        %v2980 = vadd.f32 %v2842, %v2892
        %v2981 = vadd.f32 %v2843, %v2893
        %v2982 = vadd.f32 %v2844, %v2894
        %v2983 = vadd.f32 %v2845, %v2895
        %v2984 = vadd.f32 %v2846, %v2892
        %v2985 = vadd.f32 %v2847, %v2893
        %v2986 = vadd.f32 %v2848, %v2894
        %v2987 = vadd.f32 %v2849, %v2895
        %v2988 = vadd.f32 %v2850, %v2892
        %v2989 = vadd.f32 %v2851, %v2893
        %v2990 = vadd.f32 %v2852, %v2894
        %v2991 = vadd.f32 %v2853, %v2895
        %v2992 = vadd.f32 %v2854, %v2892
        %v2993 = vadd.f32 %v2855, %v2893
        %v2994 = vadd.f32 %v2856, %v2894
        %v2995 = vadd.f32 %v2857, %v2895
        %v2996 = vadd.f32 %v2858, %v2892
        %v2997 = vadd.f32 %v2859, %v2893
        %v2998 = vadd.f32 %v2860, %v2894
        %v2999 = vadd.f32 %v2861, %v2895
        %v3000 = vadd.f32 %v2862, %v2892
        %v3001 = vadd.f32 %v2863, %v2893
        %v3002 = vadd.f32 %v2864, %v2894
        %v3003 = vadd.f32 %v2865, %v2895
        %v3004 = vadd.f32 %v2866, %v2892
        %v3005 = vadd.f32 %v2867, %v2893
        %v3006 = vadd.f32 %v2868, %v2894
        %v3007 = vadd.f32 %v2869, %v2895
        %v3008 = vadd.f32 %v2870, %v2892
        %v3009 = vadd.f32 %v2871, %v2893
        %v3010 = vadd.f32 %v2872, %v2894
        %v3011 = vadd.f32 %v2873, %v2895
        %v3012 = vadd.f32 %v2874, %v2892
        %v3013 = vadd.f32 %v2875, %v2893
        %v3014 = vadd.f32 %v2876, %v2894
        %v3015 = vadd.f32 %v2877, %v2895
        %v3016 = vadd.f32 %v2878, %v2892
        %v3017 = vadd.f32 %v2879, %v2893
        %v3018 = vadd.f32 %v2880, %v2894
        %v3019 = vadd.f32 %v2881, %v2895
        %v3020 = vadd.f32 %v2882, %v2892
        %v3021 = vadd.f32 %v2883, %v2893
        %v3022 = vadd.f32 %v2884, %v2894
        %v3023 = vadd.f32 %v2885, %v2895
        %v3024 = vadd.f32 %v2886, %v2892
        %v3025 = vadd.f32 %v2887, %v2893
        %v3026 = vadd.f32 %v2888, %v2894
        %v3027 = vadd.f32 %v2889, %v2895
        %v3028 = vmax.f32 %v2900, 0.0
        %v3029 = vmax.f32 %v2901, 0.0
        %v3030 = vmax.f32 %v2902, 0.0
        %v3031 = vmax.f32 %v2903, 0.0
        %v3032 = vmax.f32 %v2904, 0.0
        %v3033 = vmax.f32 %v2905, 0.0
        %v3034 = vmax.f32 %v2906, 0.0
        %v3035 = vmax.f32 %v2907, 0.0
        %v3036 = vmax.f32 %v2908, 0.0
        %v3037 = vmax.f32 %v2909, 0.0
        %v3038 = vmax.f32 %v2910, 0.0
        %v3039 = vmax.f32 %v2911, 0.0
        %v3040 = vmax.f32 %v2912, 0.0
        %v3041 = vmax.f32 %v2913, 0.0
        %v3042 = vmax.f32 %v2914, 0.0
        %v3043 = vmax.f32 %v2915, 0.0
        %v3044 = vmax.f32 %v2916, 0.0
        %v3045 = vmax.f32 %v2917, 0.0
        %v3046 = vmax.f32 %v2918, 0.0
        %v3047 = vmax.f32 %v2919, 0.0
        %v3048 = vmax.f32 %v2920, 0.0
        %v3049 = vmax.f32 %v2921, 0.0
        %v3050 = vmax.f32 %v2922, 0.0
        %v3051 = vmax.f32 %v2923, 0.0
        %v3052 = vmax.f32 %v2924, 0.0
        %v3053 = vmax.f32 %v2925, 0.0
        %v3054 = vmax.f32 %v2926, 0.0
        %v3055 = vmax.f32 %v2927, 0.0
        %v3056 = vmax.f32 %v2928, 0.0
        %v3057 = vmax.f32 %v2929, 0.0
        %v3058 = vmax.f32 %v2930, 0.0
        %v3059 = vmax.f32 %v2931, 0.0
        %v3060 = vmax.f32 %v2932, 0.0
        %v3061 = vmax.f32 %v2933, 0.0
        %v3062 = vmax.f32 %v2934, 0.0
        %v3063 = vmax.f32 %v2935, 0.0
        %v3064 = vmax.f32 %v2936, 0.0
        %v3065 = vmax.f32 %v2937, 0.0
        %v3066 = vmax.f32 %v2938, 0.0
        %v3067 = vmax.f32 %v2939, 0.0
        %v3068 = vmax.f32 %v2940, 0.0
        %v3069 = vmax.f32 %v2941, 0.0
        %v3070 = vmax.f32 %v2942, 0.0
        %v3071 = vmax.f32 %v2943, 0.0
        %v3072 = vmax.f32 %v2944, 0.0
        %v3073 = vmax.f32 %v2945, 0.0
        %v3074 = vmax.f32 %v2946, 0.0
        %v3075 = vmax.f32 %v2947, 0.0
        %v3076 = vmax.f32 %v2948, 0.0
        %v3077 = vmax.f32 %v2949, 0.0
        %v3078 = vmax.f32 %v2950, 0.0
        %v3079 = vmax.f32 %v2951, 0.0
        %v3080 = vmax.f32 %v2952, 0.0
        %v3081 = vmax.f32 %v2953, 0.0
        %v3082 = vmax.f32 %v2954, 0.0
        %v3083 = vmax.f32 %v2955, 0.0
        %v3084 = vmax.f32 %v2956, 0.0
        %v3085 = vmax.f32 %v2957, 0.0
        %v3086 = vmax.f32 %v2958, 0.0
        %v3087 = vmax.f32 %v2959, 0.0
        %v3088 = vmax.f32 %v2960, 0.0
        %v3089 = vmax.f32 %v2961, 0.0
        %v3090 = vmax.f32 %v2962, 0.0
        %v3091 = vmax.f32 %v2963, 0.0
        %v3092 = vmax.f32 %v2964, 0.0
        %v3093 = vmax.f32 %v2965, 0.0
        %v3094 = vmax.f32 %v2966, 0.0
        %v3095 = vmax.f32 %v2967, 0.0
        %v3096 = vmax.f32 %v2968, 0.0
        %v3097 = vmax.f32 %v2969, 0.0
        %v3098 = vmax.f32 %v2970, 0.0
        %v3099 = vmax.f32 %v2971, 0.0
        %v3100 = vmax.f32 %v2972, 0.0
        %v3101 = vmax.f32 %v2973, 0.0
        %v3102 = vmax.f32 %v2974, 0.0
        %v3103 = vmax.f32 %v2975, 0.0
        %v3104 = vmax.f32 %v2976, 0.0
        %v3105 = vmax.f32 %v2977, 0.0
        %v3106 = vmax.f32 %v2978, 0.0
        %v3107 = vmax.f32 %v2979, 0.0
        %v3108 = vmax.f32 %v2980, 0.0
        %v3109 = vmax.f32 %v2981, 0.0
        %v3110 = vmax.f32 %v2982, 0.0
        %v3111 = vmax.f32 %v2983, 0.0
        %v3112 = vmax.f32 %v2984, 0.0
        %v3113 = vmax.f32 %v2985, 0.0
        %v3114 = vmax.f32 %v2986, 0.0
        %v3115 = vmax.f32 %v2987, 0.0
        %v3116 = vmax.f32 %v2988, 0.0
        %v3117 = vmax.f32 %v2989, 0.0
        %v3118 = vmax.f32 %v2990, 0.0
        %v3119 = vmax.f32 %v2991, 0.0
        %v3120 = vmax.f32 %v2992, 0.0
        %v3121 = vmax.f32 %v2993, 0.0
        %v3122 = vmax.f32 %v2994, 0.0
        %v3123 = vmax.f32 %v2995, 0.0
        %v3124 = vmax.f32 %v2996, 0.0
        %v3125 = vmax.f32 %v2997, 0.0
        %v3126 = vmax.f32 %v2998, 0.0
        %v3127 = vmax.f32 %v2999, 0.0
        %v3128 = vmax.f32 %v3000, 0.0
        %v3129 = vmax.f32 %v3001, 0.0
        %v3130 = vmax.f32 %v3002, 0.0
        %v3131 = vmax.f32 %v3003, 0.0
        %v3132 = vmax.f32 %v3004, 0.0
        %v3133 = vmax.f32 %v3005, 0.0
        %v3134 = vmax.f32 %v3006, 0.0
        %v3135 = vmax.f32 %v3007, 0.0
        %v3136 = vmax.f32 %v3008, 0.0
        %v3137 = vmax.f32 %v3009, 0.0
        %v3138 = vmax.f32 %v3010, 0.0
        %v3139 = vmax.f32 %v3011, 0.0
        %v3140 = vmax.f32 %v3012, 0.0
        %v3141 = vmax.f32 %v3013, 0.0
        %v3142 = vmax.f32 %v3014, 0.0
        %v3143 = vmax.f32 %v3015, 0.0
        %v3144 = vmax.f32 %v3016, 0.0
        %v3145 = vmax.f32 %v3017, 0.0
        %v3146 = vmax.f32 %v3018, 0.0
        %v3147 = vmax.f32 %v3019, 0.0
        %v3148 = vmax.f32 %v3020, 0.0
        %v3149 = vmax.f32 %v3021, 0.0
        %v3150 = vmax.f32 %v3022, 0.0
        %v3151 = vmax.f32 %v3023, 0.0
        %v3152 = vmax.f32 %v3024, 0.0
        %v3153 = vmax.f32 %v3025, 0.0
        %v3154 = vmax.f32 %v3026, 0.0
        %v3155 = vmax.f32 %v3027, 0.0
        %v3156 = vld [vmem:[%s7] sm:$0xf]
        %v3158 = vperm.slane %v3156, 0
        %v3159 = vperm.slane %v3156, 1
        %v3160 = vperm.slane %v3156, 2
        %v3161 = vperm.slane %v3156, 3
        %v3166 = vmul.f32 %v3028, %v3158
        %v3167 = vmul.f32 %v3029, %v3159
        %v3168 = vmul.f32 %v3030, %v3160
        %v3169 = vmul.f32 %v3031, %v3161
        %v3170 = vmul.f32 %v3032, %v3158
        %v3171 = vmul.f32 %v3033, %v3159
        %v3172 = vmul.f32 %v3034, %v3160
        %v3173 = vmul.f32 %v3035, %v3161
        %v3174 = vmul.f32 %v3036, %v3158
        %v3175 = vmul.f32 %v3037, %v3159
        %v3176 = vmul.f32 %v3038, %v3160
        %v3177 = vmul.f32 %v3039, %v3161
        %v3178 = vmul.f32 %v3040, %v3158
        %v3179 = vmul.f32 %v3041, %v3159
        %v3180 = vmul.f32 %v3042, %v3160
        %v3181 = vmul.f32 %v3043, %v3161
        %v3182 = vmul.f32 %v3044, %v3158
        %v3183 = vmul.f32 %v3045, %v3159
        %v3184 = vmul.f32 %v3046, %v3160
        %v3185 = vmul.f32 %v3047, %v3161
        %v3186 = vmul.f32 %v3048, %v3158
        %v3187 = vmul.f32 %v3049, %v3159
        %v3188 = vmul.f32 %v3050, %v3160
        %v3189 = vmul.f32 %v3051, %v3161
        %v3190 = vmul.f32 %v3052, %v3158
        %v3191 = vmul.f32 %v3053, %v3159
        %v3192 = vmul.f32 %v3054, %v3160
        %v3193 = vmul.f32 %v3055, %v3161
        %v3194 = vmul.f32 %v3056, %v3158
        %v3195 = vmul.f32 %v3057, %v3159
        %v3196 = vmul.f32 %v3058, %v3160
        %v3197 = vmul.f32 %v3059, %v3161
        %v3198 = vmul.f32 %v3060, %v3158
        %v3199 = vmul.f32 %v3061, %v3159
        %v3200 = vmul.f32 %v3062, %v3160
        %v3201 = vmul.f32 %v3063, %v3161
        %v3202 = vmul.f32 %v3064, %v3158
        %v3203 = vmul.f32 %v3065, %v3159
        %v3204 = vmul.f32 %v3066, %v3160
        %v3205 = vmul.f32 %v3067, %v3161
        %v3206 = vmul.f32 %v3068, %v3158
        %v3207 = vmul.f32 %v3069, %v3159
        %v3208 = vmul.f32 %v3070, %v3160
        %v3209 = vmul.f32 %v3071, %v3161
        %v3210 = vmul.f32 %v3072, %v3158
        %v3211 = vmul.f32 %v3073, %v3159
        %v3212 = vmul.f32 %v3074, %v3160
        %v3213 = vmul.f32 %v3075, %v3161
        %v3214 = vmul.f32 %v3076, %v3158
        %v3215 = vmul.f32 %v3077, %v3159
        %v3216 = vmul.f32 %v3078, %v3160
        %v3217 = vmul.f32 %v3079, %v3161
        %v3218 = vmul.f32 %v3080, %v3158
        %v3219 = vmul.f32 %v3081, %v3159
        %v3220 = vmul.f32 %v3082, %v3160
        %v3221 = vmul.f32 %v3083, %v3161
        %v3222 = vmul.f32 %v3084, %v3158
        %v3223 = vmul.f32 %v3085, %v3159
        %v3224 = vmul.f32 %v3086, %v3160
        %v3225 = vmul.f32 %v3087, %v3161
        %v3226 = vmul.f32 %v3088, %v3158
        %v3227 = vmul.f32 %v3089, %v3159
        %v3228 = vmul.f32 %v3090, %v3160
        %v3229 = vmul.f32 %v3091, %v3161
        %v3230 = vmul.f32 %v3092, %v3158
        %v3231 = vmul.f32 %v3093, %v3159
        %v3232 = vmul.f32 %v3094, %v3160
        %v3233 = vmul.f32 %v3095, %v3161
        %v3234 = vmul.f32 %v3096, %v3158
        %v3235 = vmul.f32 %v3097, %v3159
        %v3236 = vmul.f32 %v3098, %v3160
        %v3237 = vmul.f32 %v3099, %v3161
        %v3238 = vmul.f32 %v3100, %v3158
        %v3239 = vmul.f32 %v3101, %v3159
        %v3240 = vmul.f32 %v3102, %v3160
        %v3241 = vmul.f32 %v3103, %v3161
        %v3242 = vmul.f32 %v3104, %v3158
        %v3243 = vmul.f32 %v3105, %v3159
        %v3244 = vmul.f32 %v3106, %v3160
        %v3245 = vmul.f32 %v3107, %v3161
        %v3246 = vmul.f32 %v3108, %v3158
        %v3247 = vmul.f32 %v3109, %v3159
        %v3248 = vmul.f32 %v3110, %v3160
        %v3249 = vmul.f32 %v3111, %v3161
        %v3250 = vmul.f32 %v3112, %v3158
        %v3251 = vmul.f32 %v3113, %v3159
        %v3252 = vmul.f32 %v3114, %v3160
        %v3253 = vmul.f32 %v3115, %v3161
        %v3254 = vmul.f32 %v3116, %v3158
        %v3255 = vmul.f32 %v3117, %v3159
        %v3256 = vmul.f32 %v3118, %v3160
        %v3257 = vmul.f32 %v3119, %v3161
        %v3258 = vmul.f32 %v3120, %v3158
        %v3259 = vmul.f32 %v3121, %v3159
        %v3260 = vmul.f32 %v3122, %v3160
        %v3261 = vmul.f32 %v3123, %v3161
        %v3262 = vmul.f32 %v3124, %v3158
        %v3263 = vmul.f32 %v3125, %v3159
        %v3264 = vmul.f32 %v3126, %v3160
        %v3265 = vmul.f32 %v3127, %v3161
        %v3266 = vmul.f32 %v3128, %v3158
        %v3267 = vmul.f32 %v3129, %v3159
        %v3268 = vmul.f32 %v3130, %v3160
        %v3269 = vmul.f32 %v3131, %v3161
        %v3270 = vmul.f32 %v3132, %v3158
        %v3271 = vmul.f32 %v3133, %v3159
        %v3272 = vmul.f32 %v3134, %v3160
        %v3273 = vmul.f32 %v3135, %v3161
        %v3274 = vmul.f32 %v3136, %v3158
        %v3275 = vmul.f32 %v3137, %v3159
        %v3276 = vmul.f32 %v3138, %v3160
        %v3277 = vmul.f32 %v3139, %v3161
        %v3278 = vmul.f32 %v3140, %v3158
        %v3279 = vmul.f32 %v3141, %v3159
        %v3280 = vmul.f32 %v3142, %v3160
        %v3281 = vmul.f32 %v3143, %v3161
        %v3282 = vmul.f32 %v3144, %v3158
        %v3283 = vmul.f32 %v3145, %v3159
        %v3284 = vmul.f32 %v3146, %v3160
        %v3285 = vmul.f32 %v3147, %v3161
        %v3286 = vmul.f32 %v3148, %v3158
        %v3287 = vmul.f32 %v3149, %v3159
        %v3288 = vmul.f32 %v3150, %v3160
        %v3289 = vmul.f32 %v3151, %v3161
        %v3290 = vmul.f32 %v3152, %v3158
        %v3291 = vmul.f32 %v3153, %v3159
        %v3292 = vmul.f32 %v3154, %v3160
        %v3293 = vmul.f32 %v3155, %v3161
        %v3294 = vadd.f32 %v3166, %v3167
        %v3295 = vadd.f32 %v3294, %v3168
        %v3296 = vadd.f32 %v3295, %v3169
        %3297 = vadd.xlane.f32.xlu0 %v3296
        %v3298 = vpop.xlane.xlu0 %3297
        %v3299 = vadd.f32 %v3170, %v3171
        %v3300 = vadd.f32 %v3299, %v3172
        %v3301 = vadd.f32 %v3300, %v3173
        %3302 = vadd.xlane.f32.xlu0 %v3301
        %v3303 = vpop.xlane.xlu0 %3302
        %v3304 = vadd.f32 %v3174, %v3175
        %v3305 = vadd.f32 %v3304, %v3176
        %v3306 = vadd.f32 %v3305, %v3177
        %3307 = vadd.xlane.f32.xlu0 %v3306
        %v3308 = vpop.xlane.xlu0 %3307
        %v3309 = vadd.f32 %v3178, %v3179
        %v3310 = vadd.f32 %v3309, %v3180
        %v3311 = vadd.f32 %v3310, %v3181
        %3312 = vadd.xlane.f32.xlu0 %v3311
        %v3313 = vpop.xlane.xlu0 %3312
        %v3314 = vadd.f32 %v3182, %v3183
        %v3315 = vadd.f32 %v3314, %v3184
        %v3316 = vadd.f32 %v3315, %v3185
        %3317 = vadd.xlane.f32.xlu0 %v3316
        %v3318 = vpop.xlane.xlu0 %3317
        %v3319 = vadd.f32 %v3186, %v3187
        %v3320 = vadd.f32 %v3319, %v3188
        %v3321 = vadd.f32 %v3320, %v3189
        %3322 = vadd.xlane.f32.xlu0 %v3321
        %v3323 = vpop.xlane.xlu0 %3322
        %v3324 = vadd.f32 %v3190, %v3191
        %v3325 = vadd.f32 %v3324, %v3192
        %v3326 = vadd.f32 %v3325, %v3193
        %3327 = vadd.xlane.f32.xlu0 %v3326
        %v3328 = vpop.xlane.xlu0 %3327
        %v3329 = vadd.f32 %v3194, %v3195
        %v3330 = vadd.f32 %v3329, %v3196
        %v3331 = vadd.f32 %v3330, %v3197
        %3332 = vadd.xlane.f32.xlu0 %v3331
        %v3333 = vpop.xlane.xlu0 %3332
        %v3334 = vadd.f32 %v3198, %v3199
        %v3335 = vadd.f32 %v3334, %v3200
        %v3336 = vadd.f32 %v3335, %v3201
        %3337 = vadd.xlane.f32.xlu0 %v3336
        %v3338 = vpop.xlane.xlu0 %3337
        %v3339 = vadd.f32 %v3202, %v3203
        %v3340 = vadd.f32 %v3339, %v3204
        %v3341 = vadd.f32 %v3340, %v3205
        %3342 = vadd.xlane.f32.xlu0 %v3341
        %v3343 = vpop.xlane.xlu0 %3342
        %v3344 = vadd.f32 %v3206, %v3207
        %v3345 = vadd.f32 %v3344, %v3208
        %v3346 = vadd.f32 %v3345, %v3209
        %3347 = vadd.xlane.f32.xlu0 %v3346
        %v3348 = vpop.xlane.xlu0 %3347
        %v3349 = vadd.f32 %v3210, %v3211
        %v3350 = vadd.f32 %v3349, %v3212
        %v3351 = vadd.f32 %v3350, %v3213
        %3352 = vadd.xlane.f32.xlu0 %v3351
        %v3353 = vpop.xlane.xlu0 %3352
        %v3354 = vadd.f32 %v3214, %v3215
        %v3355 = vadd.f32 %v3354, %v3216
        %v3356 = vadd.f32 %v3355, %v3217
        %3357 = vadd.xlane.f32.xlu0 %v3356
        %v3358 = vpop.xlane.xlu0 %3357
        %v3359 = vadd.f32 %v3218, %v3219
        %v3360 = vadd.f32 %v3359, %v3220
        %v3361 = vadd.f32 %v3360, %v3221
        %3362 = vadd.xlane.f32.xlu0 %v3361
        %v3363 = vpop.xlane.xlu0 %3362
        %v3364 = vadd.f32 %v3222, %v3223
        %v3365 = vadd.f32 %v3364, %v3224
        %v3366 = vadd.f32 %v3365, %v3225
        %3367 = vadd.xlane.f32.xlu0 %v3366
        %v3368 = vpop.xlane.xlu0 %3367
        %v3369 = vadd.f32 %v3226, %v3227
        %v3370 = vadd.f32 %v3369, %v3228
        %v3371 = vadd.f32 %v3370, %v3229
        %3372 = vadd.xlane.f32.xlu0 %v3371
        %v3373 = vpop.xlane.xlu0 %3372
        %v3374 = vadd.f32 %v3230, %v3231
        %v3375 = vadd.f32 %v3374, %v3232
        %v3376 = vadd.f32 %v3375, %v3233
        %3377 = vadd.xlane.f32.xlu0 %v3376
        %v3378 = vpop.xlane.xlu0 %3377
        %v3379 = vadd.f32 %v3234, %v3235
        %v3380 = vadd.f32 %v3379, %v3236
        %v3381 = vadd.f32 %v3380, %v3237
        %3382 = vadd.xlane.f32.xlu0 %v3381
        %v3383 = vpop.xlane.xlu0 %3382
        %v3384 = vadd.f32 %v3238, %v3239
        %v3385 = vadd.f32 %v3384, %v3240
        %v3386 = vadd.f32 %v3385, %v3241
        %3387 = vadd.xlane.f32.xlu0 %v3386
        %v3388 = vpop.xlane.xlu0 %3387
        %v3389 = vadd.f32 %v3242, %v3243
        %v3390 = vadd.f32 %v3389, %v3244
        %v3391 = vadd.f32 %v3390, %v3245
        %3392 = vadd.xlane.f32.xlu0 %v3391
        %v3393 = vpop.xlane.xlu0 %3392
        %v3394 = vadd.f32 %v3246, %v3247
        %v3395 = vadd.f32 %v3394, %v3248
        %v3396 = vadd.f32 %v3395, %v3249
        %3397 = vadd.xlane.f32.xlu0 %v3396
        %v3398 = vpop.xlane.xlu0 %3397
        %v3399 = vadd.f32 %v3250, %v3251
        %v3400 = vadd.f32 %v3399, %v3252
        %v3401 = vadd.f32 %v3400, %v3253
        %3402 = vadd.xlane.f32.xlu0 %v3401
        %v3403 = vpop.xlane.xlu0 %3402
        %v3404 = vadd.f32 %v3254, %v3255
        %v3405 = vadd.f32 %v3404, %v3256
        %v3406 = vadd.f32 %v3405, %v3257
        %3407 = vadd.xlane.f32.xlu0 %v3406
        %v3408 = vpop.xlane.xlu0 %3407
        %v3409 = vadd.f32 %v3258, %v3259
        %v3410 = vadd.f32 %v3409, %v3260
        %v3411 = vadd.f32 %v3410, %v3261
        %3412 = vadd.xlane.f32.xlu0 %v3411
        %v3413 = vpop.xlane.xlu0 %3412
        %v3414 = vadd.f32 %v3262, %v3263
        %v3415 = vadd.f32 %v3414, %v3264
        %v3416 = vadd.f32 %v3415, %v3265
        %3417 = vadd.xlane.f32.xlu0 %v3416
        %v3418 = vpop.xlane.xlu0 %3417
        %v3419 = vadd.f32 %v3266, %v3267
        %v3420 = vadd.f32 %v3419, %v3268
        %v3421 = vadd.f32 %v3420, %v3269
        %3422 = vadd.xlane.f32.xlu0 %v3421
        %v3423 = vpop.xlane.xlu0 %3422
        %v3424 = vadd.f32 %v3270, %v3271
        %v3425 = vadd.f32 %v3424, %v3272
        %v3426 = vadd.f32 %v3425, %v3273
        %3427 = vadd.xlane.f32.xlu0 %v3426
        %v3428 = vpop.xlane.xlu0 %3427
        %v3429 = vadd.f32 %v3274, %v3275
        %v3430 = vadd.f32 %v3429, %v3276
        %v3431 = vadd.f32 %v3430, %v3277
        %3432 = vadd.xlane.f32.xlu0 %v3431
        %v3433 = vpop.xlane.xlu0 %3432
        %v3434 = vadd.f32 %v3278, %v3279
        %v3435 = vadd.f32 %v3434, %v3280
        %v3436 = vadd.f32 %v3435, %v3281
        %3437 = vadd.xlane.f32.xlu0 %v3436
        %v3438 = vpop.xlane.xlu0 %3437
        %v3439 = vadd.f32 %v3282, %v3283
        %v3440 = vadd.f32 %v3439, %v3284
        %v3441 = vadd.f32 %v3440, %v3285
        %3442 = vadd.xlane.f32.xlu0 %v3441
        %v3443 = vpop.xlane.xlu0 %3442
        %v3444 = vadd.f32 %v3286, %v3287
        %v3445 = vadd.f32 %v3444, %v3288
        %v3446 = vadd.f32 %v3445, %v3289
        %3447 = vadd.xlane.f32.xlu0 %v3446
        %v3448 = vpop.xlane.xlu0 %3447
        %v3449 = vadd.f32 %v3290, %v3291
        %v3450 = vadd.f32 %v3449, %v3292
        %v3451 = vadd.f32 %v3450, %v3293
        %3452 = vadd.xlane.f32.xlu0 %v3451
        %v3453 = vpop.xlane.xlu0 %3452
        %s3454 = sld [smem:[#allocation2]]
        %v3455 = vstv %s3454
        %v3456 = vadd.f32 %v3298, %v3455
        %v3457 = vadd.f32 %v3303, %v3455
        %v3458 = vadd.f32 %v3308, %v3455
        %v3459 = vadd.f32 %v3313, %v3455
        %v3460 = vadd.f32 %v3318, %v3455
        %v3461 = vadd.f32 %v3323, %v3455
        %v3462 = vadd.f32 %v3328, %v3455
        %v3463 = vadd.f32 %v3333, %v3455
        %v3464 = vadd.f32 %v3338, %v3455
        %v3465 = vadd.f32 %v3343, %v3455
        %v3466 = vadd.f32 %v3348, %v3455
        %v3467 = vadd.f32 %v3353, %v3455
        %v3468 = vadd.f32 %v3358, %v3455
        %v3469 = vadd.f32 %v3363, %v3455
        %v3470 = vadd.f32 %v3368, %v3455
        %v3471 = vadd.f32 %v3373, %v3455
        %v3472 = vadd.f32 %v3378, %v3455
        %v3473 = vadd.f32 %v3383, %v3455
        %v3474 = vadd.f32 %v3388, %v3455
        %v3475 = vadd.f32 %v3393, %v3455
        %v3476 = vadd.f32 %v3398, %v3455
        %v3477 = vadd.f32 %v3403, %v3455
        %v3478 = vadd.f32 %v3408, %v3455
        %v3479 = vadd.f32 %v3413, %v3455
        %v3480 = vadd.f32 %v3418, %v3455
        %v3481 = vadd.f32 %v3423, %v3455
        %v3482 = vadd.f32 %v3428, %v3455
        %v3483 = vadd.f32 %v3433, %v3455
        %v3484 = vadd.f32 %v3438, %v3455
        %v3485 = vadd.f32 %v3443, %v3455
        %v3486 = vadd.f32 %v3448, %v3455
        %v3487 = vadd.f32 %v3453, %v3455
        %v3520 = vperm.slane %v3456, 0
        %v3521 = vperm.slane %v3456, 1
        %v3522 = vperm.slane %v3456, 2
        %v3523 = vperm.slane %v3456, 3
        %v3524 = vperm.slane %v3456, 4
        %v3525 = vperm.slane %v3456, 5
        %v3526 = vperm.slane %v3456, 6
        %v3527 = vperm.slane %v3456, 7
        %v3528 = vperm.slane %v3457, 0
        %v3529 = vperm.slane %v3457, 1
        %v3530 = vperm.slane %v3457, 2
        %v3531 = vperm.slane %v3457, 3
        %v3532 = vperm.slane %v3457, 4
        %v3533 = vperm.slane %v3457, 5
        %v3534 = vperm.slane %v3457, 6
        %v3535 = vperm.slane %v3457, 7
        %v3536 = vperm.slane %v3458, 0
        %v3537 = vperm.slane %v3458, 1
        %v3538 = vperm.slane %v3458, 2
        %v3539 = vperm.slane %v3458, 3
        %v3540 = vperm.slane %v3458, 4
        %v3541 = vperm.slane %v3458, 5
        %v3542 = vperm.slane %v3458, 6
        %v3543 = vperm.slane %v3458, 7
        %v3544 = vperm.slane %v3459, 0
        %v3545 = vperm.slane %v3459, 1
        %v3546 = vperm.slane %v3459, 2
        %v3547 = vperm.slane %v3459, 3
        %v3548 = vperm.slane %v3459, 4
        %v3549 = vperm.slane %v3459, 5
        %v3550 = vperm.slane %v3459, 6
        %v3551 = vperm.slane %v3459, 7
        %v3552 = vperm.slane %v3460, 0
        %v3553 = vperm.slane %v3460, 1
        %v3554 = vperm.slane %v3460, 2
        %v3555 = vperm.slane %v3460, 3
        %v3556 = vperm.slane %v3460, 4
        %v3557 = vperm.slane %v3460, 5
        %v3558 = vperm.slane %v3460, 6
        %v3559 = vperm.slane %v3460, 7
        %v3560 = vperm.slane %v3461, 0
        %v3561 = vperm.slane %v3461, 1
        %v3562 = vperm.slane %v3461, 2
        %v3563 = vperm.slane %v3461, 3
        %v3564 = vperm.slane %v3461, 4
        %v3565 = vperm.slane %v3461, 5
        %v3566 = vperm.slane %v3461, 6
        %v3567 = vperm.slane %v3461, 7
        %v3568 = vperm.slane %v3462, 0
        %v3569 = vperm.slane %v3462, 1
        %v3570 = vperm.slane %v3462, 2
        %v3571 = vperm.slane %v3462, 3
        %v3572 = vperm.slane %v3462, 4
        %v3573 = vperm.slane %v3462, 5
        %v3574 = vperm.slane %v3462, 6
        %v3575 = vperm.slane %v3462, 7
        %v3576 = vperm.slane %v3463, 0
        %v3577 = vperm.slane %v3463, 1
        %v3578 = vperm.slane %v3463, 2
        %v3579 = vperm.slane %v3463, 3
        %v3580 = vperm.slane %v3463, 4
        %v3581 = vperm.slane %v3463, 5
        %v3582 = vperm.slane %v3463, 6
        %v3583 = vperm.slane %v3463, 7
        %v3584 = vperm.slane %v3464, 0
        %v3585 = vperm.slane %v3464, 1
        %v3586 = vperm.slane %v3464, 2
        %v3587 = vperm.slane %v3464, 3
        %v3588 = vperm.slane %v3464, 4
        %v3589 = vperm.slane %v3464, 5
        %v3590 = vperm.slane %v3464, 6
        %v3591 = vperm.slane %v3464, 7
        %v3592 = vperm.slane %v3465, 0
        %v3593 = vperm.slane %v3465, 1
        %v3594 = vperm.slane %v3465, 2
        %v3595 = vperm.slane %v3465, 3
        %v3596 = vperm.slane %v3465, 4
        %v3597 = vperm.slane %v3465, 5
        %v3598 = vperm.slane %v3465, 6
        %v3599 = vperm.slane %v3465, 7
        %v3600 = vperm.slane %v3466, 0
        %v3601 = vperm.slane %v3466, 1
        %v3602 = vperm.slane %v3466, 2
        %v3603 = vperm.slane %v3466, 3
        %v3604 = vperm.slane %v3466, 4
        %v3605 = vperm.slane %v3466, 5
        %v3606 = vperm.slane %v3466, 6
        %v3607 = vperm.slane %v3466, 7
        %v3608 = vperm.slane %v3467, 0
        %v3609 = vperm.slane %v3467, 1
        %v3610 = vperm.slane %v3467, 2
        %v3611 = vperm.slane %v3467, 3
        %v3612 = vperm.slane %v3467, 4
        %v3613 = vperm.slane %v3467, 5
        %v3614 = vperm.slane %v3467, 6
        %v3615 = vperm.slane %v3467, 7
        %v3616 = vperm.slane %v3468, 0
        %v3617 = vperm.slane %v3468, 1
        %v3618 = vperm.slane %v3468, 2
        %v3619 = vperm.slane %v3468, 3
        %v3620 = vperm.slane %v3468, 4
        %v3621 = vperm.slane %v3468, 5
        %v3622 = vperm.slane %v3468, 6
        %v3623 = vperm.slane %v3468, 7
        %v3624 = vperm.slane %v3469, 0
        %v3625 = vperm.slane %v3469, 1
        %v3626 = vperm.slane %v3469, 2
        %v3627 = vperm.slane %v3469, 3
        %v3628 = vperm.slane %v3469, 4
        %v3629 = vperm.slane %v3469, 5
        %v3630 = vperm.slane %v3469, 6
        %v3631 = vperm.slane %v3469, 7
        %v3632 = vperm.slane %v3470, 0
        %v3633 = vperm.slane %v3470, 1
        %v3634 = vperm.slane %v3470, 2
        %v3635 = vperm.slane %v3470, 3
        %v3636 = vperm.slane %v3470, 4
        %v3637 = vperm.slane %v3470, 5
        %v3638 = vperm.slane %v3470, 6
        %v3639 = vperm.slane %v3470, 7
        %v3640 = vperm.slane %v3471, 0
        %v3641 = vperm.slane %v3471, 1
        %v3642 = vperm.slane %v3471, 2
        %v3643 = vperm.slane %v3471, 3
        %v3644 = vperm.slane %v3471, 4
        %v3645 = vperm.slane %v3471, 5
        %v3646 = vperm.slane %v3471, 6
        %v3647 = vperm.slane %v3471, 7
        %v3648 = vperm.slane %v3472, 0
        %v3649 = vperm.slane %v3472, 1
        %v3650 = vperm.slane %v3472, 2
        %v3651 = vperm.slane %v3472, 3
        %v3652 = vperm.slane %v3472, 4
        %v3653 = vperm.slane %v3472, 5
        %v3654 = vperm.slane %v3472, 6
        %v3655 = vperm.slane %v3472, 7
        %v3656 = vperm.slane %v3473, 0
        %v3657 = vperm.slane %v3473, 1
        %v3658 = vperm.slane %v3473, 2
        %v3659 = vperm.slane %v3473, 3
        %v3660 = vperm.slane %v3473, 4
        %v3661 = vperm.slane %v3473, 5
        %v3662 = vperm.slane %v3473, 6
        %v3663 = vperm.slane %v3473, 7
        %v3664 = vperm.slane %v3474, 0
        %v3665 = vperm.slane %v3474, 1
        %v3666 = vperm.slane %v3474, 2
        %v3667 = vperm.slane %v3474, 3
        %v3668 = vperm.slane %v3474, 4
        %v3669 = vperm.slane %v3474, 5
        %v3670 = vperm.slane %v3474, 6
        %v3671 = vperm.slane %v3474, 7
        %v3672 = vperm.slane %v3475, 0
        %v3673 = vperm.slane %v3475, 1
        %v3674 = vperm.slane %v3475, 2
        %v3675 = vperm.slane %v3475, 3
        %v3676 = vperm.slane %v3475, 4
        %v3677 = vperm.slane %v3475, 5
        %v3678 = vperm.slane %v3475, 6
        %v3679 = vperm.slane %v3475, 7
        %v3680 = vperm.slane %v3476, 0
        %v3681 = vperm.slane %v3476, 1
        %v3682 = vperm.slane %v3476, 2
        %v3683 = vperm.slane %v3476, 3
        %v3684 = vperm.slane %v3476, 4
        %v3685 = vperm.slane %v3476, 5
        %v3686 = vperm.slane %v3476, 6
        %v3687 = vperm.slane %v3476, 7
        %v3688 = vperm.slane %v3477, 0
        %v3689 = vperm.slane %v3477, 1
        %v3690 = vperm.slane %v3477, 2
        %v3691 = vperm.slane %v3477, 3
        %v3692 = vperm.slane %v3477, 4
        %v3693 = vperm.slane %v3477, 5
        %v3694 = vperm.slane %v3477, 6
        %v3695 = vperm.slane %v3477, 7
        %v3696 = vperm.slane %v3478, 0
        %v3697 = vperm.slane %v3478, 1
        %v3698 = vperm.slane %v3478, 2
        %v3699 = vperm.slane %v3478, 3
        %v3700 = vperm.slane %v3478, 4
        %v3701 = vperm.slane %v3478, 5
        %v3702 = vperm.slane %v3478, 6
        %v3703 = vperm.slane %v3478, 7
        %v3704 = vperm.slane %v3479, 0
        %v3705 = vperm.slane %v3479, 1
        %v3706 = vperm.slane %v3479, 2
        %v3707 = vperm.slane %v3479, 3
        %v3708 = vperm.slane %v3479, 4
        %v3709 = vperm.slane %v3479, 5
        %v3710 = vperm.slane %v3479, 6
        %v3711 = vperm.slane %v3479, 7
        %v3712 = vperm.slane %v3480, 0
        %v3713 = vperm.slane %v3480, 1
        %v3714 = vperm.slane %v3480, 2
        %v3715 = vperm.slane %v3480, 3
        %v3716 = vperm.slane %v3480, 4
        %v3717 = vperm.slane %v3480, 5
        %v3718 = vperm.slane %v3480, 6
        %v3719 = vperm.slane %v3480, 7
        %v3720 = vperm.slane %v3481, 0
        %v3721 = vperm.slane %v3481, 1
        %v3722 = vperm.slane %v3481, 2
        %v3723 = vperm.slane %v3481, 3
        %v3724 = vperm.slane %v3481, 4
        %v3725 = vperm.slane %v3481, 5
        %v3726 = vperm.slane %v3481, 6
        %v3727 = vperm.slane %v3481, 7
        %v3728 = vperm.slane %v3482, 0
        %v3729 = vperm.slane %v3482, 1
        %v3730 = vperm.slane %v3482, 2
        %v3731 = vperm.slane %v3482, 3
        %v3732 = vperm.slane %v3482, 4
        %v3733 = vperm.slane %v3482, 5
        %v3734 = vperm.slane %v3482, 6
        %v3735 = vperm.slane %v3482, 7
        %v3736 = vperm.slane %v3483, 0
        %v3737 = vperm.slane %v3483, 1
        %v3738 = vperm.slane %v3483, 2
        %v3739 = vperm.slane %v3483, 3
        %v3740 = vperm.slane %v3483, 4
        %v3741 = vperm.slane %v3483, 5
        %v3742 = vperm.slane %v3483, 6
        %v3743 = vperm.slane %v3483, 7
        %v3744 = vperm.slane %v3484, 0
        %v3745 = vperm.slane %v3484, 1
        %v3746 = vperm.slane %v3484, 2
        %v3747 = vperm.slane %v3484, 3
        %v3748 = vperm.slane %v3484, 4
        %v3749 = vperm.slane %v3484, 5
        %v3750 = vperm.slane %v3484, 6
        %v3751 = vperm.slane %v3484, 7
        %v3752 = vperm.slane %v3485, 0
        %v3753 = vperm.slane %v3485, 1
        %v3754 = vperm.slane %v3485, 2
        %v3755 = vperm.slane %v3485, 3
        %v3756 = vperm.slane %v3485, 4
        %v3757 = vperm.slane %v3485, 5
        %v3758 = vperm.slane %v3485, 6
        %v3759 = vperm.slane %v3485, 7
        %v3760 = vperm.slane %v3486, 0
        %v3761 = vperm.slane %v3486, 1
        %v3762 = vperm.slane %v3486, 2
        %v3763 = vperm.slane %v3486, 3
        %v3764 = vperm.slane %v3486, 4
        %v3765 = vperm.slane %v3486, 5
        %v3766 = vperm.slane %v3486, 6
        %v3767 = vperm.slane %v3486, 7
        %v3768 = vperm.slane %v3487, 0
        %v3769 = vperm.slane %v3487, 1
        %v3770 = vperm.slane %v3487, 2
        %v3771 = vperm.slane %v3487, 3
        %v3772 = vperm.slane %v3487, 4
        %v3773 = vperm.slane %v3487, 5
        %v3774 = vperm.slane %v3487, 6
        %v3775 = vperm.slane %v3487, 7
        %3776 = vst [vmem:[#allocation1] ss:$9 sm:$0xff] %v3520
        %s3777 = scalar_lea.vmem [#allocation1], 1
        %3778 = vst [vmem:[%s3777] ss:$9 sm:$0xff] %v3521
        %s3779 = scalar_lea.vmem [#allocation1], 2
        %3780 = vst [vmem:[%s3779] ss:$9 sm:$0xff] %v3522
        %s3781 = scalar_lea.vmem [#allocation1], 3
        %3782 = vst [vmem:[%s3781] ss:$9 sm:$0xff] %v3523
        %s3783 = scalar_lea.vmem [#allocation1], 4
        %3784 = vst [vmem:[%s3783] ss:$9 sm:$0xff] %v3524
        %s3785 = scalar_lea.vmem [#allocation1], 5
        %3786 = vst [vmem:[%s3785] ss:$9 sm:$0xff] %v3525
        %s3787 = scalar_lea.vmem [#allocation1], 6
        %3788 = vst [vmem:[%s3787] ss:$9 sm:$0xff] %v3526
        %s3789 = scalar_lea.vmem [#allocation1], 7
        %3790 = vst [vmem:[%s3789] ss:$9 sm:$0xff] %v3527
        %v3791 = vld [vmem:[#allocation1] sm:$0xff]
        %3792 = vst [vmem:[#allocation1] ss:$9 sm:$0xff] %v3528
        %3793 = vst [vmem:[%s3777] ss:$9 sm:$0xff] %v3529
        %3794 = vst [vmem:[%s3779] ss:$9 sm:$0xff] %v3530
        %3795 = vst [vmem:[%s3781] ss:$9 sm:$0xff] %v3531
        %3796 = vst [vmem:[%s3783] ss:$9 sm:$0xff] %v3532
        %3797 = vst [vmem:[%s3785] ss:$9 sm:$0xff] %v3533
        %3798 = vst [vmem:[%s3787] ss:$9 sm:$0xff] %v3534
        %3799 = vst [vmem:[%s3789] ss:$9 sm:$0xff] %v3535
        %v3800 = vld [vmem:[#allocation1] sm:$0xff]
        %3801 = vst [vmem:[#allocation1] ss:$9 sm:$0xff] %v3536
        %3802 = vst [vmem:[%s3777] ss:$9 sm:$0xff] %v3537
        %3803 = vst [vmem:[%s3779] ss:$9 sm:$0xff] %v3538
        %3804 = vst [vmem:[%s3781] ss:$9 sm:$0xff] %v3539
        %3805 = vst [vmem:[%s3783] ss:$9 sm:$0xff] %v3540
        %3806 = vst [vmem:[%s3785] ss:$9 sm:$0xff] %v3541
        %3807 = vst [vmem:[%s3787] ss:$9 sm:$0xff] %v3542
        %3808 = vst [vmem:[%s3789] ss:$9 sm:$0xff] %v3543
        %v3809 = vld [vmem:[#allocation1] sm:$0xff]
        %3810 = vst [vmem:[#allocation1] ss:$9 sm:$0xff] %v3544
        %3811 = vst [vmem:[%s3777] ss:$9 sm:$0xff] %v3545
        %3812 = vst [vmem:[%s3779] ss:$9 sm:$0xff] %v3546
        %3813 = vst [vmem:[%s3781] ss:$9 sm:$0xff] %v3547
        %3814 = vst [vmem:[%s3783] ss:$9 sm:$0xff] %v3548
        %3815 = vst [vmem:[%s3785] ss:$9 sm:$0xff] %v3549
        %3816 = vst [vmem:[%s3787] ss:$9 sm:$0xff] %v3550
        %3817 = vst [vmem:[%s3789] ss:$9 sm:$0xff] %v3551
        %v3818 = vld [vmem:[#allocation1] sm:$0xff]
        %3819 = vst [vmem:[#allocation1] ss:$9 sm:$0xff] %v3552
        %3820 = vst [vmem:[%s3777] ss:$9 sm:$0xff] %v3553
        %3821 = vst [vmem:[%s3779] ss:$9 sm:$0xff] %v3554
        %3822 = vst [vmem:[%s3781] ss:$9 sm:$0xff] %v3555
        %3823 = vst [vmem:[%s3783] ss:$9 sm:$0xff] %v3556
        %3824 = vst [vmem:[%s3785] ss:$9 sm:$0xff] %v3557
        %3825 = vst [vmem:[%s3787] ss:$9 sm:$0xff] %v3558
        %3826 = vst [vmem:[%s3789] ss:$9 sm:$0xff] %v3559
        %v3827 = vld [vmem:[#allocation1] sm:$0xff]
        %3828 = vst [vmem:[#allocation1] ss:$9 sm:$0xff] %v3560
        %3829 = vst [vmem:[%s3777] ss:$9 sm:$0xff] %v3561
        %3830 = vst [vmem:[%s3779] ss:$9 sm:$0xff] %v3562
        %3831 = vst [vmem:[%s3781] ss:$9 sm:$0xff] %v3563
        %3832 = vst [vmem:[%s3783] ss:$9 sm:$0xff] %v3564
        %3833 = vst [vmem:[%s3785] ss:$9 sm:$0xff] %v3565
        %3834 = vst [vmem:[%s3787] ss:$9 sm:$0xff] %v3566
        %3835 = vst [vmem:[%s3789] ss:$9 sm:$0xff] %v3567
        %v3836 = vld [vmem:[#allocation1] sm:$0xff]
        %3837 = vst [vmem:[#allocation1] ss:$9 sm:$0xff] %v3568
        %3838 = vst [vmem:[%s3777] ss:$9 sm:$0xff] %v3569
        %3839 = vst [vmem:[%s3779] ss:$9 sm:$0xff] %v3570
        %3840 = vst [vmem:[%s3781] ss:$9 sm:$0xff] %v3571
        %3841 = vst [vmem:[%s3783] ss:$9 sm:$0xff] %v3572
        %3842 = vst [vmem:[%s3785] ss:$9 sm:$0xff] %v3573
        %3843 = vst [vmem:[%s3787] ss:$9 sm:$0xff] %v3574
        %3844 = vst [vmem:[%s3789] ss:$9 sm:$0xff] %v3575
        %v3845 = vld [vmem:[#allocation1] sm:$0xff]
        %3846 = vst [vmem:[#allocation1] ss:$9 sm:$0xff] %v3576
        %3847 = vst [vmem:[%s3777] ss:$9 sm:$0xff] %v3577
        %3848 = vst [vmem:[%s3779] ss:$9 sm:$0xff] %v3578
        %3849 = vst [vmem:[%s3781] ss:$9 sm:$0xff] %v3579
        %3850 = vst [vmem:[%s3783] ss:$9 sm:$0xff] %v3580
        %3851 = vst [vmem:[%s3785] ss:$9 sm:$0xff] %v3581
        %3852 = vst [vmem:[%s3787] ss:$9 sm:$0xff] %v3582
        %3853 = vst [vmem:[%s3789] ss:$9 sm:$0xff] %v3583
        %v3854 = vld [vmem:[#allocation1] sm:$0xff]
        %3855 = vst [vmem:[#allocation1] ss:$9 sm:$0xff] %v3584
        %3856 = vst [vmem:[%s3777] ss:$9 sm:$0xff] %v3585
        %3857 = vst [vmem:[%s3779] ss:$9 sm:$0xff] %v3586
        %3858 = vst [vmem:[%s3781] ss:$9 sm:$0xff] %v3587
        %3859 = vst [vmem:[%s3783] ss:$9 sm:$0xff] %v3588
        %3860 = vst [vmem:[%s3785] ss:$9 sm:$0xff] %v3589
        %3861 = vst [vmem:[%s3787] ss:$9 sm:$0xff] %v3590
        %3862 = vst [vmem:[%s3789] ss:$9 sm:$0xff] %v3591
        %v3863 = vld [vmem:[#allocation1] sm:$0xff]
        %3864 = vst [vmem:[#allocation1] ss:$9 sm:$0xff] %v3592
        %3865 = vst [vmem:[%s3777] ss:$9 sm:$0xff] %v3593
        %3866 = vst [vmem:[%s3779] ss:$9 sm:$0xff] %v3594
        %3867 = vst [vmem:[%s3781] ss:$9 sm:$0xff] %v3595
        %3868 = vst [vmem:[%s3783] ss:$9 sm:$0xff] %v3596
        %3869 = vst [vmem:[%s3785] ss:$9 sm:$0xff] %v3597
        %3870 = vst [vmem:[%s3787] ss:$9 sm:$0xff] %v3598
        %3871 = vst [vmem:[%s3789] ss:$9 sm:$0xff] %v3599
        %v3872 = vld [vmem:[#allocation1] sm:$0xff]
        %3873 = vst [vmem:[#allocation1] ss:$9 sm:$0xff] %v3600
        %3874 = vst [vmem:[%s3777] ss:$9 sm:$0xff] %v3601
        %3875 = vst [vmem:[%s3779] ss:$9 sm:$0xff] %v3602
        %3876 = vst [vmem:[%s3781] ss:$9 sm:$0xff] %v3603
        %3877 = vst [vmem:[%s3783] ss:$9 sm:$0xff] %v3604
        %3878 = vst [vmem:[%s3785] ss:$9 sm:$0xff] %v3605
        %3879 = vst [vmem:[%s3787] ss:$9 sm:$0xff] %v3606
        %3880 = vst [vmem:[%s3789] ss:$9 sm:$0xff] %v3607
        %v3881 = vld [vmem:[#allocation1] sm:$0xff]
        %3882 = vst [vmem:[#allocation1] ss:$9 sm:$0xff] %v3608
        %3883 = vst [vmem:[%s3777] ss:$9 sm:$0xff] %v3609
        %3884 = vst [vmem:[%s3779] ss:$9 sm:$0xff] %v3610
        %3885 = vst [vmem:[%s3781] ss:$9 sm:$0xff] %v3611
        %3886 = vst [vmem:[%s3783] ss:$9 sm:$0xff] %v3612
        %3887 = vst [vmem:[%s3785] ss:$9 sm:$0xff] %v3613
        %3888 = vst [vmem:[%s3787] ss:$9 sm:$0xff] %v3614
        %3889 = vst [vmem:[%s3789] ss:$9 sm:$0xff] %v3615
        %v3890 = vld [vmem:[#allocation1] sm:$0xff]
        %3891 = vst [vmem:[#allocation1] ss:$9 sm:$0xff] %v3616
        %3892 = vst [vmem:[%s3777] ss:$9 sm:$0xff] %v3617
        %3893 = vst [vmem:[%s3779] ss:$9 sm:$0xff] %v3618
        %3894 = vst [vmem:[%s3781] ss:$9 sm:$0xff] %v3619
        %3895 = vst [vmem:[%s3783] ss:$9 sm:$0xff] %v3620
        %3896 = vst [vmem:[%s3785] ss:$9 sm:$0xff] %v3621
        %3897 = vst [vmem:[%s3787] ss:$9 sm:$0xff] %v3622
        %3898 = vst [vmem:[%s3789] ss:$9 sm:$0xff] %v3623
        %v3899 = vld [vmem:[#allocation1] sm:$0xff]
        %3900 = vst [vmem:[#allocation1] ss:$9 sm:$0xff] %v3624
        %3901 = vst [vmem:[%s3777] ss:$9 sm:$0xff] %v3625
        %3902 = vst [vmem:[%s3779] ss:$9 sm:$0xff] %v3626
        %3903 = vst [vmem:[%s3781] ss:$9 sm:$0xff] %v3627
        %3904 = vst [vmem:[%s3783] ss:$9 sm:$0xff] %v3628
        %3905 = vst [vmem:[%s3785] ss:$9 sm:$0xff] %v3629
        %3906 = vst [vmem:[%s3787] ss:$9 sm:$0xff] %v3630
        %3907 = vst [vmem:[%s3789] ss:$9 sm:$0xff] %v3631
        %v3908 = vld [vmem:[#allocation1] sm:$0xff]
        %3909 = vst [vmem:[#allocation1] ss:$9 sm:$0xff] %v3632
        %3910 = vst [vmem:[%s3777] ss:$9 sm:$0xff] %v3633
        %3911 = vst [vmem:[%s3779] ss:$9 sm:$0xff] %v3634
        %3912 = vst [vmem:[%s3781] ss:$9 sm:$0xff] %v3635
        %3913 = vst [vmem:[%s3783] ss:$9 sm:$0xff] %v3636
        %3914 = vst [vmem:[%s3785] ss:$9 sm:$0xff] %v3637
        %3915 = vst [vmem:[%s3787] ss:$9 sm:$0xff] %v3638
        %3916 = vst [vmem:[%s3789] ss:$9 sm:$0xff] %v3639
        %v3917 = vld [vmem:[#allocation1] sm:$0xff]
        %3918 = vst [vmem:[#allocation1] ss:$9 sm:$0xff] %v3640
        %3919 = vst [vmem:[%s3777] ss:$9 sm:$0xff] %v3641
        %3920 = vst [vmem:[%s3779] ss:$9 sm:$0xff] %v3642
        %3921 = vst [vmem:[%s3781] ss:$9 sm:$0xff] %v3643
        %3922 = vst [vmem:[%s3783] ss:$9 sm:$0xff] %v3644
        %3923 = vst [vmem:[%s3785] ss:$9 sm:$0xff] %v3645
        %3924 = vst [vmem:[%s3787] ss:$9 sm:$0xff] %v3646
        %3925 = vst [vmem:[%s3789] ss:$9 sm:$0xff] %v3647
        %v3926 = vld [vmem:[#allocation1] sm:$0xff]
        %3927 = vst [vmem:[#allocation1] ss:$9 sm:$0xff] %v3648
        %3928 = vst [vmem:[%s3777] ss:$9 sm:$0xff] %v3649
        %3929 = vst [vmem:[%s3779] ss:$9 sm:$0xff] %v3650
        %3930 = vst [vmem:[%s3781] ss:$9 sm:$0xff] %v3651
        %3931 = vst [vmem:[%s3783] ss:$9 sm:$0xff] %v3652
        %3932 = vst [vmem:[%s3785] ss:$9 sm:$0xff] %v3653
        %3933 = vst [vmem:[%s3787] ss:$9 sm:$0xff] %v3654
        %3934 = vst [vmem:[%s3789] ss:$9 sm:$0xff] %v3655
        %v3935 = vld [vmem:[#allocation1] sm:$0xff]
        %3936 = vst [vmem:[#allocation1] ss:$9 sm:$0xff] %v3656
        %3937 = vst [vmem:[%s3777] ss:$9 sm:$0xff] %v3657
        %3938 = vst [vmem:[%s3779] ss:$9 sm:$0xff] %v3658
        %3939 = vst [vmem:[%s3781] ss:$9 sm:$0xff] %v3659
        %3940 = vst [vmem:[%s3783] ss:$9 sm:$0xff] %v3660
        %3941 = vst [vmem:[%s3785] ss:$9 sm:$0xff] %v3661
        %3942 = vst [vmem:[%s3787] ss:$9 sm:$0xff] %v3662
        %3943 = vst [vmem:[%s3789] ss:$9 sm:$0xff] %v3663
        %v3944 = vld [vmem:[#allocation1] sm:$0xff]
        %3945 = vst [vmem:[#allocation1] ss:$9 sm:$0xff] %v3664
        %3946 = vst [vmem:[%s3777] ss:$9 sm:$0xff] %v3665
        %3947 = vst [vmem:[%s3779] ss:$9 sm:$0xff] %v3666
        %3948 = vst [vmem:[%s3781] ss:$9 sm:$0xff] %v3667
        %3949 = vst [vmem:[%s3783] ss:$9 sm:$0xff] %v3668
        %3950 = vst [vmem:[%s3785] ss:$9 sm:$0xff] %v3669
        %3951 = vst [vmem:[%s3787] ss:$9 sm:$0xff] %v3670
        %3952 = vst [vmem:[%s3789] ss:$9 sm:$0xff] %v3671
        %v3953 = vld [vmem:[#allocation1] sm:$0xff]
        %3954 = vst [vmem:[#allocation1] ss:$9 sm:$0xff] %v3672
        %3955 = vst [vmem:[%s3777] ss:$9 sm:$0xff] %v3673
        %3956 = vst [vmem:[%s3779] ss:$9 sm:$0xff] %v3674
        %3957 = vst [vmem:[%s3781] ss:$9 sm:$0xff] %v3675
        %3958 = vst [vmem:[%s3783] ss:$9 sm:$0xff] %v3676
        %3959 = vst [vmem:[%s3785] ss:$9 sm:$0xff] %v3677
        %3960 = vst [vmem:[%s3787] ss:$9 sm:$0xff] %v3678
        %3961 = vst [vmem:[%s3789] ss:$9 sm:$0xff] %v3679
        %v3962 = vld [vmem:[#allocation1] sm:$0xff]
        %3963 = vst [vmem:[#allocation1] ss:$9 sm:$0xff] %v3680
        %3964 = vst [vmem:[%s3777] ss:$9 sm:$0xff] %v3681
        %3965 = vst [vmem:[%s3779] ss:$9 sm:$0xff] %v3682
        %3966 = vst [vmem:[%s3781] ss:$9 sm:$0xff] %v3683
        %3967 = vst [vmem:[%s3783] ss:$9 sm:$0xff] %v3684
        %3968 = vst [vmem:[%s3785] ss:$9 sm:$0xff] %v3685
        %3969 = vst [vmem:[%s3787] ss:$9 sm:$0xff] %v3686
        %3970 = vst [vmem:[%s3789] ss:$9 sm:$0xff] %v3687
        %v3971 = vld [vmem:[#allocation1] sm:$0xff]
        %3972 = vst [vmem:[#allocation1] ss:$9 sm:$0xff] %v3688
        %3973 = vst [vmem:[%s3777] ss:$9 sm:$0xff] %v3689
        %3974 = vst [vmem:[%s3779] ss:$9 sm:$0xff] %v3690
        %3975 = vst [vmem:[%s3781] ss:$9 sm:$0xff] %v3691
        %3976 = vst [vmem:[%s3783] ss:$9 sm:$0xff] %v3692
        %3977 = vst [vmem:[%s3785] ss:$9 sm:$0xff] %v3693
        %3978 = vst [vmem:[%s3787] ss:$9 sm:$0xff] %v3694
        %3979 = vst [vmem:[%s3789] ss:$9 sm:$0xff] %v3695
        %v3980 = vld [vmem:[#allocation1] sm:$0xff]
        %3981 = vst [vmem:[#allocation1] ss:$9 sm:$0xff] %v3696
        %3982 = vst [vmem:[%s3777] ss:$9 sm:$0xff] %v3697
        %3983 = vst [vmem:[%s3779] ss:$9 sm:$0xff] %v3698
        %3984 = vst [vmem:[%s3781] ss:$9 sm:$0xff] %v3699
        %3985 = vst [vmem:[%s3783] ss:$9 sm:$0xff] %v3700
        %3986 = vst [vmem:[%s3785] ss:$9 sm:$0xff] %v3701
        %3987 = vst [vmem:[%s3787] ss:$9 sm:$0xff] %v3702
        %3988 = vst [vmem:[%s3789] ss:$9 sm:$0xff] %v3703
        %v3989 = vld [vmem:[#allocation1] sm:$0xff]
        %3990 = vst [vmem:[#allocation1] ss:$9 sm:$0xff] %v3704
        %3991 = vst [vmem:[%s3777] ss:$9 sm:$0xff] %v3705
        %3992 = vst [vmem:[%s3779] ss:$9 sm:$0xff] %v3706
        %3993 = vst [vmem:[%s3781] ss:$9 sm:$0xff] %v3707
        %3994 = vst [vmem:[%s3783] ss:$9 sm:$0xff] %v3708
        %3995 = vst [vmem:[%s3785] ss:$9 sm:$0xff] %v3709
        %3996 = vst [vmem:[%s3787] ss:$9 sm:$0xff] %v3710
        %3997 = vst [vmem:[%s3789] ss:$9 sm:$0xff] %v3711
        %v3998 = vld [vmem:[#allocation1] sm:$0xff]
        %3999 = vst [vmem:[#allocation1] ss:$9 sm:$0xff] %v3712
        %4000 = vst [vmem:[%s3777] ss:$9 sm:$0xff] %v3713
        %4001 = vst [vmem:[%s3779] ss:$9 sm:$0xff] %v3714
        %4002 = vst [vmem:[%s3781] ss:$9 sm:$0xff] %v3715
        %4003 = vst [vmem:[%s3783] ss:$9 sm:$0xff] %v3716
        %4004 = vst [vmem:[%s3785] ss:$9 sm:$0xff] %v3717
        %4005 = vst [vmem:[%s3787] ss:$9 sm:$0xff] %v3718
        %4006 = vst [vmem:[%s3789] ss:$9 sm:$0xff] %v3719
        %v4007 = vld [vmem:[#allocation1] sm:$0xff]
        %4008 = vst [vmem:[#allocation1] ss:$9 sm:$0xff] %v3720
        %4009 = vst [vmem:[%s3777] ss:$9 sm:$0xff] %v3721
        %4010 = vst [vmem:[%s3779] ss:$9 sm:$0xff] %v3722
        %4011 = vst [vmem:[%s3781] ss:$9 sm:$0xff] %v3723
        %4012 = vst [vmem:[%s3783] ss:$9 sm:$0xff] %v3724
        %4013 = vst [vmem:[%s3785] ss:$9 sm:$0xff] %v3725
        %4014 = vst [vmem:[%s3787] ss:$9 sm:$0xff] %v3726
        %4015 = vst [vmem:[%s3789] ss:$9 sm:$0xff] %v3727
        %v4016 = vld [vmem:[#allocation1] sm:$0xff]
        %4017 = vst [vmem:[#allocation1] ss:$9 sm:$0xff] %v3728
        %4018 = vst [vmem:[%s3777] ss:$9 sm:$0xff] %v3729
        %4019 = vst [vmem:[%s3779] ss:$9 sm:$0xff] %v3730
        %4020 = vst [vmem:[%s3781] ss:$9 sm:$0xff] %v3731
        %4021 = vst [vmem:[%s3783] ss:$9 sm:$0xff] %v3732
        %4022 = vst [vmem:[%s3785] ss:$9 sm:$0xff] %v3733
        %4023 = vst [vmem:[%s3787] ss:$9 sm:$0xff] %v3734
        %4024 = vst [vmem:[%s3789] ss:$9 sm:$0xff] %v3735
        %v4025 = vld [vmem:[#allocation1] sm:$0xff]
        %4026 = vst [vmem:[#allocation1] ss:$9 sm:$0xff] %v3736
        %4027 = vst [vmem:[%s3777] ss:$9 sm:$0xff] %v3737
        %4028 = vst [vmem:[%s3779] ss:$9 sm:$0xff] %v3738
        %4029 = vst [vmem:[%s3781] ss:$9 sm:$0xff] %v3739
        %4030 = vst [vmem:[%s3783] ss:$9 sm:$0xff] %v3740
        %4031 = vst [vmem:[%s3785] ss:$9 sm:$0xff] %v3741
        %4032 = vst [vmem:[%s3787] ss:$9 sm:$0xff] %v3742
        %4033 = vst [vmem:[%s3789] ss:$9 sm:$0xff] %v3743
        %v4034 = vld [vmem:[#allocation1] sm:$0xff]
        %4035 = vst [vmem:[#allocation1] ss:$9 sm:$0xff] %v3744
        %4036 = vst [vmem:[%s3777] ss:$9 sm:$0xff] %v3745
        %4037 = vst [vmem:[%s3779] ss:$9 sm:$0xff] %v3746
        %4038 = vst [vmem:[%s3781] ss:$9 sm:$0xff] %v3747
        %4039 = vst [vmem:[%s3783] ss:$9 sm:$0xff] %v3748
        %4040 = vst [vmem:[%s3785] ss:$9 sm:$0xff] %v3749
        %4041 = vst [vmem:[%s3787] ss:$9 sm:$0xff] %v3750
        %4042 = vst [vmem:[%s3789] ss:$9 sm:$0xff] %v3751
        %v4043 = vld [vmem:[#allocation1] sm:$0xff]
        %4044 = vst [vmem:[#allocation1] ss:$9 sm:$0xff] %v3752
        %4045 = vst [vmem:[%s3777] ss:$9 sm:$0xff] %v3753
        %4046 = vst [vmem:[%s3779] ss:$9 sm:$0xff] %v3754
        %4047 = vst [vmem:[%s3781] ss:$9 sm:$0xff] %v3755
        %4048 = vst [vmem:[%s3783] ss:$9 sm:$0xff] %v3756
        %4049 = vst [vmem:[%s3785] ss:$9 sm:$0xff] %v3757
        %4050 = vst [vmem:[%s3787] ss:$9 sm:$0xff] %v3758
        %4051 = vst [vmem:[%s3789] ss:$9 sm:$0xff] %v3759
        %v4052 = vld [vmem:[#allocation1] sm:$0xff]
        %4053 = vst [vmem:[#allocation1] ss:$9 sm:$0xff] %v3760
        %4054 = vst [vmem:[%s3777] ss:$9 sm:$0xff] %v3761
        %4055 = vst [vmem:[%s3779] ss:$9 sm:$0xff] %v3762
        %4056 = vst [vmem:[%s3781] ss:$9 sm:$0xff] %v3763
        %4057 = vst [vmem:[%s3783] ss:$9 sm:$0xff] %v3764
        %4058 = vst [vmem:[%s3785] ss:$9 sm:$0xff] %v3765
        %4059 = vst [vmem:[%s3787] ss:$9 sm:$0xff] %v3766
        %4060 = vst [vmem:[%s3789] ss:$9 sm:$0xff] %v3767
        %v4061 = vld [vmem:[#allocation1] sm:$0xff]
        %4062 = vst [vmem:[#allocation1] ss:$9 sm:$0xff] %v3768
        %4063 = vst [vmem:[%s3777] ss:$9 sm:$0xff] %v3769
        %4064 = vst [vmem:[%s3779] ss:$9 sm:$0xff] %v3770
        %4065 = vst [vmem:[%s3781] ss:$9 sm:$0xff] %v3771
        %4066 = vst [vmem:[%s3783] ss:$9 sm:$0xff] %v3772
        %4067 = vst [vmem:[%s3785] ss:$9 sm:$0xff] %v3773
        %4068 = vst [vmem:[%s3787] ss:$9 sm:$0xff] %v3774
        %4069 = vst [vmem:[%s3789] ss:$9 sm:$0xff] %v3775
        %v4070 = vld [vmem:[#allocation1] sm:$0xff]
        %4071 = vset.pattern.permute.xlu0 0
        %4072 = vperm.xlu0 %4071, %v3791
        %v4073 = vpop.permute.xlu0 %4072
        %4074 = vset.pattern.permute.xlu0 0
        %4075 = vperm.xlu0 %4074, %v3800
        %v4076 = vpop.permute.xlu0 %4075
        %4077 = vset.pattern.permute.xlu0 0
        %4078 = vperm.xlu0 %4077, %v3809
        %v4079 = vpop.permute.xlu0 %4078
        %4080 = vset.pattern.permute.xlu0 0
        %4081 = vperm.xlu0 %4080, %v3818
        %v4082 = vpop.permute.xlu0 %4081
        %4083 = vset.pattern.permute.xlu0 0
        %4084 = vperm.xlu0 %4083, %v3827
        %v4085 = vpop.permute.xlu0 %4084
        %4086 = vset.pattern.permute.xlu0 0
        %4087 = vperm.xlu0 %4086, %v3836
        %v4088 = vpop.permute.xlu0 %4087
        %4089 = vset.pattern.permute.xlu0 0
        %4090 = vperm.xlu0 %4089, %v3845
        %v4091 = vpop.permute.xlu0 %4090
        %4092 = vset.pattern.permute.xlu0 0
        %4093 = vperm.xlu0 %4092, %v3854
        %v4094 = vpop.permute.xlu0 %4093
        %4095 = vset.pattern.permute.xlu0 0
        %4096 = vperm.xlu0 %4095, %v3863
        %v4097 = vpop.permute.xlu0 %4096
        %4098 = vset.pattern.permute.xlu0 0
        %4099 = vperm.xlu0 %4098, %v3872
        %v4100 = vpop.permute.xlu0 %4099
        %4101 = vset.pattern.permute.xlu0 0
        %4102 = vperm.xlu0 %4101, %v3881
        %v4103 = vpop.permute.xlu0 %4102
        %4104 = vset.pattern.permute.xlu0 0
        %4105 = vperm.xlu0 %4104, %v3890
        %v4106 = vpop.permute.xlu0 %4105
        %4107 = vset.pattern.permute.xlu0 0
        %4108 = vperm.xlu0 %4107, %v3899
        %v4109 = vpop.permute.xlu0 %4108
        %4110 = vset.pattern.permute.xlu0 0
        %4111 = vperm.xlu0 %4110, %v3908
        %v4112 = vpop.permute.xlu0 %4111
        %4113 = vset.pattern.permute.xlu0 0
        %4114 = vperm.xlu0 %4113, %v3917
        %v4115 = vpop.permute.xlu0 %4114
        %4116 = vset.pattern.permute.xlu0 0
        %4117 = vperm.xlu0 %4116, %v3926
        %v4118 = vpop.permute.xlu0 %4117
        %4119 = vset.pattern.permute.xlu0 0
        %4120 = vperm.xlu0 %4119, %v3935
        %v4121 = vpop.permute.xlu0 %4120
        %4122 = vset.pattern.permute.xlu0 0
        %4123 = vperm.xlu0 %4122, %v3944
        %v4124 = vpop.permute.xlu0 %4123
        %4125 = vset.pattern.permute.xlu0 0
        %4126 = vperm.xlu0 %4125, %v3953
        %v4127 = vpop.permute.xlu0 %4126
        %4128 = vset.pattern.permute.xlu0 0
        %4129 = vperm.xlu0 %4128, %v3962
        %v4130 = vpop.permute.xlu0 %4129
        %4131 = vset.pattern.permute.xlu0 0
        %4132 = vperm.xlu0 %4131, %v3971
        %v4133 = vpop.permute.xlu0 %4132
        %4134 = vset.pattern.permute.xlu0 0
        %4135 = vperm.xlu0 %4134, %v3980
        %v4136 = vpop.permute.xlu0 %4135
        %4137 = vset.pattern.permute.xlu0 0
        %4138 = vperm.xlu0 %4137, %v3989
        %v4139 = vpop.permute.xlu0 %4138
        %4140 = vset.pattern.permute.xlu0 0
        %4141 = vperm.xlu0 %4140, %v3998
        %v4142 = vpop.permute.xlu0 %4141
        %4143 = vset.pattern.permute.xlu0 0
        %4144 = vperm.xlu0 %4143, %v4007
        %v4145 = vpop.permute.xlu0 %4144
        %4146 = vset.pattern.permute.xlu0 0
        %4147 = vperm.xlu0 %4146, %v4016
        %v4148 = vpop.permute.xlu0 %4147
        %4149 = vset.pattern.permute.xlu0 0
        %4150 = vperm.xlu0 %4149, %v4025
        %v4151 = vpop.permute.xlu0 %4150
        %4152 = vset.pattern.permute.xlu0 0
        %4153 = vperm.xlu0 %4152, %v4034
        %v4154 = vpop.permute.xlu0 %4153
        %4155 = vset.pattern.permute.xlu0 0
        %4156 = vperm.xlu0 %4155, %v4043
        %v4157 = vpop.permute.xlu0 %4156
        %4158 = vset.pattern.permute.xlu0 0
        %4159 = vperm.xlu0 %4158, %v4052
        %v4160 = vpop.permute.xlu0 %4159
        %4161 = vset.pattern.permute.xlu0 0
        %4162 = vperm.xlu0 %4161, %v4061
        %v4163 = vpop.permute.xlu0 %4162
        %4164 = vset.pattern.permute.xlu0 0
        %4165 = vperm.xlu0 %4164, %v4070
        %v4166 = vpop.permute.xlu0 %4165
        %v4167 = vlaneseq
        %v4168 = vand.u32 %v4167, 127
        %v4169 = vperm.slane %v4073, %v4168
        %v4170 = vadd.s32 %v4168, 4294967288
        %v4171 = vperm.slane %v4076, %v4170
        %vm4172 = vcmask 130112
        %v4173 = vsel %vm4172, %v4171, %v4169
        %v4174 = vadd.s32 %v4168, 4294967280
        %v4175 = vperm.slane %v4079, %v4174
        %vm4176 = vcmask 195712
        %v4177 = vsel %vm4176, %v4175, %v4173
        %v4178 = vadd.s32 %v4168, 4294967272
        %v4179 = vperm.slane %v4082, %v4178
        %vm4180 = vcmask 261312
        %v4181 = vsel %vm4180, %v4179, %v4177
        %v4182 = vadd.s32 %v4168, 4294967264
        %v4183 = vperm.slane %v4085, %v4182
        %vm4184 = vcmask 326912
        %v4185 = vsel %vm4184, %v4183, %v4181
        %v4186 = vadd.s32 %v4168, 4294967256
        %v4187 = vperm.slane %v4088, %v4186
        %vm4188 = vcmask 392512
        %v4189 = vsel %vm4188, %v4187, %v4185
        %v4190 = vadd.s32 %v4168, 4294967248
        %v4191 = vperm.slane %v4091, %v4190
        %vm4192 = vcmask 458112
        %v4193 = vsel %vm4192, %v4191, %v4189
        %v4194 = vadd.s32 %v4168, 4294967240
        %v4195 = vperm.slane %v4094, %v4194
        %vm4196 = vcmask 523712
        %v4197 = vsel %vm4196, %v4195, %v4193
        %v4198 = vadd.s32 %v4168, 4294967232
        %v4199 = vperm.slane %v4097, %v4198
        %vm4200 = vcmask 589312
        %v4201 = vsel %vm4200, %v4199, %v4197
        %v4202 = vadd.s32 %v4168, 4294967224
        %v4203 = vperm.slane %v4100, %v4202
        %vm4204 = vcmask 654912
        %v4205 = vsel %vm4204, %v4203, %v4201
        %v4206 = vadd.s32 %v4168, 4294967216
        %v4207 = vperm.slane %v4103, %v4206
        %vm4208 = vcmask 720512
        %v4209 = vsel %vm4208, %v4207, %v4205
        %v4210 = vadd.s32 %v4168, 4294967208
        %v4211 = vperm.slane %v4106, %v4210
        %vm4212 = vcmask 786112
        %v4213 = vsel %vm4212, %v4211, %v4209
        %v4214 = vadd.s32 %v4168, 4294967200
        %v4215 = vperm.slane %v4109, %v4214
        %vm4216 = vcmask 851712
        %v4217 = vsel %vm4216, %v4215, %v4213
        %v4218 = vadd.s32 %v4168, 4294967192
        %v4219 = vperm.slane %v4112, %v4218
        %vm4220 = vcmask 917312
        %v4221 = vsel %vm4220, %v4219, %v4217
        %v4222 = vadd.s32 %v4168, 4294967184
        %v4223 = vperm.slane %v4115, %v4222
        %vm4224 = vcmask 982912
        %v4225 = vsel %vm4224, %v4223, %v4221
        %v4226 = vadd.s32 %v4168, 4294967176
        %v4227 = vperm.slane %v4118, %v4226
        %vm4228 = vcmask 1048512
        %v4229 = vsel %vm4228, %v4227, %v4225
        %v4230 = vperm.slane %v4121, %v4168
        %v4231 = vperm.slane %v4124, %v4170
        %v4232 = vsel %vm4172, %v4231, %v4230
        %v4233 = vperm.slane %v4127, %v4174
        %v4234 = vsel %vm4176, %v4233, %v4232
        %v4235 = vperm.slane %v4130, %v4178
        %v4236 = vsel %vm4180, %v4235, %v4234
        %v4237 = vperm.slane %v4133, %v4182
        %v4238 = vsel %vm4184, %v4237, %v4236
        %v4239 = vperm.slane %v4136, %v4186
        %v4240 = vsel %vm4188, %v4239, %v4238
        %v4241 = vperm.slane %v4139, %v4190
        %v4242 = vsel %vm4192, %v4241, %v4240
        %v4243 = vperm.slane %v4142, %v4194
        %v4244 = vsel %vm4196, %v4243, %v4242
        %v4245 = vperm.slane %v4145, %v4198
        %v4246 = vsel %vm4200, %v4245, %v4244
        %v4247 = vperm.slane %v4148, %v4202
        %v4248 = vsel %vm4204, %v4247, %v4246
        %v4249 = vperm.slane %v4151, %v4206
        %v4250 = vsel %vm4208, %v4249, %v4248
        %v4251 = vperm.slane %v4154, %v4210
        %v4252 = vsel %vm4212, %v4251, %v4250
        %v4253 = vperm.slane %v4157, %v4214
        %v4254 = vsel %vm4216, %v4253, %v4252
        %v4255 = vperm.slane %v4160, %v4218
        %v4256 = vsel %vm4220, %v4255, %v4254
        %v4257 = vperm.slane %v4163, %v4222
        %v4258 = vsel %vm4224, %v4257, %v4256
        %v4259 = vperm.slane %v4166, %v4226
        %v4260 = vsel %vm4228, %v4259, %v4258
        %v4261 = vrot.slane %v4260, 7
        %vm4262 = vcmask 1040384
        %v4263 = vsel %vm4262, %v4229, %v4261
        %v4265 = vlaneseq
        %vm4266 = vcmp.ge.s32.totalorder %v4265, 0
        %vm4267 = vcmp.lt.s32.totalorder %v4265, 256
        %vm4268 = vmand %vm4266, %vm4267
        %4269 = vst.msk [vmem:[%s343] sm:$0x3] %vm4268, %v4263
        %s4270 = sand.u32 %s231, 1
        %s4271 = scalar_lea.sflag [#allocation4], %s4270
        %s4272 = sand.u32 %s231, 1
        %s4273 = smul.addr %s4272, 2
        %s4274 = scalar_lea.vmem [#allocation3], %s4273
        // Predicated region
        $region57: #{tpu_custom_call.1} parent=55 // pred_check
          %p4275 = pneg %p241
        $region58: #{tpu_custom_call.1} parent=55 // pred_check_branch
          %4277 = sbr.rel (%p4275) target = $region60
        $region59: #{tpu_custom_call.1} parent=55 // pred_region
          %s4278 = smul.u32 2, %s24
          %4280 = vsyncadd %s4271, 0
          %s4281 = scalar_lea.hbm %s9, %s4278
          %s4283 = sshll.u32 %s4274, 4
          %s4284 = int_to_ptr.vmem [resolvable:$true] %s4283
          %s4285 = sshll.u32 %s4281, 4
          %s4286 = int_to_ptr.hbm [resolvable:$true] %s4285
          %4288 = dma.vmem_to_hbm [thread:$0]  %s4284, 32, %s4286, %s4271
        $region60: #{tpu_custom_call.1} parent=55 // pred_fallthru
          _
      $region56: #{tpu_custom_call.1} parent=5 // pred_fallthru
        _
      %p4289 = scmp.le.s32.totalorder 2, %s19
      // Predicated region
      $region61: #{tpu_custom_call.1} parent=5 // pred_check
        %p4290 = pneg %p4289
      $region62: #{tpu_custom_call.1} parent=5 // pred_check_branch
        %4292 = sbr.rel (%p4290) target = $region64
      $region63: #{tpu_custom_call.1} parent=5 // pred_region
        %s4293 = ssub.s32 %s19, 2
        // Predicated region
        $region65: #{tpu_custom_call.1} parent=63 // pred_check
          %p4294 = pneg %p247
        $region66: #{tpu_custom_call.1} parent=63 // pred_check_branch
          %4296 = sbr.rel (%p4294) target = $region68
        $region67: #{tpu_custom_call.1} parent=63 // pred_region
          %s4297 = sand.u32 %s232, 1
          %s4298 = scalar_lea.sflag [#allocation4], %s4297
          %s4299 = sand.u32 %s232, 1
          %s4300 = smul.addr %s4299, 2
          %s4301 = scalar_lea.vmem [#allocation3], %s4300
          %4303 = dma.done %s4298, 32
        $region68: #{tpu_custom_call.1} parent=63 // pred_fallthru
          _
      $region64: #{tpu_custom_call.1} parent=5 // pred_fallthru
        _
    $region6: #{tpu_custom_call.1} parent=1 // loop_footer
      %s23 = sadd.s32 1, %s19
    $region7: #{tpu_custom_call.1} parent=1 // loop_footer_branch
      %18 = sbr.rel target = $region3
    $region8: #{tpu_custom_call.1} parent=1 // loop_exit
      _
    %4304 = vsyncpa [#allocation4], 1
    %s4305 = scalar_lea.sflag [#allocation4], 1
    %4306 = vsyncpa %s4305, 1

</llo_original>
